<compile_context>
chip_gen: v5e
topology: v5e:2x2
jax: 0.10.0
libtpu: 0.0.40
codegen_flags: <defaults>
</compile_context>

<pallas_src>
import functools
import math

import jax
import jax.numpy as jnp
from jax.experimental import pallas as pl
from jax.experimental.pallas import tpu as pltpu

F32 = jnp.float32

# ---------------------------------------------------------------------------
# model dimensions (consistent with the module's constructor args)
# ---------------------------------------------------------------------------
BATCH = 2            # batchSize
NUM_PARTICLES = 8    # numParticles
OBS_DIM = 16         # observationDim
ACTION_DIM = 4       # actionDim
OBS_ENC_DIM = 32     # observationEncodeDim
ACT_ENC_DIM = 8      # actionEncodeDim
H_DIM = 32           # hDim   (per-particle deterministic state)
Z_DIM = 16           # zDim   (per-particle stochastic latent)
ENC_Z_DIM = 16       # encoded_Z dimension
PROP_HID = 32        # proposal network hidden
TRANS_HID = 32       # transition (prior) network hidden
EMIS_HID = 32        # emission network hidden
GRU_HID = 32         # hiddenDim (particleGru hidden / policy feature dim)

N_ROWS = BATCH * NUM_PARTICLES
_LOG_2PI = math.log(2.0 * math.pi)
_LOG_P = math.log(float(NUM_PARTICLES))

# ---- packed dynamic inputs: every sub-block starts at a 128-lane boundary ----
IB_OBS, IB_ACT, IB_LW, IB_UNIF = 0, 128, 256, 384
IB_W = 512                                   # (BATCH, 512)
IP_H, IP_EPS = 0, 128
IP_W = 256                                   # (N_ROWS, 256)

# ---- packed outputs: one lane-dense (., 128) store each ----
PP_H_OFF, PP_Z_OFF, PP_LW_OFF = 0, H_DIM, H_DIM + ENC_Z_DIM
PP_OUT_W = 128
OB_ENC_OFF = 0
OB_LOGIT_OFF = GRU_HID
OB_LOGP_OFF = OB_LOGIT_OFF + ACTION_DIM
OB_VAL_OFF = OB_LOGP_OFF + ACTION_DIM
OB_ENT_OFF = OB_VAL_OFF + 1
OB_LOSS_OFF = OB_ENT_OFF + 1
OB_OUT_W = 128

# ---- weight slab geometry ----
BIAS_ROW = 48        # = max K of any packed weight (H_DIM + ENC_Z_DIM); multiple of 8
SLAB_ROWS = 56


def _round_up(x, m):
    return (x + m - 1) // m * m


def _softplus(x):
    return jnp.log1p(jnp.exp(-jnp.abs(x))) + jnp.maximum(x, 0.0)


def _normal_logpdf(x, mu, std):
    zn = (x - mu) / std
    return jnp.sum(-0.5 * _LOG_2PI - jnp.log(std) - 0.5 * zn * zn,
                   axis=-1, keepdims=True)


def _vmem_spec():
    return pl.BlockSpec(memory_space=pltpu.MemorySpace.VMEM)


# ---------------------------------------------------------------------------
# the single fused kernel
# ---------------------------------------------------------------------------
def fused_dvrl_kernel(layout, in_b_ref, in_pp_ref, w_ref, out_pp_ref, out_b_ref):
    dot = functools.partial(jnp.dot, preferred_element_type=jnp.float32)

    def blk(name):
        r0, c0, nr, nc = layout[name]
        return w_ref[r0:r0 + nr, c0:c0 + nc]

    B, P, N = BATCH, NUM_PARTICLES, N_ROWS

    # ---- unpack dynamic inputs (all sub-blocks 128-lane aligned) ----
    obs = in_b_ref[:, IB_OBS:IB_OBS + OBS_DIM]
    act = in_b_ref[:, IB_ACT:IB_ACT + ACTION_DIM]
    logw_prev = in_b_ref[:, IB_LW:IB_LW + P]
    unif = in_b_ref[:, IB_UNIF:IB_UNIF + 1]
    h_prev = in_pp_ref[:, IP_H:IP_H + H_DIM]
    eps = in_pp_ref[:, IP_EPS:IP_EPS + Z_DIM]

    # ---- host-precomputed constants (shipped in the slab, no in-kernel iota) ----
    E = blk('c_E')             # (N, B)  batch -> particle expansion one-hot
    tri = blk('c_tri')         # (P, P)  cumsum-via-matmul matrix
    perm = blk('c_perm')       # (N, N)  (particle, batch)-major row permutation
    sel = blk('c_sel')         # (B, N)  picks row b*P per batch
    rowk = blk('c_rowk')       # (N, 1)  particle index within batch
    rowbase = blk('c_rowbase') # (N, 1)  b*P per row
    coln = blk('c_coln')       # (N, N)  column index

    # ---- observation / action encoders (batch level) ----
    obs_enc = jnp.maximum(dot(obs, blk('w_obs')) + blk('b_w_obs'), 0.0)
    act_enc = jnp.maximum(dot(act, blk('w_act')) + blk('b_w_act'), 0.0)
    oa_enc = jnp.concatenate([obs_enc, act_enc], axis=1)          # (B, 40)

    # batch-level partials of all concat-fed nets + obs_enc passthrough in ONE
    # matmul, expanded to particles with ONE one-hot matmul (biases fold through)
    bp = dot(oa_enc, blk('w_bp')) + blk('b_w_bp')                 # (B, 512)
    bp_e = dot(E, bp)                                             # (N, 512)
    prop_b = bp_e[:, 0:PROP_HID]
    dt_b = bp_e[:, 128:128 + H_DIM]
    tr_b = bp_e[:, 256:256 + TRANS_HID]
    oe_pp = bp_e[:, 384:384 + OBS_ENC_DIM]

    # ---- systematic resampling (vectorized across batch) ----
    mprev = jnp.max(logw_prev, axis=-1, keepdims=True)
    eprev = jnp.exp(logw_prev - mprev)
    w_prev = eprev / jnp.sum(eprev, axis=-1, keepdims=True)       # (B, P) softmax
    csum = dot(w_prev, tri)                                       # (B, P) cumsum
    csum_rows = dot(E, csum)                                      # (N, P)
    unif_rows = dot(E, unif)                                      # (N, 1)
    pos = (unif_rows + rowk) * (1.0 / P)                          # (N, 1)
    cnt = jnp.sum((csum_rows < pos).astype(F32), axis=-1, keepdims=True)
    idx = jnp.minimum(cnt, float(P - 1))                          # ancestor within batch
    tgt = rowbase + idx                                           # absolute ancestor row
    anc = (jnp.abs(coln - tgt) < 0.5).astype(F32)                 # (N, N) one-hot gather
    h_res = dot(anc, h_prev)                                      # (N, H_DIM)

    # ---- per-particle nets (all h_res projections fused along N) ----
    hres_p = dot(h_res, blk('w_hres'))                            # (N, 384)
    ph = jnp.maximum(hres_p[:, 0:PROP_HID] + prop_b, 0.0)
    th = jnp.maximum(hres_p[:, 128:128 + TRANS_HID] + tr_b, 0.0)
    dt_h = hres_p[:, 256:256 + H_DIM]

    # proposal q(z | h_{t-1}, enc(o_t), enc(a_{t-1}))  (std head at lane 128)
    ms_q = dot(ph, blk('w_pms')) + blk('b_w_pms')                 # (N, 256)
    mu_q = ms_q[:, 0:Z_DIM]
    std_q = _softplus(ms_q[:, 128:128 + Z_DIM]) + 1e-3
    z = mu_q + std_q * eps                                        # reparameterized sample

    # encode z + deterministic transition to new h
    enc_z = jnp.maximum(dot(z, blk('w_ez')) + blk('b_w_ez'), 0.0)
    h_new = jnp.tanh(dt_h + dot(enc_z, blk('w_dtz')) + dt_b)

    # prior / transition p(z | h_{t-1}, enc(a_{t-1}))
    ms_p = dot(th, blk('w_tms')) + blk('b_w_tms')
    mu_p = ms_p[:, 0:Z_DIM]
    std_p = _softplus(ms_p[:, 128:128 + Z_DIM]) + 1e-3

    # emission p(enc(o_t) | h_t, z_t) on the packed [h_new | enc_z] rows
    hz = jnp.concatenate([h_new, enc_z], axis=1)                  # (N, 48)
    eh = jnp.maximum(dot(hz, blk('w_em1')) + blk('b_w_em1'), 0.0)
    ms_e = dot(eh, blk('w_ems')) + blk('b_w_ems')
    mu_e = ms_e[:, 0:OBS_ENC_DIM]
    std_e = _softplus(ms_e[:, 128:128 + OBS_ENC_DIM]) + 1e-3

    lp_prop = _normal_logpdf(z, mu_q, std_q)
    lp_trans = _normal_logpdf(z, mu_p, std_p)
    lp_emis = _normal_logpdf(oe_pp, mu_e, std_e)
    logw = lp_trans - lp_prop + lp_emis                           # (N, 1)

    # ---- per-batch logsumexp / normalized weights (vectorized) ----
    masked = jnp.where(E > 0.5, logw, -1e30)                      # (N, B)
    m_b = jnp.max(masked, axis=0, keepdims=True)                  # (1, B)
    m_rows = jnp.sum(E * m_b, axis=-1, keepdims=True)             # (N, 1)
    e_rows = jnp.exp(logw - m_rows)
    s_b = jnp.sum(E * e_rows, axis=0, keepdims=True)              # (1, B)
    s_rows = jnp.sum(E * s_b, axis=-1, keepdims=True)             # (N, 1)
    lse_rows = m_rows + jnp.log(s_rows)
    pw = jnp.exp(logw - lse_rows)                                 # exp(lognormexp)
    loss_b = dot(sel, -(lse_rows - _LOG_P))                       # (B, 1)

    # ---- particle GRU (gates fused along lanes at 0 / 128 / 256) ----
    gx = dot(hz, blk('w_ih')) + pw * blk('w_ihw') + blk('b_w_ih')  # (N, 384)
    gx = dot(perm, gx)                                             # (particle, batch)-major
    whh = blk('w_hh')                                              # (32, 384)
    bhh = blk('b_w_hh')                                            # (1, 384)

    h = jnp.zeros((B, GRU_HID), dtype=F32)
    for t in range(P):                                             # static unroll
        x = gx[t * B:(t + 1) * B, :]
        hp = dot(h, whh) + bhh                                     # ONE matmul: all gates
        rg = jax.nn.sigmoid(x[:, 0:GRU_HID] + hp[:, 0:GRU_HID])
        ug = jax.nn.sigmoid(x[:, 128:128 + GRU_HID] + hp[:, 128:128 + GRU_HID])
        ng = jnp.tanh(x[:, 256:256 + GRU_HID] + rg * hp[:, 256:256 + GRU_HID])
        h = (1.0 - ug) * ng + ug * h

    # ---- fused critic | actor head (actor at lane 128), log-softmax, entropy ----
    head = dot(h, blk('w_head')) + blk('b_w_head')                 # (B, 256)
    value = head[:, 0:1]
    logits = head[:, 128:128 + ACTION_DIM]
    mx = jnp.max(logits, axis=-1, keepdims=True)
    sh = logits - mx
    lse_a = jnp.log(jnp.sum(jnp.exp(sh), axis=-1, keepdims=True))
    logp = sh - lse_a
    ent = -jnp.sum(jnp.exp(logp) * logp, axis=-1, keepdims=True)

    # ---- single lane-dense store per output ----
    pad_pp = jnp.zeros((N, PP_OUT_W - (H_DIM + ENC_Z_DIM + 1)), dtype=F32)
    out_pp_ref[...] = jnp.concatenate([hz, logw, pad_pp], axis=1)

    pad_b = jnp.zeros((B, OB_OUT_W - (GRU_HID + 2 * ACTION_DIM + 3)), dtype=F32)
    out_b_ref[...] = jnp.concatenate(
        [h, logits, logp, value, ent, loss_b, pad_b], axis=1)


# ---------------------------------------------------------------------------
# deterministic parameter init (synthetic weights, no checkpoint load)
# ---------------------------------------------------------------------------
def init_params(seed=42):
    key = jax.random.PRNGKey(seed)

    def linear(key, din, dout, scale=0.1):
        kw, _ = jax.random.split(key)
        w = scale * jax.random.normal(kw, (din, dout), dtype=F32)
        b = jnp.zeros((1, dout), dtype=F32)
        return w, b

    names = ['obs', 'act', 'p1', 'pm', 'ps', 'ez', 'dt',
             't1', 'tm', 'ts', 'e1', 'em', 'es',
             'gru_ih', 'gru_hh', 'critic', 'actor']
    keys = dict(zip(names, jax.random.split(key, len(names))))

    p = {}
    p['w_obs'], p['b_obs'] = linear(keys['obs'], OBS_DIM, OBS_ENC_DIM)
    p['w_act'], p['b_act'] = linear(keys['act'], ACTION_DIM, ACT_ENC_DIM)

    prop_in = H_DIM + OBS_ENC_DIM + ACT_ENC_DIM
    p['wp1'], p['bp1'] = linear(keys['p1'], prop_in, PROP_HID)
    p['wpm'], p['bpm'] = linear(keys['pm'], PROP_HID, Z_DIM)
    p['wps'], p['bps'] = linear(keys['ps'], PROP_HID, Z_DIM)

    p['wez'], p['bez'] = linear(keys['ez'], Z_DIM, ENC_Z_DIM)

    dt_in = H_DIM + ENC_Z_DIM + OBS_ENC_DIM + ACT_ENC_DIM
    p['wdt'], p['bdt'] = linear(keys['dt'], dt_in, H_DIM)

    trans_in = H_DIM + ACT_ENC_DIM
    p['wt1'], p['bt1'] = linear(keys['t1'], trans_in, TRANS_HID)
    p['wtm'], p['btm'] = linear(keys['tm'], TRANS_HID, Z_DIM)
    p['wts'], p['bts'] = linear(keys['ts'], TRANS_HID, Z_DIM)

    emis_in = H_DIM + ENC_Z_DIM
    p['we1'], p['be1'] = linear(keys['e1'], emis_in, EMIS_HID)
    p['wem'], p['bem'] = linear(keys['em'], EMIS_HID, OBS_ENC_DIM)
    p['wes'], p['bes'] = linear(keys['es'], EMIS_HID, OBS_ENC_DIM)

    gru_in = H_DIM + ENC_Z_DIM + 1
    p['gru_wih'], p['gru_bih'] = linear(keys['gru_ih'], gru_in, 3 * GRU_HID)
    p['gru_whh'], p['gru_bhh'] = linear(keys['gru_hh'], GRU_HID, 3 * GRU_HID)

    p['w_critic'], p['b_critic'] = linear(keys['critic'], GRU_HID, 1)
    p['w_actor'], p['b_actor'] = linear(keys['actor'], GRU_HID, ACTION_DIM)
    return p


# ---------------------------------------------------------------------------
# host-side packing: split/fuse weights, 128-lane-align every block, pack
# weights + biases + constant matrices into ONE slab
# ---------------------------------------------------------------------------
def _place(rows, cols, pieces):
    a = jnp.zeros((rows, cols), dtype=F32)
    for r, c, arr in pieces:
        arr = jnp.asarray(arr, F32)
        a = a.at[r:r + arr.shape[0], c:c + arr.shape[1]].set(arr)
    return a


def pack_params(p):
    H, EZ, OE, AE, G = H_DIM, ENC_Z_DIM, OBS_ENC_DIM, ACT_ENC_DIM, GRU_HID
    B, P, N = BATCH, NUM_PARTICLES, N_ROWS

    items = []   # (name, weight_array, bias_array or None)

    def add(name, arr, bias=None):
        items.append((name, jnp.asarray(arr, F32),
                      None if bias is None else jnp.asarray(bias, F32).reshape(1, -1)))

    add('w_obs', p['w_obs'], p['b_obs'])
    add('w_act', p['w_act'], p['b_act'])

    wp1, wdt, wt1 = p['wp1'], p['wdt'], p['wt1']
    # batch-level pack over [obs_enc | act_enc]:
    #   proposal @0 | det-transition @128 | transition @256 | obs_enc identity @384
    w_bp = _place(OE + AE, 512, [
        (0, 0, wp1[H:H + OE]), (OE, 0, wp1[H + OE:]),
        (0, 128, wdt[H + EZ:H + EZ + OE]), (OE, 128, wdt[H + EZ + OE:]),
        (OE, 256, wt1[H:]),
        (0, 384, jnp.eye(OE, dtype=F32)),
    ])
    b_bp = _place(1, 512, [(0, 0, p['bp1']), (0, 128, p['bdt']), (0, 256, p['bt1'])])
    add('w_bp', w_bp, b_bp)

    # h_res -> proposal-hidden @0 | transition-hidden @128 | det-transition @256
    add('w_hres', _place(H, 384,
                         [(0, 0, wp1[:H]), (0, 128, wt1[:H]), (0, 256, wdt[:H])]))

    add('w_pms', _place(PROP_HID, 256, [(0, 0, p['wpm']), (0, 128, p['wps'])]),
        _place(1, 256, [(0, 0, p['bpm']), (0, 128, p['bps'])]))

    add('w_ez', p['wez'], p['bez'])
    add('w_dtz', wdt[H:H + EZ])

    add('w_tms', _place(TRANS_HID, 256, [(0, 0, p['wtm']), (0, 128, p['wts'])]),
        _place(1, 256, [(0, 0, p['btm']), (0, 128, p['bts'])]))

    add('w_em1', p['we1'], p['be1'])
    add('w_ems', _place(EMIS_HID, 256, [(0, 0, p['wem']), (0, 128, p['wes'])]),
        _place(1, 256, [(0, 0, p['bem']), (0, 128, p['bes'])]))

    wih, whh = p['gru_wih'], p['gru_whh']
    bih, bhh = p['gru_bih'], p['gru_bhh']
    add('w_ih', _place(H + EZ, 384,
                       [(0, g * 128, wih[:H + EZ, g * G:(g + 1) * G]) for g in range(3)]),
        _place(1, 384, [(0, g * 128, bih[:, g * G:(g + 1) * G]) for g in range(3)]))
    add('w_ihw', _place(1, 384,
                        [(0, g * 128, wih[H + EZ:H + EZ + 1, g * G:(g + 1) * G])
                         for g in range(3)]))
    add('w_hh', _place(G, 384,
                       [(0, g * 128, whh[:, g * G:(g + 1) * G]) for g in range(3)]),
        _place(1, 384, [(0, g * 128, bhh[:, g * G:(g + 1) * G]) for g in range(3)]))

    add('w_head', _place(G, 256, [(0, 0, p['w_critic']), (0, 128, p['w_actor'])]),
        _place(1, 256, [(0, 0, p['b_critic']), (0, 128, p['b_actor'])]))

    # ---- constant matrices (no power-of-two assumptions; plain integer math) ----
    ri = jnp.arange(N)
    add('c_E', (ri[:, None] // P == jnp.arange(B)[None, :]).astype(F32))
    add('c_tri', (jnp.arange(P)[:, None] <= jnp.arange(P)[None, :]).astype(F32))
    perm_src = (ri % B) * P + (ri // B)
    add('c_perm', (jnp.arange(N)[None, :] == perm_src[:, None]).astype(F32))
    add('c_sel', (jnp.arange(N)[None, :] == (jnp.arange(B) * P)[:, None]).astype(F32))
    add('c_rowk', (ri % P).astype(F32)[:, None])
    add('c_rowbase', ((ri // P) * P).astype(F32)[:, None])
    add('c_coln', jnp.broadcast_to(jnp.arange(N, dtype=F32)[None, :], (N, N)))

    # ---- build the slab: each block 128-lane aligned, bias in row BIAS_ROW ----
    layout = {}
    pieces = []
    col = 0
    for name, arr, bias in items:
        k, n = arr.shape
        assert k <= BIAS_ROW
        layout[name] = (0, col, k, n)
        pieces.append((0, col, arr))
        width = n
        if bias is not None:
            layout['b_' + name] = (BIAS_ROW, col, 1, bias.shape[1])
            pieces.append((BIAS_ROW, col, bias))
            width = max(width, bias.shape[1])
        col += _round_up(width, 128)
    slab = _place(SLAB_ROWS, _round_up(col, 128), pieces)
    return slab, layout


# ---------------------------------------------------------------------------
# DVRL.forward wrapper (single fused pallas_call + tiny JAX glue)
# ---------------------------------------------------------------------------
def make_dvrl_forward(layout):
    kernel = functools.partial(fused_dvrl_kernel, layout)
    fused_call = pl.pallas_call(
        kernel,
        out_shape=(jax.ShapeDtypeStruct((N_ROWS, PP_OUT_W), F32),
                   jax.ShapeDtypeStruct((BATCH, OB_OUT_W), F32)),
        in_specs=[_vmem_spec(), _vmem_spec(), _vmem_spec()],
        out_specs=(_vmem_spec(), _vmem_spec()),
    )
    # TODO(synk): on v7x a leading "parallel" grid axis / core_map over the two
    # TensorCores would let a larger batch use both cores; a single 16-row call
    # stays gridless on purpose.

    def forward(slab, current_memory, key, deterministic=False):
        obs = current_memory['currentObs']                    # (B, obsDim)
        act = current_memory['oneHotActions']                 # (B, actionDim)
        h_prev = current_memory['states_h'].reshape(N_ROWS, H_DIM)
        logw_prev = current_memory['states_logWeight']        # (B, P)
        # TODO(synk): reward is carried by the memory but not consumed by the
        # synthetic encoder (matches the prior implementation).

        key_u, key_eps, key_act = jax.random.split(key, 3)
        uniforms = jax.random.uniform(key_u, (BATCH, 1), dtype=F32)
        eps = jax.random.normal(key_eps, (N_ROWS, Z_DIM), dtype=F32)
        # TODO(synk): eps / uniforms / categorical sample could be drawn
        # in-kernel via pltpu.prng_seed + prng_random_bits; kept host-side for
        # jax.random key parity.

        # pack dynamic inputs into two lane-dense blocks (one DMA each)
        zb = lambda w: jnp.zeros((BATCH, w), dtype=F32)
        in_b = jnp.concatenate(
            [obs, zb(128 - OBS_DIM), act, zb(128 - ACTION_DIM),
             logw_prev, zb(128 - NUM_PARTICLES), uniforms, zb(127)], axis=1)
        zp = lambda w: jnp.zeros((N_ROWS, w), dtype=F32)
        in_pp = jnp.concatenate(
            [h_prev, zp(128 - H_DIM), eps, zp(128 - Z_DIM)], axis=1)

        out_pp, out_b = fused_call(in_b, in_pp, slab)

        h_new = out_pp[:, PP_H_OFF:PP_H_OFF + H_DIM]
        enc_z = out_pp[:, PP_Z_OFF:PP_Z_OFF + ENC_Z_DIM]
        new_logw = out_pp[:, PP_LW_OFF].reshape(BATCH, NUM_PARTICLES)

        encoded_state = out_b[:, OB_ENC_OFF:OB_ENC_OFF + GRU_HID]
        logits = out_b[:, OB_LOGIT_OFF:OB_LOGIT_OFF + ACTION_DIM]
        log_probs = out_b[:, OB_LOGP_OFF:OB_LOGP_OFF + ACTION_DIM]
        value = out_b[:, OB_VAL_OFF:OB_VAL_OFF + 1]
        entropy = out_b[:, OB_ENT_OFF:OB_ENT_OFF + 1]
        total_encoding_loss = out_b[:, OB_LOSS_OFF]

        if deterministic:
            action = jnp.argmax(logits, axis=-1)
        else:
            action = jax.random.categorical(key_act, logits)
        action = action.astype(jnp.int32)
        action_log_probs = jnp.take_along_axis(log_probs, action[:, None], axis=1)
        dist_entropy = jnp.mean(entropy)

        return {
            'latentState_h': h_new.reshape(BATCH, NUM_PARTICLES, H_DIM),
            'latentState_encodedZ': enc_z.reshape(BATCH, NUM_PARTICLES, ENC_Z_DIM),
            'latentState_logWeight': new_logw,
            'totalEncodingLoss': total_encoding_loss,
            'encodedState': encoded_state,
            'valueEstimate': value,
            'action': action,
            'actionLogProbs': action_log_probs,
            'distEntropy': dist_entropy,
        }

    return jax.jit(forward, static_argnames=('deterministic',))
# TODO(synk): learn() (RMSprop update / backward) is a training loop, not a forward kernel; omitted.


# ---------------------------------------------------------------------------
if __name__ == "__main__":
    raw_params = init_params(seed=42)
    slab, layout = pack_params(raw_params)
    dvrl_forward = make_dvrl_forward(layout)

    key = jax.random.PRNGKey(0)
    k_obs, k_rew, k_act, k_fwd = jax.random.split(key, 4)

    current_memory = {
        'currentObs': jax.random.normal(k_obs, (BATCH, OBS_DIM), dtype=F32),
        'rewards': jax.random.normal(k_rew, (BATCH, 1), dtype=F32),
        'oneHotActions': jax.nn.one_hot(
            jax.random.randint(k_act, (BATCH,), 0, ACTION_DIM),
            ACTION_DIM, dtype=F32),
        # newLatentState(): zeros for h and logWeight
        'states_h': jnp.zeros((BATCH, NUM_PARTICLES, H_DIM), dtype=F32),
        'states_logWeight': jnp.zeros((BATCH, NUM_PARTICLES), dtype=F32),
    }

    out = dvrl_forward(slab, current_memory, k_fwd, deterministic=False)
    out = jax.block_until_ready(out)

    assert out['valueEstimate'].shape == (BATCH, 1)
    assert out['action'].shape == (BATCH,)
    assert out['actionLogProbs'].shape == (BATCH, 1)
    assert out['totalEncodingLoss'].shape == (BATCH,)
    assert out['latentState_h'].shape == (BATCH, NUM_PARTICLES, H_DIM)
    assert out['latentState_logWeight'].shape == (BATCH, NUM_PARTICLES)
    assert out['encodedState'].shape == (BATCH, GRU_HID)
    assert bool(jnp.all(jnp.isfinite(out['valueEstimate'])))
    assert bool(jnp.all(jnp.isfinite(out['totalEncodingLoss'])))
    assert bool(jnp.all(jnp.isfinite(out['latentState_logWeight'])))
    assert bool(jnp.all(jnp.isfinite(out['actionLogProbs'])))
    assert bool(jnp.all(jnp.isfinite(out['encodedState'])))

    print("KERNEL_OK")
</pallas_src>

<mosaic_0001>
module attributes {stable_mosaic.version = 11 : i64} {
  func.func @fused_dvrl_kernel(%arg0: memref<2x512xf32, #tpu.memory_space<vmem>>, %arg1: memref<16x256xf32, #tpu.memory_space<vmem>>, %arg2: memref<56x4608xf32, #tpu.memory_space<vmem>>, %arg3: memref<16x128xf32, #tpu.memory_space<vmem>>, %arg4: memref<2x128xf32, #tpu.memory_space<vmem>>) attributes {dimension_semantics = [], scalar_prefetch = 0 : i64, scratch_operands = 0 : i64, tpu.core_type = #tpu.core_type<tc>} {
    %c0 = arith.constant 0 : index
    %c0_0 = arith.constant 0 : index
    %0 = vector.load %arg0[%c0, %c0_0] : memref<2x512xf32, #tpu.memory_space<vmem>>, vector<2x16xf32>
    %c0_1 = arith.constant 0 : index
    %c128 = arith.constant 128 : index
    %1 = vector.load %arg0[%c0_1, %c128] : memref<2x512xf32, #tpu.memory_space<vmem>>, vector<2x4xf32>
    %c0_2 = arith.constant 0 : index
    %c256 = arith.constant 256 : index
    %2 = vector.load %arg0[%c0_2, %c256] : memref<2x512xf32, #tpu.memory_space<vmem>>, vector<2x8xf32>
    %c0_3 = arith.constant 0 : index
    %c384 = arith.constant 384 : index
    %3 = vector.load %arg0[%c0_3, %c384] : memref<2x512xf32, #tpu.memory_space<vmem>>, vector<2x1xf32>
    %c0_4 = arith.constant 0 : index
    %c0_5 = arith.constant 0 : index
    %4 = vector.load %arg1[%c0_4, %c0_5] : memref<16x256xf32, #tpu.memory_space<vmem>>, vector<16x32xf32>
    %c0_6 = arith.constant 0 : index
    %c128_7 = arith.constant 128 : index
    %5 = vector.load %arg1[%c0_6, %c128_7] : memref<16x256xf32, #tpu.memory_space<vmem>>, vector<16x16xf32>
    %c0_8 = arith.constant 0 : index
    %c3712 = arith.constant 3712 : index
    %6 = vector.load %arg2[%c0_8, %c3712] : memref<56x4608xf32, #tpu.memory_space<vmem>>, vector<16x2xf32>
    %c0_9 = arith.constant 0 : index
    %c3840 = arith.constant 3840 : index
    %7 = vector.load %arg2[%c0_9, %c3840] : memref<56x4608xf32, #tpu.memory_space<vmem>>, vector<8x8xf32>
    %c0_10 = arith.constant 0 : index
    %c3968 = arith.constant 3968 : index
    %8 = vector.load %arg2[%c0_10, %c3968] : memref<56x4608xf32, #tpu.memory_space<vmem>>, vector<16x16xf32>
    %c0_11 = arith.constant 0 : index
    %c4096 = arith.constant 4096 : index
    %9 = vector.load %arg2[%c0_11, %c4096] : memref<56x4608xf32, #tpu.memory_space<vmem>>, vector<2x16xf32>
    %c0_12 = arith.constant 0 : index
    %c4224 = arith.constant 4224 : index
    %10 = vector.load %arg2[%c0_12, %c4224] : memref<56x4608xf32, #tpu.memory_space<vmem>>, vector<16x1xf32>
    %c0_13 = arith.constant 0 : index
    %c4352 = arith.constant 4352 : index
    %11 = vector.load %arg2[%c0_13, %c4352] : memref<56x4608xf32, #tpu.memory_space<vmem>>, vector<16x1xf32>
    %c0_14 = arith.constant 0 : index
    %c4480 = arith.constant 4480 : index
    %12 = vector.load %arg2[%c0_14, %c4480] : memref<56x4608xf32, #tpu.memory_space<vmem>>, vector<16x16xf32>
    %c0_15 = arith.constant 0 : index
    %c0_16 = arith.constant 0 : index
    %13 = vector.load %arg2[%c0_15, %c0_16] : memref<56x4608xf32, #tpu.memory_space<vmem>>, vector<16x32xf32>
    %cst = arith.constant dense<0.000000e+00> : vector<2x32xf32>
    %14 = tpu.matmul %0, %13, %cst {dimension_numbers = #tpu.dot_dimension_numbers<[1], [0], [0], [1], [0, 0, 1, 1], [], []>} : vector<2x16xf32>, vector<16x32xf32>, vector<2x32xf32> -> vector<2x32xf32>
    %c48 = arith.constant 48 : index
    %c0_17 = arith.constant 0 : index
    %15 = vector.load %arg2[%c48, %c0_17] : memref<56x4608xf32, #tpu.memory_space<vmem>>, vector<1x32xf32>
    %16 = vector.broadcast %15 : vector<1x32xf32> to vector<2x32xf32>
    %17 = arith.addf %14, %16 : vector<2x32xf32>
    %cst_18 = arith.constant 0.000000e+00 : f32
    %18 = vector.broadcast %cst_18 : f32 to vector<2x32xf32>
    %19 = arith.maximumf %17, %18 : vector<2x32xf32>
    %c0_19 = arith.constant 0 : index
    %c128_20 = arith.constant 128 : index
    %20 = vector.load %arg2[%c0_19, %c128_20] : memref<56x4608xf32, #tpu.memory_space<vmem>>, vector<4x8xf32>
    %cst_21 = arith.constant dense<0.000000e+00> : vector<2x8xf32>
    %21 = tpu.matmul %1, %20, %cst_21 {dimension_numbers = #tpu.dot_dimension_numbers<[1], [0], [0], [1], [0, 0, 1, 1], [], []>} : vector<2x4xf32>, vector<4x8xf32>, vector<2x8xf32> -> vector<2x8xf32>
    %c48_22 = arith.constant 48 : index
    %c128_23 = arith.constant 128 : index
    %22 = vector.load %arg2[%c48_22, %c128_23] : memref<56x4608xf32, #tpu.memory_space<vmem>>, vector<1x8xf32>
    %23 = vector.broadcast %22 : vector<1x8xf32> to vector<2x8xf32>
    %24 = arith.addf %21, %23 : vector<2x8xf32>
    %cst_24 = arith.constant 0.000000e+00 : f32
    %25 = vector.broadcast %cst_24 : f32 to vector<2x8xf32>
    %26 = arith.maximumf %24, %25 : vector<2x8xf32>
    %27 = tpu.concatenate %19, %26 in 1 : vector<2x32xf32>, vector<2x8xf32> -> vector<2x40xf32>
    %c0_25 = arith.constant 0 : index
    %c256_26 = arith.constant 256 : index
    %28 = vector.load %arg2[%c0_25, %c256_26] : memref<56x4608xf32, #tpu.memory_space<vmem>>, vector<40x512xf32>
    %cst_27 = arith.constant dense<0.000000e+00> : vector<2x512xf32>
    %29 = tpu.matmul %27, %28, %cst_27 {dimension_numbers = #tpu.dot_dimension_numbers<[1], [0], [0], [1], [0, 0, 1, 1], [], []>} : vector<2x40xf32>, vector<40x512xf32>, vector<2x512xf32> -> vector<2x512xf32>
    %c48_28 = arith.constant 48 : index
    %c256_29 = arith.constant 256 : index
    %30 = vector.load %arg2[%c48_28, %c256_29] : memref<56x4608xf32, #tpu.memory_space<vmem>>, vector<1x512xf32>
    %31 = vector.broadcast %30 : vector<1x512xf32> to vector<2x512xf32>
    %32 = arith.addf %29, %31 : vector<2x512xf32>
    %cst_30 = arith.constant dense<0.000000e+00> : vector<16x512xf32>
    %33 = tpu.matmul %6, %32, %cst_30 {dimension_numbers = #tpu.dot_dimension_numbers<[1], [0], [0], [1], [0, 0, 1, 1], [], []>} : vector<16x2xf32>, vector<2x512xf32>, vector<16x512xf32> -> vector<16x512xf32>
    %34 = vector.extract_strided_slice %33 {offsets = [0, 0], sizes = [16, 32], strides = [1, 1]} : vector<16x512xf32> to vector<16x32xf32>
    %35 = vector.extract_strided_slice %33 {offsets = [0, 128], sizes = [16, 32], strides = [1, 1]} : vector<16x512xf32> to vector<16x32xf32>
    %36 = vector.extract_strided_slice %33 {offsets = [0, 256], sizes = [16, 32], strides = [1, 1]} : vector<16x512xf32> to vector<16x32xf32>
    %37 = vector.extract_strided_slice %33 {offsets = [0, 384], sizes = [16, 32], strides = [1, 1]} : vector<16x512xf32> to vector<16x32xf32>
    %cst_31 = arith.constant dense<0xFF800000> : vector<2xf32>
    %38 = vector.multi_reduction <maximumf>, %2, %cst_31 [1] : vector<2x8xf32> to vector<2xf32>
    %39 = vector.shape_cast %38 : vector<2xf32> to vector<2x1xf32>
    %40 = vector.broadcast %39 : vector<2x1xf32> to vector<2x8xf32>
    %41 = arith.subf %2, %40 : vector<2x8xf32>
    %42 = math.exp %41 : vector<2x8xf32>
    %cst_32 = arith.constant dense<0.000000e+00> : vector<2xf32>
    %43 = vector.multi_reduction <add>, %42, %cst_32 [1] : vector<2x8xf32> to vector<2xf32>
    %44 = vector.shape_cast %43 : vector<2xf32> to vector<2x1xf32>
    %45 = vector.broadcast %44 : vector<2x1xf32> to vector<2x8xf32>
    %46 = arith.divf %42, %45 : vector<2x8xf32>
    %cst_33 = arith.constant dense<0.000000e+00> : vector<2x8xf32>
    %47 = tpu.matmul %46, %7, %cst_33 {dimension_numbers = #tpu.dot_dimension_numbers<[1], [0], [0], [1], [0, 0, 1, 1], [], []>} : vector<2x8xf32>, vector<8x8xf32>, vector<2x8xf32> -> vector<2x8xf32>
    %cst_34 = arith.constant dense<0.000000e+00> : vector<16x8xf32>
    %48 = tpu.matmul %6, %47, %cst_34 {dimension_numbers = #tpu.dot_dimension_numbers<[1], [0], [0], [1], [0, 0, 1, 1], [], []>} : vector<16x2xf32>, vector<2x8xf32>, vector<16x8xf32> -> vector<16x8xf32>
    %cst_35 = arith.constant dense<0.000000e+00> : vector<16x1xf32>
    %49 = tpu.matmul %6, %3, %cst_35 {dimension_numbers = #tpu.dot_dimension_numbers<[1], [0], [0], [1], [0, 0, 1, 1], [], []>} : vector<16x2xf32>, vector<2x1xf32>, vector<16x1xf32> -> vector<16x1xf32>
    %50 = arith.addf %49, %10 : vector<16x1xf32>
    %cst_36 = arith.constant 1.250000e-01 : f32
    %51 = vector.broadcast %cst_36 : f32 to vector<16x1xf32>
    %52 = arith.mulf %50, %51 : vector<16x1xf32>
    %53 = vector.broadcast %52 : vector<16x1xf32> to vector<16x8xf32>
    %54 = arith.cmpf olt, %48, %53 : vector<16x8xf32>
    %55 = arith.extui %54 : vector<16x8xi1> to vector<16x8xi32>
    %56 = arith.sitofp %55 : vector<16x8xi32> to vector<16x8xf32>
    %cst_37 = arith.constant dense<0.000000e+00> : vector<16xf32>
    %57 = vector.multi_reduction <add>, %56, %cst_37 [1] : vector<16x8xf32> to vector<16xf32>
    %58 = vector.shape_cast %57 : vector<16xf32> to vector<16x1xf32>
    %cst_38 = arith.constant 7.000000e+00 : f32
    %59 = vector.broadcast %cst_38 : f32 to vector<16x1xf32>
    %60 = arith.minimumf %58, %59 : vector<16x1xf32>
    %61 = arith.addf %11, %60 : vector<16x1xf32>
    %62 = vector.broadcast %61 : vector<16x1xf32> to vector<16x16xf32>
    %63 = arith.subf %12, %62 : vector<16x16xf32>
    %64 = math.absf %63 : vector<16x16xf32>
    %cst_39 = arith.constant 5.000000e-01 : f32
    %65 = vector.broadcast %cst_39 : f32 to vector<16x16xf32>
    %66 = arith.cmpf olt, %64, %65 : vector<16x16xf32>
    %67 = arith.extui %66 : vector<16x16xi1> to vector<16x16xi32>
    %68 = arith.sitofp %67 : vector<16x16xi32> to vector<16x16xf32>
    %cst_40 = arith.constant dense<0.000000e+00> : vector<16x32xf32>
    %69 = tpu.matmul %68, %4, %cst_40 {dimension_numbers = #tpu.dot_dimension_numbers<[1], [0], [0], [1], [0, 0, 1, 1], [], []>} : vector<16x16xf32>, vector<16x32xf32>, vector<16x32xf32> -> vector<16x32xf32>
    %c0_41 = arith.constant 0 : index
    %c768 = arith.constant 768 : index
    %70 = vector.load %arg2[%c0_41, %c768] : memref<56x4608xf32, #tpu.memory_space<vmem>>, vector<32x384xf32>
    %cst_42 = arith.constant dense<0.000000e+00> : vector<16x384xf32>
    %71 = tpu.matmul %69, %70, %cst_42 {dimension_numbers = #tpu.dot_dimension_numbers<[1], [0], [0], [1], [0, 0, 1, 1], [], []>} : vector<16x32xf32>, vector<32x384xf32>, vector<16x384xf32> -> vector<16x384xf32>
    %72 = vector.extract_strided_slice %71 {offsets = [0, 0], sizes = [16, 32], strides = [1, 1]} : vector<16x384xf32> to vector<16x32xf32>
    %73 = arith.addf %72, %34 : vector<16x32xf32>
    %cst_43 = arith.constant 0.000000e+00 : f32
    %74 = vector.broadcast %cst_43 : f32 to vector<16x32xf32>
    %75 = arith.maximumf %73, %74 : vector<16x32xf32>
    %76 = vector.extract_strided_slice %71 {offsets = [0, 128], sizes = [16, 32], strides = [1, 1]} : vector<16x384xf32> to vector<16x32xf32>
    %77 = arith.addf %76, %36 : vector<16x32xf32>
    %cst_44 = arith.constant 0.000000e+00 : f32
    %78 = vector.broadcast %cst_44 : f32 to vector<16x32xf32>
    %79 = arith.maximumf %77, %78 : vector<16x32xf32>
    %80 = vector.extract_strided_slice %71 {offsets = [0, 256], sizes = [16, 32], strides = [1, 1]} : vector<16x384xf32> to vector<16x32xf32>
    %c0_45 = arith.constant 0 : index
    %c1152 = arith.constant 1152 : index
    %81 = vector.load %arg2[%c0_45, %c1152] : memref<56x4608xf32, #tpu.memory_space<vmem>>, vector<32x256xf32>
    %cst_46 = arith.constant dense<0.000000e+00> : vector<16x256xf32>
    %82 = tpu.matmul %75, %81, %cst_46 {dimension_numbers = #tpu.dot_dimension_numbers<[1], [0], [0], [1], [0, 0, 1, 1], [], []>} : vector<16x32xf32>, vector<32x256xf32>, vector<16x256xf32> -> vector<16x256xf32>
    %c48_47 = arith.constant 48 : index
    %c1152_48 = arith.constant 1152 : index
    %83 = vector.load %arg2[%c48_47, %c1152_48] : memref<56x4608xf32, #tpu.memory_space<vmem>>, vector<1x256xf32>
    %84 = vector.broadcast %83 : vector<1x256xf32> to vector<16x256xf32>
    %85 = arith.addf %82, %84 : vector<16x256xf32>
    %86 = vector.extract_strided_slice %85 {offsets = [0, 0], sizes = [16, 16], strides = [1, 1]} : vector<16x256xf32> to vector<16x16xf32>
    %87 = vector.extract_strided_slice %85 {offsets = [0, 128], sizes = [16, 16], strides = [1, 1]} : vector<16x256xf32> to vector<16x16xf32>
    %88 = math.absf %87 : vector<16x16xf32>
    %cst_49 = arith.constant 0.000000e+00 : f32
    %89 = vector.broadcast %cst_49 : f32 to vector<16x16xf32>
    %90 = arith.subf %89, %88 : vector<16x16xf32>
    %91 = math.exp %90 : vector<16x16xf32>
    %92 = math.log1p %91 : vector<16x16xf32>
    %cst_50 = arith.constant 0.000000e+00 : f32
    %93 = vector.broadcast %cst_50 : f32 to vector<16x16xf32>
    %94 = arith.maximumf %87, %93 : vector<16x16xf32>
    %95 = arith.addf %92, %94 : vector<16x16xf32>
    %cst_51 = arith.constant 1.000000e-03 : f32
    %96 = vector.broadcast %cst_51 : f32 to vector<16x16xf32>
    %97 = arith.addf %95, %96 : vector<16x16xf32>
    %98 = arith.mulf %97, %5 : vector<16x16xf32>
    %99 = arith.addf %86, %98 : vector<16x16xf32>
    %c0_52 = arith.constant 0 : index
    %c1408 = arith.constant 1408 : index
    %100 = vector.load %arg2[%c0_52, %c1408] : memref<56x4608xf32, #tpu.memory_space<vmem>>, vector<16x16xf32>
    %cst_53 = arith.constant dense<0.000000e+00> : vector<16x16xf32>
    %101 = tpu.matmul %99, %100, %cst_53 {dimension_numbers = #tpu.dot_dimension_numbers<[1], [0], [0], [1], [0, 0, 1, 1], [], []>} : vector<16x16xf32>, vector<16x16xf32>, vector<16x16xf32> -> vector<16x16xf32>
    %c48_54 = arith.constant 48 : index
    %c1408_55 = arith.constant 1408 : index
    %102 = vector.load %arg2[%c48_54, %c1408_55] : memref<56x4608xf32, #tpu.memory_space<vmem>>, vector<1x16xf32>
    %103 = vector.broadcast %102 : vector<1x16xf32> to vector<16x16xf32>
    %104 = arith.addf %101, %103 : vector<16x16xf32>
    %cst_56 = arith.constant 0.000000e+00 : f32
    %105 = vector.broadcast %cst_56 : f32 to vector<16x16xf32>
    %106 = arith.maximumf %104, %105 : vector<16x16xf32>
    %c0_57 = arith.constant 0 : index
    %c1536 = arith.constant 1536 : index
    %107 = vector.load %arg2[%c0_57, %c1536] : memref<56x4608xf32, #tpu.memory_space<vmem>>, vector<16x32xf32>
    %cst_58 = arith.constant dense<0.000000e+00> : vector<16x32xf32>
    %108 = tpu.matmul %106, %107, %cst_58 {dimension_numbers = #tpu.dot_dimension_numbers<[1], [0], [0], [1], [0, 0, 1, 1], [], []>} : vector<16x16xf32>, vector<16x32xf32>, vector<16x32xf32> -> vector<16x32xf32>
    %109 = arith.addf %80, %108 : vector<16x32xf32>
    %110 = arith.addf %109, %35 : vector<16x32xf32>
    %111 = math.tanh %110 : vector<16x32xf32>
    %c0_59 = arith.constant 0 : index
    %c1664 = arith.constant 1664 : index
    %112 = vector.load %arg2[%c0_59, %c1664] : memref<56x4608xf32, #tpu.memory_space<vmem>>, vector<32x256xf32>
    %cst_60 = arith.constant dense<0.000000e+00> : vector<16x256xf32>
    %113 = tpu.matmul %79, %112, %cst_60 {dimension_numbers = #tpu.dot_dimension_numbers<[1], [0], [0], [1], [0, 0, 1, 1], [], []>} : vector<16x32xf32>, vector<32x256xf32>, vector<16x256xf32> -> vector<16x256xf32>
    %c48_61 = arith.constant 48 : index
    %c1664_62 = arith.constant 1664 : index
    %114 = vector.load %arg2[%c48_61, %c1664_62] : memref<56x4608xf32, #tpu.memory_space<vmem>>, vector<1x256xf32>
    %115 = vector.broadcast %114 : vector<1x256xf32> to vector<16x256xf32>
    %116 = arith.addf %113, %115 : vector<16x256xf32>
    %117 = vector.extract_strided_slice %116 {offsets = [0, 0], sizes = [16, 16], strides = [1, 1]} : vector<16x256xf32> to vector<16x16xf32>
    %118 = vector.extract_strided_slice %116 {offsets = [0, 128], sizes = [16, 16], strides = [1, 1]} : vector<16x256xf32> to vector<16x16xf32>
    %119 = math.absf %118 : vector<16x16xf32>
    %cst_63 = arith.constant 0.000000e+00 : f32
    %120 = vector.broadcast %cst_63 : f32 to vector<16x16xf32>
    %121 = arith.subf %120, %119 : vector<16x16xf32>
    %122 = math.exp %121 : vector<16x16xf32>
    %123 = math.log1p %122 : vector<16x16xf32>
    %cst_64 = arith.constant 0.000000e+00 : f32
    %124 = vector.broadcast %cst_64 : f32 to vector<16x16xf32>
    %125 = arith.maximumf %118, %124 : vector<16x16xf32>
    %126 = arith.addf %123, %125 : vector<16x16xf32>
    %cst_65 = arith.constant 1.000000e-03 : f32
    %127 = vector.broadcast %cst_65 : f32 to vector<16x16xf32>
    %128 = arith.addf %126, %127 : vector<16x16xf32>
    %129 = tpu.concatenate %111, %106 in 1 : vector<16x32xf32>, vector<16x16xf32> -> vector<16x48xf32>
    %c0_66 = arith.constant 0 : index
    %c1920 = arith.constant 1920 : index
    %130 = vector.load %arg2[%c0_66, %c1920] : memref<56x4608xf32, #tpu.memory_space<vmem>>, vector<48x32xf32>
    %cst_67 = arith.constant dense<0.000000e+00> : vector<16x32xf32>
    %131 = tpu.matmul %129, %130, %cst_67 {dimension_numbers = #tpu.dot_dimension_numbers<[1], [0], [0], [1], [0, 0, 1, 1], [], []>} : vector<16x48xf32>, vector<48x32xf32>, vector<16x32xf32> -> vector<16x32xf32>
    %c48_68 = arith.constant 48 : index
    %c1920_69 = arith.constant 1920 : index
    %132 = vector.load %arg2[%c48_68, %c1920_69] : memref<56x4608xf32, #tpu.memory_space<vmem>>, vector<1x32xf32>
    %133 = vector.broadcast %132 : vector<1x32xf32> to vector<16x32xf32>
    %134 = arith.addf %131, %133 : vector<16x32xf32>
    %cst_70 = arith.constant 0.000000e+00 : f32
    %135 = vector.broadcast %cst_70 : f32 to vector<16x32xf32>
    %136 = arith.maximumf %134, %135 : vector<16x32xf32>
    %c0_71 = arith.constant 0 : index
    %c2048 = arith.constant 2048 : index
    %137 = vector.load %arg2[%c0_71, %c2048] : memref<56x4608xf32, #tpu.memory_space<vmem>>, vector<32x256xf32>
    %cst_72 = arith.constant dense<0.000000e+00> : vector<16x256xf32>
    %138 = tpu.matmul %136, %137, %cst_72 {dimension_numbers = #tpu.dot_dimension_numbers<[1], [0], [0], [1], [0, 0, 1, 1], [], []>} : vector<16x32xf32>, vector<32x256xf32>, vector<16x256xf32> -> vector<16x256xf32>
    %c48_73 = arith.constant 48 : index
    %c2048_74 = arith.constant 2048 : index
    %139 = vector.load %arg2[%c48_73, %c2048_74] : memref<56x4608xf32, #tpu.memory_space<vmem>>, vector<1x256xf32>
    %140 = vector.broadcast %139 : vector<1x256xf32> to vector<16x256xf32>
    %141 = arith.addf %138, %140 : vector<16x256xf32>
    %142 = vector.extract_strided_slice %141 {offsets = [0, 0], sizes = [16, 32], strides = [1, 1]} : vector<16x256xf32> to vector<16x32xf32>
    %143 = vector.extract_strided_slice %141 {offsets = [0, 128], sizes = [16, 32], strides = [1, 1]} : vector<16x256xf32> to vector<16x32xf32>
    %144 = math.absf %143 : vector<16x32xf32>
    %cst_75 = arith.constant 0.000000e+00 : f32
    %145 = vector.broadcast %cst_75 : f32 to vector<16x32xf32>
    %146 = arith.subf %145, %144 : vector<16x32xf32>
    %147 = math.exp %146 : vector<16x32xf32>
    %148 = math.log1p %147 : vector<16x32xf32>
    %cst_76 = arith.constant 0.000000e+00 : f32
    %149 = vector.broadcast %cst_76 : f32 to vector<16x32xf32>
    %150 = arith.maximumf %143, %149 : vector<16x32xf32>
    %151 = arith.addf %148, %150 : vector<16x32xf32>
    %cst_77 = arith.constant 1.000000e-03 : f32
    %152 = vector.broadcast %cst_77 : f32 to vector<16x32xf32>
    %153 = arith.addf %151, %152 : vector<16x32xf32>
    %154 = arith.subf %99, %86 : vector<16x16xf32>
    %155 = arith.divf %154, %97 : vector<16x16xf32>
    %156 = math.log %97 : vector<16x16xf32>
    %cst_78 = arith.constant -0.918938517 : f32
    %157 = vector.broadcast %cst_78 : f32 to vector<16x16xf32>
    %158 = arith.subf %157, %156 : vector<16x16xf32>
    %cst_79 = arith.constant 5.000000e-01 : f32
    %159 = vector.broadcast %cst_79 : f32 to vector<16x16xf32>
    %160 = arith.mulf %159, %155 : vector<16x16xf32>
    %161 = arith.mulf %160, %155 : vector<16x16xf32>
    %162 = arith.subf %158, %161 : vector<16x16xf32>
    %cst_80 = arith.constant dense<0.000000e+00> : vector<16xf32>
    %163 = vector.multi_reduction <add>, %162, %cst_80 [1] : vector<16x16xf32> to vector<16xf32>
    %164 = vector.shape_cast %163 : vector<16xf32> to vector<16x1xf32>
    %165 = arith.subf %99, %117 : vector<16x16xf32>
    %166 = arith.divf %165, %128 : vector<16x16xf32>
    %167 = math.log %128 : vector<16x16xf32>
    %cst_81 = arith.constant -0.918938517 : f32
    %168 = vector.broadcast %cst_81 : f32 to vector<16x16xf32>
    %169 = arith.subf %168, %167 : vector<16x16xf32>
    %cst_82 = arith.constant 5.000000e-01 : f32
    %170 = vector.broadcast %cst_82 : f32 to vector<16x16xf32>
    %171 = arith.mulf %170, %166 : vector<16x16xf32>
    %172 = arith.mulf %171, %166 : vector<16x16xf32>
    %173 = arith.subf %169, %172 : vector<16x16xf32>
    %cst_83 = arith.constant dense<0.000000e+00> : vector<16xf32>
    %174 = vector.multi_reduction <add>, %173, %cst_83 [1] : vector<16x16xf32> to vector<16xf32>
    %175 = vector.shape_cast %174 : vector<16xf32> to vector<16x1xf32>
    %176 = arith.subf %37, %142 : vector<16x32xf32>
    %177 = arith.divf %176, %153 : vector<16x32xf32>
    %178 = math.log %153 : vector<16x32xf32>
    %cst_84 = arith.constant -0.918938517 : f32
    %179 = vector.broadcast %cst_84 : f32 to vector<16x32xf32>
    %180 = arith.subf %179, %178 : vector<16x32xf32>
    %cst_85 = arith.constant 5.000000e-01 : f32
    %181 = vector.broadcast %cst_85 : f32 to vector<16x32xf32>
    %182 = arith.mulf %181, %177 : vector<16x32xf32>
    %183 = arith.mulf %182, %177 : vector<16x32xf32>
    %184 = arith.subf %180, %183 : vector<16x32xf32>
    %cst_86 = arith.constant dense<0.000000e+00> : vector<16xf32>
    %185 = vector.multi_reduction <add>, %184, %cst_86 [1] : vector<16x32xf32> to vector<16xf32>
    %186 = vector.shape_cast %185 : vector<16xf32> to vector<16x1xf32>
    %187 = arith.subf %175, %164 : vector<16x1xf32>
    %188 = arith.addf %187, %186 : vector<16x1xf32>
    %cst_87 = arith.constant 5.000000e-01 : f32
    %189 = vector.broadcast %cst_87 : f32 to vector<16x2xf32>
    %190 = arith.cmpf ogt, %6, %189 : vector<16x2xf32>
    %cst_88 = arith.constant -1.000000e+30 : f32
    %191 = vector.shape_cast %188 : vector<16x1xf32> to vector<16x1xf32>
    %192 = vector.broadcast %191 : vector<16x1xf32> to vector<16x2xf32>
    %193 = vector.broadcast %cst_88 : f32 to vector<16x2xf32>
    %194 = arith.select %190, %192, %193 : vector<16x2xi1>, vector<16x2xf32>
    %cst_89 = arith.constant dense<0xFF800000> : vector<2xf32>
    %195 = vector.multi_reduction <maximumf>, %194, %cst_89 [0] : vector<16x2xf32> to vector<2xf32>
    %196 = vector.shape_cast %195 : vector<2xf32> to vector<1x2xf32>
    %197 = vector.broadcast %196 : vector<1x2xf32> to vector<16x2xf32>
    %198 = arith.mulf %6, %197 : vector<16x2xf32>
    %cst_90 = arith.constant dense<0.000000e+00> : vector<16xf32>
    %199 = vector.multi_reduction <add>, %198, %cst_90 [1] : vector<16x2xf32> to vector<16xf32>
    %200 = vector.shape_cast %199 : vector<16xf32> to vector<16x1xf32>
    %201 = arith.subf %188, %200 : vector<16x1xf32>
    %202 = math.exp %201 : vector<16x1xf32>
    %203 = vector.broadcast %202 : vector<16x1xf32> to vector<16x2xf32>
    %204 = arith.mulf %6, %203 : vector<16x2xf32>
    %cst_91 = arith.constant dense<0.000000e+00> : vector<2xf32>
    %205 = vector.multi_reduction <add>, %204, %cst_91 [0] : vector<16x2xf32> to vector<2xf32>
    %206 = vector.shape_cast %205 : vector<2xf32> to vector<1x2xf32>
    %207 = vector.broadcast %206 : vector<1x2xf32> to vector<16x2xf32>
    %208 = arith.mulf %6, %207 : vector<16x2xf32>
    %cst_92 = arith.constant dense<0.000000e+00> : vector<16xf32>
    %209 = vector.multi_reduction <add>, %208, %cst_92 [1] : vector<16x2xf32> to vector<16xf32>
    %210 = vector.shape_cast %209 : vector<16xf32> to vector<16x1xf32>
    %211 = math.log %210 : vector<16x1xf32>
    %212 = arith.addf %200, %211 : vector<16x1xf32>
    %213 = arith.subf %188, %212 : vector<16x1xf32>
    %214 = math.exp %213 : vector<16x1xf32>
    %cst_93 = arith.constant 2.07944155 : f32
    %215 = vector.broadcast %cst_93 : f32 to vector<16x1xf32>
    %216 = arith.subf %212, %215 : vector<16x1xf32>
    %cst_94 = arith.constant 0.000000e+00 : f32
    %217 = vector.broadcast %cst_94 : f32 to vector<16x1xf32>
    %218 = arith.subf %217, %216 : vector<16x1xf32>
    %cst_95 = arith.constant dense<0.000000e+00> : vector<2x1xf32>
    %219 = tpu.matmul %9, %218, %cst_95 {dimension_numbers = #tpu.dot_dimension_numbers<[1], [0], [0], [1], [0, 0, 1, 1], [], []>} : vector<2x16xf32>, vector<16x1xf32>, vector<2x1xf32> -> vector<2x1xf32>
    %c0_96 = arith.constant 0 : index
    %c2304 = arith.constant 2304 : index
    %220 = vector.load %arg2[%c0_96, %c2304] : memref<56x4608xf32, #tpu.memory_space<vmem>>, vector<48x384xf32>
    %cst_97 = arith.constant dense<0.000000e+00> : vector<16x384xf32>
    %221 = tpu.matmul %129, %220, %cst_97 {dimension_numbers = #tpu.dot_dimension_numbers<[1], [0], [0], [1], [0, 0, 1, 1], [], []>} : vector<16x48xf32>, vector<48x384xf32>, vector<16x384xf32> -> vector<16x384xf32>
    %c0_98 = arith.constant 0 : index
    %c2688 = arith.constant 2688 : index
    %222 = vector.load %arg2[%c0_98, %c2688] : memref<56x4608xf32, #tpu.memory_space<vmem>>, vector<1x384xf32>
    %223 = vector.broadcast %214 : vector<16x1xf32> to vector<16x384xf32>
    %224 = vector.broadcast %222 : vector<1x384xf32> to vector<16x384xf32>
    %225 = arith.mulf %223, %224 : vector<16x384xf32>
    %226 = arith.addf %221, %225 : vector<16x384xf32>
    %c48_99 = arith.constant 48 : index
    %c2304_100 = arith.constant 2304 : index
    %227 = vector.load %arg2[%c48_99, %c2304_100] : memref<56x4608xf32, #tpu.memory_space<vmem>>, vector<1x384xf32>
    %228 = vector.broadcast %227 : vector<1x384xf32> to vector<16x384xf32>
    %229 = arith.addf %226, %228 : vector<16x384xf32>
    %cst_101 = arith.constant dense<0.000000e+00> : vector<16x384xf32>
    %230 = tpu.matmul %8, %229, %cst_101 {dimension_numbers = #tpu.dot_dimension_numbers<[1], [0], [0], [1], [0, 0, 1, 1], [], []>} : vector<16x16xf32>, vector<16x384xf32>, vector<16x384xf32> -> vector<16x384xf32>
    %c0_102 = arith.constant 0 : index
    %c3072 = arith.constant 3072 : index
    %231 = vector.load %arg2[%c0_102, %c3072] : memref<56x4608xf32, #tpu.memory_space<vmem>>, vector<32x384xf32>
    %c48_103 = arith.constant 48 : index
    %c3072_104 = arith.constant 3072 : index
    %232 = vector.load %arg2[%c48_103, %c3072_104] : memref<56x4608xf32, #tpu.memory_space<vmem>>, vector<1x384xf32>
    %cst_105 = arith.constant 0.000000e+00 : f32
    %233 = vector.broadcast %cst_105 : f32 to vector<2x32xf32>
    %234 = vector.extract_strided_slice %230 {offsets = [0, 0], sizes = [2, 384], strides = [1, 1]} : vector<16x384xf32> to vector<2x384xf32>
    %cst_106 = arith.constant dense<0.000000e+00> : vector<2x384xf32>
    %235 = tpu.matmul %233, %231, %cst_106 {dimension_numbers = #tpu.dot_dimension_numbers<[1], [0], [0], [1], [0, 0, 1, 1], [], []>} : vector<2x32xf32>, vector<32x384xf32>, vector<2x384xf32> -> vector<2x384xf32>
    %236 = vector.broadcast %232 : vector<1x384xf32> to vector<2x384xf32>
    %237 = arith.addf %235, %236 : vector<2x384xf32>
    %238 = vector.extract_strided_slice %234 {offsets = [0, 0], sizes = [2, 32], strides = [1, 1]} : vector<2x384xf32> to vector<2x32xf32>
    %239 = vector.extract_strided_slice %237 {offsets = [0, 0], sizes = [2, 32], strides = [1, 1]} : vector<2x384xf32> to vector<2x32xf32>
    %240 = arith.addf %238, %239 : vector<2x32xf32>
    %241 = arith.negf %240 : vector<2x32xf32>
    %242 = math.exp %241 : vector<2x32xf32>
    %cst_107 = arith.constant 1.000000e+00 : f32
    %243 = vector.broadcast %cst_107 : f32 to vector<2x32xf32>
    %244 = arith.addf %243, %242 : vector<2x32xf32>
    %245 = arith.divf %243, %244 : vector<2x32xf32>
    %246 = vector.extract_strided_slice %234 {offsets = [0, 128], sizes = [2, 32], strides = [1, 1]} : vector<2x384xf32> to vector<2x32xf32>
    %247 = vector.extract_strided_slice %237 {offsets = [0, 128], sizes = [2, 32], strides = [1, 1]} : vector<2x384xf32> to vector<2x32xf32>
    %248 = arith.addf %246, %247 : vector<2x32xf32>
    %249 = arith.negf %248 : vector<2x32xf32>
    %250 = math.exp %249 : vector<2x32xf32>
    %cst_108 = arith.constant 1.000000e+00 : f32
    %251 = vector.broadcast %cst_108 : f32 to vector<2x32xf32>
    %252 = arith.addf %251, %250 : vector<2x32xf32>
    %253 = arith.divf %251, %252 : vector<2x32xf32>
    %254 = vector.extract_strided_slice %234 {offsets = [0, 256], sizes = [2, 32], strides = [1, 1]} : vector<2x384xf32> to vector<2x32xf32>
    %255 = vector.extract_strided_slice %237 {offsets = [0, 256], sizes = [2, 32], strides = [1, 1]} : vector<2x384xf32> to vector<2x32xf32>
    %256 = arith.mulf %245, %255 : vector<2x32xf32>
    %257 = arith.addf %254, %256 : vector<2x32xf32>
    %258 = math.tanh %257 : vector<2x32xf32>
    %cst_109 = arith.constant 1.000000e+00 : f32
    %259 = vector.broadcast %cst_109 : f32 to vector<2x32xf32>
    %260 = arith.subf %259, %253 : vector<2x32xf32>
    %261 = arith.mulf %260, %258 : vector<2x32xf32>
    %262 = arith.mulf %253, %233 : vector<2x32xf32>
    %263 = arith.addf %261, %262 : vector<2x32xf32>
    %264 = vector.extract_strided_slice %230 {offsets = [2, 0], sizes = [2, 384], strides = [1, 1]} : vector<16x384xf32> to vector<2x384xf32>
    %cst_110 = arith.constant dense<0.000000e+00> : vector<2x384xf32>
    %265 = tpu.matmul %263, %231, %cst_110 {dimension_numbers = #tpu.dot_dimension_numbers<[1], [0], [0], [1], [0, 0, 1, 1], [], []>} : vector<2x32xf32>, vector<32x384xf32>, vector<2x384xf32> -> vector<2x384xf32>
    %266 = vector.broadcast %232 : vector<1x384xf32> to vector<2x384xf32>
    %267 = arith.addf %265, %266 : vector<2x384xf32>
    %268 = vector.extract_strided_slice %264 {offsets = [0, 0], sizes = [2, 32], strides = [1, 1]} : vector<2x384xf32> to vector<2x32xf32>
    %269 = vector.extract_strided_slice %267 {offsets = [0, 0], sizes = [2, 32], strides = [1, 1]} : vector<2x384xf32> to vector<2x32xf32>
    %270 = arith.addf %268, %269 : vector<2x32xf32>
    %271 = arith.negf %270 : vector<2x32xf32>
    %272 = math.exp %271 : vector<2x32xf32>
    %cst_111 = arith.constant 1.000000e+00 : f32
    %273 = vector.broadcast %cst_111 : f32 to vector<2x32xf32>
    %274 = arith.addf %273, %272 : vector<2x32xf32>
    %275 = arith.divf %273, %274 : vector<2x32xf32>
    %276 = vector.extract_strided_slice %264 {offsets = [0, 128], sizes = [2, 32], strides = [1, 1]} : vector<2x384xf32> to vector<2x32xf32>
    %277 = vector.extract_strided_slice %267 {offsets = [0, 128], sizes = [2, 32], strides = [1, 1]} : vector<2x384xf32> to vector<2x32xf32>
    %278 = arith.addf %276, %277 : vector<2x32xf32>
    %279 = arith.negf %278 : vector<2x32xf32>
    %280 = math.exp %279 : vector<2x32xf32>
    %cst_112 = arith.constant 1.000000e+00 : f32
    %281 = vector.broadcast %cst_112 : f32 to vector<2x32xf32>
    %282 = arith.addf %281, %280 : vector<2x32xf32>
    %283 = arith.divf %281, %282 : vector<2x32xf32>
    %284 = vector.extract_strided_slice %264 {offsets = [0, 256], sizes = [2, 32], strides = [1, 1]} : vector<2x384xf32> to vector<2x32xf32>
    %285 = vector.extract_strided_slice %267 {offsets = [0, 256], sizes = [2, 32], strides = [1, 1]} : vector<2x384xf32> to vector<2x32xf32>
    %286 = arith.mulf %275, %285 : vector<2x32xf32>
    %287 = arith.addf %284, %286 : vector<2x32xf32>
    %288 = math.tanh %287 : vector<2x32xf32>
    %cst_113 = arith.constant 1.000000e+00 : f32
    %289 = vector.broadcast %cst_113 : f32 to vector<2x32xf32>
    %290 = arith.subf %289, %283 : vector<2x32xf32>
    %291 = arith.mulf %290, %288 : vector<2x32xf32>
    %292 = arith.mulf %283, %263 : vector<2x32xf32>
    %293 = arith.addf %291, %292 : vector<2x32xf32>
    %294 = vector.extract_strided_slice %230 {offsets = [4, 0], sizes = [2, 384], strides = [1, 1]} : vector<16x384xf32> to vector<2x384xf32>
    %cst_114 = arith.constant dense<0.000000e+00> : vector<2x384xf32>
    %295 = tpu.matmul %293, %231, %cst_114 {dimension_numbers = #tpu.dot_dimension_numbers<[1], [0], [0], [1], [0, 0, 1, 1], [], []>} : vector<2x32xf32>, vector<32x384xf32>, vector<2x384xf32> -> vector<2x384xf32>
    %296 = vector.broadcast %232 : vector<1x384xf32> to vector<2x384xf32>
    %297 = arith.addf %295, %296 : vector<2x384xf32>
    %298 = vector.extract_strided_slice %294 {offsets = [0, 0], sizes = [2, 32], strides = [1, 1]} : vector<2x384xf32> to vector<2x32xf32>
    %299 = vector.extract_strided_slice %297 {offsets = [0, 0], sizes = [2, 32], strides = [1, 1]} : vector<2x384xf32> to vector<2x32xf32>
    %300 = arith.addf %298, %299 : vector<2x32xf32>
    %301 = arith.negf %300 : vector<2x32xf32>
    %302 = math.exp %301 : vector<2x32xf32>
    %cst_115 = arith.constant 1.000000e+00 : f32
    %303 = vector.broadcast %cst_115 : f32 to vector<2x32xf32>
    %304 = arith.addf %303, %302 : vector<2x32xf32>
    %305 = arith.divf %303, %304 : vector<2x32xf32>
    %306 = vector.extract_strided_slice %294 {offsets = [0, 128], sizes = [2, 32], strides = [1, 1]} : vector<2x384xf32> to vector<2x32xf32>
    %307 = vector.extract_strided_slice %297 {offsets = [0, 128], sizes = [2, 32], strides = [1, 1]} : vector<2x384xf32> to vector<2x32xf32>
    %308 = arith.addf %306, %307 : vector<2x32xf32>
    %309 = arith.negf %308 : vector<2x32xf32>
    %310 = math.exp %309 : vector<2x32xf32>
    %cst_116 = arith.constant 1.000000e+00 : f32
    %311 = vector.broadcast %cst_116 : f32 to vector<2x32xf32>
    %312 = arith.addf %311, %310 : vector<2x32xf32>
    %313 = arith.divf %311, %312 : vector<2x32xf32>
    %314 = vector.extract_strided_slice %294 {offsets = [0, 256], sizes = [2, 32], strides = [1, 1]} : vector<2x384xf32> to vector<2x32xf32>
    %315 = vector.extract_strided_slice %297 {offsets = [0, 256], sizes = [2, 32], strides = [1, 1]} : vector<2x384xf32> to vector<2x32xf32>
    %316 = arith.mulf %305, %315 : vector<2x32xf32>
    %317 = arith.addf %314, %316 : vector<2x32xf32>
    %318 = math.tanh %317 : vector<2x32xf32>
    %cst_117 = arith.constant 1.000000e+00 : f32
    %319 = vector.broadcast %cst_117 : f32 to vector<2x32xf32>
    %320 = arith.subf %319, %313 : vector<2x32xf32>
    %321 = arith.mulf %320, %318 : vector<2x32xf32>
    %322 = arith.mulf %313, %293 : vector<2x32xf32>
    %323 = arith.addf %321, %322 : vector<2x32xf32>
    %324 = vector.extract_strided_slice %230 {offsets = [6, 0], sizes = [2, 384], strides = [1, 1]} : vector<16x384xf32> to vector<2x384xf32>
    %cst_118 = arith.constant dense<0.000000e+00> : vector<2x384xf32>
    %325 = tpu.matmul %323, %231, %cst_118 {dimension_numbers = #tpu.dot_dimension_numbers<[1], [0], [0], [1], [0, 0, 1, 1], [], []>} : vector<2x32xf32>, vector<32x384xf32>, vector<2x384xf32> -> vector<2x384xf32>
    %326 = vector.broadcast %232 : vector<1x384xf32> to vector<2x384xf32>
    %327 = arith.addf %325, %326 : vector<2x384xf32>
    %328 = vector.extract_strided_slice %324 {offsets = [0, 0], sizes = [2, 32], strides = [1, 1]} : vector<2x384xf32> to vector<2x32xf32>
    %329 = vector.extract_strided_slice %327 {offsets = [0, 0], sizes = [2, 32], strides = [1, 1]} : vector<2x384xf32> to vector<2x32xf32>
    %330 = arith.addf %328, %329 : vector<2x32xf32>
    %331 = arith.negf %330 : vector<2x32xf32>
    %332 = math.exp %331 : vector<2x32xf32>
    %cst_119 = arith.constant 1.000000e+00 : f32
    %333 = vector.broadcast %cst_119 : f32 to vector<2x32xf32>
    %334 = arith.addf %333, %332 : vector<2x32xf32>
    %335 = arith.divf %333, %334 : vector<2x32xf32>
    %336 = vector.extract_strided_slice %324 {offsets = [0, 128], sizes = [2, 32], strides = [1, 1]} : vector<2x384xf32> to vector<2x32xf32>
    %337 = vector.extract_strided_slice %327 {offsets = [0, 128], sizes = [2, 32], strides = [1, 1]} : vector<2x384xf32> to vector<2x32xf32>
    %338 = arith.addf %336, %337 : vector<2x32xf32>
    %339 = arith.negf %338 : vector<2x32xf32>
    %340 = math.exp %339 : vector<2x32xf32>
    %cst_120 = arith.constant 1.000000e+00 : f32
    %341 = vector.broadcast %cst_120 : f32 to vector<2x32xf32>
    %342 = arith.addf %341, %340 : vector<2x32xf32>
    %343 = arith.divf %341, %342 : vector<2x32xf32>
    %344 = vector.extract_strided_slice %324 {offsets = [0, 256], sizes = [2, 32], strides = [1, 1]} : vector<2x384xf32> to vector<2x32xf32>
    %345 = vector.extract_strided_slice %327 {offsets = [0, 256], sizes = [2, 32], strides = [1, 1]} : vector<2x384xf32> to vector<2x32xf32>
    %346 = arith.mulf %335, %345 : vector<2x32xf32>
    %347 = arith.addf %344, %346 : vector<2x32xf32>
    %348 = math.tanh %347 : vector<2x32xf32>
    %cst_121 = arith.constant 1.000000e+00 : f32
    %349 = vector.broadcast %cst_121 : f32 to vector<2x32xf32>
    %350 = arith.subf %349, %343 : vector<2x32xf32>
    %351 = arith.mulf %350, %348 : vector<2x32xf32>
    %352 = arith.mulf %343, %323 : vector<2x32xf32>
    %353 = arith.addf %351, %352 : vector<2x32xf32>
    %354 = vector.extract_strided_slice %230 {offsets = [8, 0], sizes = [2, 384], strides = [1, 1]} : vector<16x384xf32> to vector<2x384xf32>
    %cst_122 = arith.constant dense<0.000000e+00> : vector<2x384xf32>
    %355 = tpu.matmul %353, %231, %cst_122 {dimension_numbers = #tpu.dot_dimension_numbers<[1], [0], [0], [1], [0, 0, 1, 1], [], []>} : vector<2x32xf32>, vector<32x384xf32>, vector<2x384xf32> -> vector<2x384xf32>
    %356 = vector.broadcast %232 : vector<1x384xf32> to vector<2x384xf32>
    %357 = arith.addf %355, %356 : vector<2x384xf32>
    %358 = vector.extract_strided_slice %354 {offsets = [0, 0], sizes = [2, 32], strides = [1, 1]} : vector<2x384xf32> to vector<2x32xf32>
    %359 = vector.extract_strided_slice %357 {offsets = [0, 0], sizes = [2, 32], strides = [1, 1]} : vector<2x384xf32> to vector<2x32xf32>
    %360 = arith.addf %358, %359 : vector<2x32xf32>
    %361 = arith.negf %360 : vector<2x32xf32>
    %362 = math.exp %361 : vector<2x32xf32>
    %cst_123 = arith.constant 1.000000e+00 : f32
    %363 = vector.broadcast %cst_123 : f32 to vector<2x32xf32>
    %364 = arith.addf %363, %362 : vector<2x32xf32>
    %365 = arith.divf %363, %364 : vector<2x32xf32>
    %366 = vector.extract_strided_slice %354 {offsets = [0, 128], sizes = [2, 32], strides = [1, 1]} : vector<2x384xf32> to vector<2x32xf32>
    %367 = vector.extract_strided_slice %357 {offsets = [0, 128], sizes = [2, 32], strides = [1, 1]} : vector<2x384xf32> to vector<2x32xf32>
    %368 = arith.addf %366, %367 : vector<2x32xf32>
    %369 = arith.negf %368 : vector<2x32xf32>
    %370 = math.exp %369 : vector<2x32xf32>
    %cst_124 = arith.constant 1.000000e+00 : f32
    %371 = vector.broadcast %cst_124 : f32 to vector<2x32xf32>
    %372 = arith.addf %371, %370 : vector<2x32xf32>
    %373 = arith.divf %371, %372 : vector<2x32xf32>
    %374 = vector.extract_strided_slice %354 {offsets = [0, 256], sizes = [2, 32], strides = [1, 1]} : vector<2x384xf32> to vector<2x32xf32>
    %375 = vector.extract_strided_slice %357 {offsets = [0, 256], sizes = [2, 32], strides = [1, 1]} : vector<2x384xf32> to vector<2x32xf32>
    %376 = arith.mulf %365, %375 : vector<2x32xf32>
    %377 = arith.addf %374, %376 : vector<2x32xf32>
    %378 = math.tanh %377 : vector<2x32xf32>
    %cst_125 = arith.constant 1.000000e+00 : f32
    %379 = vector.broadcast %cst_125 : f32 to vector<2x32xf32>
    %380 = arith.subf %379, %373 : vector<2x32xf32>
    %381 = arith.mulf %380, %378 : vector<2x32xf32>
    %382 = arith.mulf %373, %353 : vector<2x32xf32>
    %383 = arith.addf %381, %382 : vector<2x32xf32>
    %384 = vector.extract_strided_slice %230 {offsets = [10, 0], sizes = [2, 384], strides = [1, 1]} : vector<16x384xf32> to vector<2x384xf32>
    %cst_126 = arith.constant dense<0.000000e+00> : vector<2x384xf32>
    %385 = tpu.matmul %383, %231, %cst_126 {dimension_numbers = #tpu.dot_dimension_numbers<[1], [0], [0], [1], [0, 0, 1, 1], [], []>} : vector<2x32xf32>, vector<32x384xf32>, vector<2x384xf32> -> vector<2x384xf32>
    %386 = vector.broadcast %232 : vector<1x384xf32> to vector<2x384xf32>
    %387 = arith.addf %385, %386 : vector<2x384xf32>
    %388 = vector.extract_strided_slice %384 {offsets = [0, 0], sizes = [2, 32], strides = [1, 1]} : vector<2x384xf32> to vector<2x32xf32>
    %389 = vector.extract_strided_slice %387 {offsets = [0, 0], sizes = [2, 32], strides = [1, 1]} : vector<2x384xf32> to vector<2x32xf32>
    %390 = arith.addf %388, %389 : vector<2x32xf32>
    %391 = arith.negf %390 : vector<2x32xf32>
    %392 = math.exp %391 : vector<2x32xf32>
    %cst_127 = arith.constant 1.000000e+00 : f32
    %393 = vector.broadcast %cst_127 : f32 to vector<2x32xf32>
    %394 = arith.addf %393, %392 : vector<2x32xf32>
    %395 = arith.divf %393, %394 : vector<2x32xf32>
    %396 = vector.extract_strided_slice %384 {offsets = [0, 128], sizes = [2, 32], strides = [1, 1]} : vector<2x384xf32> to vector<2x32xf32>
    %397 = vector.extract_strided_slice %387 {offsets = [0, 128], sizes = [2, 32], strides = [1, 1]} : vector<2x384xf32> to vector<2x32xf32>
    %398 = arith.addf %396, %397 : vector<2x32xf32>
    %399 = arith.negf %398 : vector<2x32xf32>
    %400 = math.exp %399 : vector<2x32xf32>
    %cst_128 = arith.constant 1.000000e+00 : f32
    %401 = vector.broadcast %cst_128 : f32 to vector<2x32xf32>
    %402 = arith.addf %401, %400 : vector<2x32xf32>
    %403 = arith.divf %401, %402 : vector<2x32xf32>
    %404 = vector.extract_strided_slice %384 {offsets = [0, 256], sizes = [2, 32], strides = [1, 1]} : vector<2x384xf32> to vector<2x32xf32>
    %405 = vector.extract_strided_slice %387 {offsets = [0, 256], sizes = [2, 32], strides = [1, 1]} : vector<2x384xf32> to vector<2x32xf32>
    %406 = arith.mulf %395, %405 : vector<2x32xf32>
    %407 = arith.addf %404, %406 : vector<2x32xf32>
    %408 = math.tanh %407 : vector<2x32xf32>
    %cst_129 = arith.constant 1.000000e+00 : f32
    %409 = vector.broadcast %cst_129 : f32 to vector<2x32xf32>
    %410 = arith.subf %409, %403 : vector<2x32xf32>
    %411 = arith.mulf %410, %408 : vector<2x32xf32>
    %412 = arith.mulf %403, %383 : vector<2x32xf32>
    %413 = arith.addf %411, %412 : vector<2x32xf32>
    %414 = vector.extract_strided_slice %230 {offsets = [12, 0], sizes = [2, 384], strides = [1, 1]} : vector<16x384xf32> to vector<2x384xf32>
    %cst_130 = arith.constant dense<0.000000e+00> : vector<2x384xf32>
    %415 = tpu.matmul %413, %231, %cst_130 {dimension_numbers = #tpu.dot_dimension_numbers<[1], [0], [0], [1], [0, 0, 1, 1], [], []>} : vector<2x32xf32>, vector<32x384xf32>, vector<2x384xf32> -> vector<2x384xf32>
    %416 = vector.broadcast %232 : vector<1x384xf32> to vector<2x384xf32>
    %417 = arith.addf %415, %416 : vector<2x384xf32>
    %418 = vector.extract_strided_slice %414 {offsets = [0, 0], sizes = [2, 32], strides = [1, 1]} : vector<2x384xf32> to vector<2x32xf32>
    %419 = vector.extract_strided_slice %417 {offsets = [0, 0], sizes = [2, 32], strides = [1, 1]} : vector<2x384xf32> to vector<2x32xf32>
    %420 = arith.addf %418, %419 : vector<2x32xf32>
    %421 = arith.negf %420 : vector<2x32xf32>
    %422 = math.exp %421 : vector<2x32xf32>
    %cst_131 = arith.constant 1.000000e+00 : f32
    %423 = vector.broadcast %cst_131 : f32 to vector<2x32xf32>
    %424 = arith.addf %423, %422 : vector<2x32xf32>
    %425 = arith.divf %423, %424 : vector<2x32xf32>
    %426 = vector.extract_strided_slice %414 {offsets = [0, 128], sizes = [2, 32], strides = [1, 1]} : vector<2x384xf32> to vector<2x32xf32>
    %427 = vector.extract_strided_slice %417 {offsets = [0, 128], sizes = [2, 32], strides = [1, 1]} : vector<2x384xf32> to vector<2x32xf32>
    %428 = arith.addf %426, %427 : vector<2x32xf32>
    %429 = arith.negf %428 : vector<2x32xf32>
    %430 = math.exp %429 : vector<2x32xf32>
    %cst_132 = arith.constant 1.000000e+00 : f32
    %431 = vector.broadcast %cst_132 : f32 to vector<2x32xf32>
    %432 = arith.addf %431, %430 : vector<2x32xf32>
    %433 = arith.divf %431, %432 : vector<2x32xf32>
    %434 = vector.extract_strided_slice %414 {offsets = [0, 256], sizes = [2, 32], strides = [1, 1]} : vector<2x384xf32> to vector<2x32xf32>
    %435 = vector.extract_strided_slice %417 {offsets = [0, 256], sizes = [2, 32], strides = [1, 1]} : vector<2x384xf32> to vector<2x32xf32>
    %436 = arith.mulf %425, %435 : vector<2x32xf32>
    %437 = arith.addf %434, %436 : vector<2x32xf32>
    %438 = math.tanh %437 : vector<2x32xf32>
    %cst_133 = arith.constant 1.000000e+00 : f32
    %439 = vector.broadcast %cst_133 : f32 to vector<2x32xf32>
    %440 = arith.subf %439, %433 : vector<2x32xf32>
    %441 = arith.mulf %440, %438 : vector<2x32xf32>
    %442 = arith.mulf %433, %413 : vector<2x32xf32>
    %443 = arith.addf %441, %442 : vector<2x32xf32>
    %444 = vector.extract_strided_slice %230 {offsets = [14, 0], sizes = [2, 384], strides = [1, 1]} : vector<16x384xf32> to vector<2x384xf32>
    %cst_134 = arith.constant dense<0.000000e+00> : vector<2x384xf32>
    %445 = tpu.matmul %443, %231, %cst_134 {dimension_numbers = #tpu.dot_dimension_numbers<[1], [0], [0], [1], [0, 0, 1, 1], [], []>} : vector<2x32xf32>, vector<32x384xf32>, vector<2x384xf32> -> vector<2x384xf32>
    %446 = vector.broadcast %232 : vector<1x384xf32> to vector<2x384xf32>
    %447 = arith.addf %445, %446 : vector<2x384xf32>
    %448 = vector.extract_strided_slice %444 {offsets = [0, 0], sizes = [2, 32], strides = [1, 1]} : vector<2x384xf32> to vector<2x32xf32>
    %449 = vector.extract_strided_slice %447 {offsets = [0, 0], sizes = [2, 32], strides = [1, 1]} : vector<2x384xf32> to vector<2x32xf32>
    %450 = arith.addf %448, %449 : vector<2x32xf32>
    %451 = arith.negf %450 : vector<2x32xf32>
    %452 = math.exp %451 : vector<2x32xf32>
    %cst_135 = arith.constant 1.000000e+00 : f32
    %453 = vector.broadcast %cst_135 : f32 to vector<2x32xf32>
    %454 = arith.addf %453, %452 : vector<2x32xf32>
    %455 = arith.divf %453, %454 : vector<2x32xf32>
    %456 = vector.extract_strided_slice %444 {offsets = [0, 128], sizes = [2, 32], strides = [1, 1]} : vector<2x384xf32> to vector<2x32xf32>
    %457 = vector.extract_strided_slice %447 {offsets = [0, 128], sizes = [2, 32], strides = [1, 1]} : vector<2x384xf32> to vector<2x32xf32>
    %458 = arith.addf %456, %457 : vector<2x32xf32>
    %459 = arith.negf %458 : vector<2x32xf32>
    %460 = math.exp %459 : vector<2x32xf32>
    %cst_136 = arith.constant 1.000000e+00 : f32
    %461 = vector.broadcast %cst_136 : f32 to vector<2x32xf32>
    %462 = arith.addf %461, %460 : vector<2x32xf32>
    %463 = arith.divf %461, %462 : vector<2x32xf32>
    %464 = vector.extract_strided_slice %444 {offsets = [0, 256], sizes = [2, 32], strides = [1, 1]} : vector<2x384xf32> to vector<2x32xf32>
    %465 = vector.extract_strided_slice %447 {offsets = [0, 256], sizes = [2, 32], strides = [1, 1]} : vector<2x384xf32> to vector<2x32xf32>
    %466 = arith.mulf %455, %465 : vector<2x32xf32>
    %467 = arith.addf %464, %466 : vector<2x32xf32>
    %468 = math.tanh %467 : vector<2x32xf32>
    %cst_137 = arith.constant 1.000000e+00 : f32
    %469 = vector.broadcast %cst_137 : f32 to vector<2x32xf32>
    %470 = arith.subf %469, %463 : vector<2x32xf32>
    %471 = arith.mulf %470, %468 : vector<2x32xf32>
    %472 = arith.mulf %463, %443 : vector<2x32xf32>
    %473 = arith.addf %471, %472 : vector<2x32xf32>
    %c0_138 = arith.constant 0 : index
    %c3456 = arith.constant 3456 : index
    %474 = vector.load %arg2[%c0_138, %c3456] : memref<56x4608xf32, #tpu.memory_space<vmem>>, vector<32x256xf32>
    %cst_139 = arith.constant dense<0.000000e+00> : vector<2x256xf32>
    %475 = tpu.matmul %473, %474, %cst_139 {dimension_numbers = #tpu.dot_dimension_numbers<[1], [0], [0], [1], [0, 0, 1, 1], [], []>} : vector<2x32xf32>, vector<32x256xf32>, vector<2x256xf32> -> vector<2x256xf32>
    %c48_140 = arith.constant 48 : index
    %c3456_141 = arith.constant 3456 : index
    %476 = vector.load %arg2[%c48_140, %c3456_141] : memref<56x4608xf32, #tpu.memory_space<vmem>>, vector<1x256xf32>
    %477 = vector.broadcast %476 : vector<1x256xf32> to vector<2x256xf32>
    %478 = arith.addf %475, %477 : vector<2x256xf32>
    %479 = vector.extract_strided_slice %478 {offsets = [0, 0], sizes = [2, 1], strides = [1, 1]} : vector<2x256xf32> to vector<2x1xf32>
    %480 = vector.extract_strided_slice %478 {offsets = [0, 128], sizes = [2, 4], strides = [1, 1]} : vector<2x256xf32> to vector<2x4xf32>
    %cst_142 = arith.constant dense<0xFF800000> : vector<2xf32>
    %481 = vector.multi_reduction <maximumf>, %480, %cst_142 [1] : vector<2x4xf32> to vector<2xf32>
    %482 = vector.shape_cast %481 : vector<2xf32> to vector<2x1xf32>
    %483 = vector.broadcast %482 : vector<2x1xf32> to vector<2x4xf32>
    %484 = arith.subf %480, %483 : vector<2x4xf32>
    %485 = math.exp %484 : vector<2x4xf32>
    %cst_143 = arith.constant dense<0.000000e+00> : vector<2xf32>
    %486 = vector.multi_reduction <add>, %485, %cst_143 [1] : vector<2x4xf32> to vector<2xf32>
    %487 = vector.shape_cast %486 : vector<2xf32> to vector<2x1xf32>
    %488 = math.log %487 : vector<2x1xf32>
    %489 = vector.broadcast %488 : vector<2x1xf32> to vector<2x4xf32>
    %490 = arith.subf %484, %489 : vector<2x4xf32>
    %491 = math.exp %490 : vector<2x4xf32>
    %492 = arith.mulf %491, %490 : vector<2x4xf32>
    %cst_144 = arith.constant dense<0.000000e+00> : vector<2xf32>
    %493 = vector.multi_reduction <add>, %492, %cst_144 [1] : vector<2x4xf32> to vector<2xf32>
    %494 = vector.shape_cast %493 : vector<2xf32> to vector<2x1xf32>
    %cst_145 = arith.constant 0.000000e+00 : f32
    %495 = vector.broadcast %cst_145 : f32 to vector<2x1xf32>
    %496 = arith.subf %495, %494 : vector<2x1xf32>
    %cst_146 = arith.constant 0.000000e+00 : f32
    %497 = vector.broadcast %cst_146 : f32 to vector<16x79xf32>
    %498 = tpu.concatenate %129, %188, %497 in 1 : vector<16x48xf32>, vector<16x1xf32>, vector<16x79xf32> -> vector<16x128xf32>
    %c0_147 = arith.constant 0 : index
    %c0_148 = arith.constant 0 : index
    %499 = vector.load %arg3[%c0_147, %c0_148] : memref<16x128xf32, #tpu.memory_space<vmem>>, vector<16x128xf32>
    tpu.vector_store %arg3[%c0_147, %c0_148], %498 {strides = array<i32>} : memref<16x128xf32, #tpu.memory_space<vmem>>, vector<16x128xf32>,
    %cst_149 = arith.constant 0.000000e+00 : f32
    %500 = vector.broadcast %cst_149 : f32 to vector<2x85xf32>
    %501 = tpu.concatenate %473, %480, %490, %479, %496, %219, %500 in 1 : vector<2x32xf32>, vector<2x4xf32>, vector<2x4xf32>, vector<2x1xf32>, vector<2x1xf32>, vector<2x1xf32>, vector<2x85xf32> -> vector<2x128xf32>
    %c0_150 = arith.constant 0 : index
    %c0_151 = arith.constant 0 : index
    %502 = vector.load %arg4[%c0_150, %c0_151] : memref<2x128xf32, #tpu.memory_space<vmem>>, vector<2x128xf32>
    tpu.vector_store %arg4[%c0_150, %c0_151], %501 {strides = array<i32>} : memref<2x128xf32, #tpu.memory_space<vmem>>, vector<2x128xf32>,
    return
  }
}

</mosaic_0001>

<llo_original>
// kernel: squeeze.24
$region0: #{squeeze.24}
  %s0 = inlined_call_operand.vmem [shape: f32[16], index: 0, kind: input, shape index: {}]
  %s1 = inlined_call_operand.hbm [shape: f32[2,8], index: 1, kind: output, shape index: {}]
  $region1: #{squeeze.24} parent=0
    #allocation0 [shape = 'u8[1024]{0}', space=vmem, size = 0x400, scoped, tag = 'operand span for operand 1']
    #allocation1 [shape = 's32[1]{0}', space=sflag, size = 0x4, scoped, tag = 'scoped memory for squeeze.24']
    #allocation2 [shape = 'u8[4096]{0}', space=vmem, size = 0x1000, scoped, tag = 'scoped mem for output reshape']
    #allocation3 [shape = 'u8[4096]{0}', space=vmem, size = 0x1000, scoped, tag = 'scoped mem for input reshape']
    %2 = vsyncpa [#allocation1], 0
    %s4 = ssub.s32 2, 1
    %v5 = vld [vmem:[%s0] sm:%s4]
    %6 = vst [vmem:[#allocation3] sm:%s4] %v5
    %v7 = vld [vmem:[#allocation3] sm:$0x1]
    %vm8 = vcmask 64512
    %9 = vst.msk [vmem:[#allocation2] sm:$0x1] %vm8, %v7
    %v10 = vld [vmem:[#allocation3] sm:$0x1]
    %11 = vrot.lane.b32.xlu0 %v10, 120
    %v12 = vpop.permute.xlu0 %11
    %vm13 = vcmask 64512
    %s14 = scalar_lea.vmem [#allocation2], 1
    %15 = vst.msk [vmem:[%s14] sm:$0x1] %vm13, %v12
    %s17 = ssub.s32 4, 1
    %v18 = vld [vmem:[#allocation2] sm:%s17]
    %s20 = ssub.s32 4, 1
    %21 = vst [vmem:[#allocation0] sm:%s20] %v18
    %23 = vsyncadd [#allocation1], 0
    %s25 = sshll.u32 [#allocation0], 4
    %s26 = int_to_ptr.vmem [resolvable:$true] %s25
    %s27 = sshll.u32 %s1, 4
    %s28 = int_to_ptr.hbm [resolvable:$true] %s27
    %30 = dma.vmem_to_hbm [thread:$0]  %s26, 32, %s28, [#allocation1]
    %32 = dma.done [#allocation1], 32
    %33 = vsyncpa [#allocation1], 1

// kernel: forward.1
$region0: #{forward.1}
  #allocation0 [shape = 'u32[]', space=smem, size = 0x4, offset = 0x4, fixed_abs, tag = 'smem constant byte address 0x4 - core index']
  #allocation1 [shape = 'u32[72,128]{1,0:T(1,128)}', space=vmem, size = 0x9000, scoped, tag = 'internal scratch']
  %s0 = inlined_call_operand.vmem [shape: f32[2,512], index: 0, kind: input, shape index: {}]
  %s1 = inlined_call_operand.vmem [shape: f32[16,256], index: 1, kind: input, shape index: {}]
  %s2 = inlined_call_operand.hbm [shape: f32[56,4608], index: 2, kind: input, shape index: {}]
  %s3 = inlined_call_operand.vmem [shape: f32[16,128], index: 3, kind: output, shape index: {0}]
  %s4 = inlined_call_operand.vmem [shape: f32[2,128], index: 4, kind: output, shape index: {1}]
  %5 = xla_tuple %s3, %s4
  %s6 = sld [smem:[#allocation0]]
  $region34: #{forward.1} parent=0
    _
  %s8 = ssub.s32 1, %s6
  %s9 = scalar_select 0, %s8, %s6
  $region1: #{forward.1} parent=0
    #allocation2 [shape = 'u8[1032192]{0}', space=vmem, size = 0xfc000, scoped, tag = 'input window, operand 2, single buffered']
    #allocation3 [shape = 's32[1]{0}', space=sflag, size = 0x4, scoped, tag = 'scoped memory for forward.1']
    %10 = vsyncpa [#allocation3], 0
    // Predicated region
    $region2: #{forward.1} parent=1 // pred_check
      _
    $region3: #{forward.1} parent=1 // pred_check_branch
      %12 = sbr.rel (0) target = $region5
    $region4: #{forward.1} parent=1 // pred_region
      _
    $region5: #{forward.1} parent=1 // pred_fallthru
      _
    // Predicated region
    $region6: #{forward.1} parent=1 // pred_check
      _
    $region7: #{forward.1} parent=1 // pred_check_branch
      %14 = sbr.rel (0) target = $region9
    $region8: #{forward.1} parent=1 // pred_region
      _
    $region9: #{forward.1} parent=1 // pred_fallthru
      _
    // Predicated region
    $region10: #{forward.1} parent=1 // pred_check
      _
    $region11: #{forward.1} parent=1 // pred_check_branch
      %16 = sbr.rel (0) target = $region13
    $region12: #{forward.1} parent=1 // pred_region
      %18 = vsyncadd [#allocation3], 0
      %s19 = sshll.u32 %s2, 4
      %s20 = int_to_ptr.hbm [resolvable:$true] %s19
      %s21 = sshll.u32 [#allocation2], 4
      %s22 = int_to_ptr.vmem [resolvable:$true] %s21
      %27 = dma.hbm_to_vmem [thread:$0]  %s20, 32256, %s22, [#allocation3], 4608, 4608, 288
    $region13: #{forward.1} parent=1 // pred_fallthru
      _
    // Predicated region
    $region14: #{forward.1} parent=1 // pred_check
      _
    $region15: #{forward.1} parent=1 // pred_check_branch
      %29 = sbr.rel (0) target = $region17
    $region16: #{forward.1} parent=1 // pred_region
      %31 = dma.done [#allocation3], 32256
    $region17: #{forward.1} parent=1 // pred_fallthru
      _
    %v32 = vld [vmem:[%s0] sm:$0x3]
    %v33 = vld [vmem:[%s0 + $0x2] sm:$0x3]
    %v34 = vld [vmem:[%s0 + $0x4] sm:$0x3]
    %v35 = vld [vmem:[%s0 + $0x6] sm:$0x3]
    %v36 = vld [vmem:[%s1] sm:$0xff]
    %v37 = vld [vmem:[%s1 + $0x10] sm:$0xff]
    %v38 = vld [vmem:[%s1 + $0x8] sm:$0xff]
    %v39 = vld [vmem:[%s1 + $0x18] sm:$0xff]
    %v40 = vld [vmem:[#allocation2 + $0xe8] sm:$0xff]
    %v41 = vld [vmem:[#allocation2 + $0x208] sm:$0xff]
    %v42 = vld [vmem:[#allocation2 + $0xf0] sm:$0xff]
    %v43 = vld [vmem:[#allocation2 + $0xf8] sm:$0xff]
    %v44 = vld [vmem:[#allocation2 + $0x218] sm:$0xff]
    %v45 = vld [vmem:[#allocation2 + $0x100] sm:$0x3]
    %v46 = vld [vmem:[#allocation2 + $0x108] sm:$0xff]
    %v47 = vld [vmem:[#allocation2 + $0x228] sm:$0xff]
    %v48 = vld [vmem:[#allocation2 + $0x110] sm:$0xff]
    %v49 = vld [vmem:[#allocation2 + $0x230] sm:$0xff]
    %v50 = vld [vmem:[#allocation2 + $0x118] sm:$0xff]
    %v51 = vld [vmem:[#allocation2 + $0x238] sm:$0xff]
    %v52 = vld [vmem:[#allocation2] sm:$0xff]
    %v53 = vld [vmem:[#allocation2 + $0x120] sm:$0xff]
    %v54 = vld [vmem:[#allocation2 + $0x6c0] ss:$0 sm:$0xff]
    %vm55 = vcmask 130048
    %v57 = vsel %vm55, %v32, 0
    %59 = vmatpush.msra.mxu0 0.0
    %60 = vmatpush.msra.mxu0 0.0
    %61 = vmatpush.msra.mxu0 0.0
    %62 = vmatpush.msra.mxu0 0.0
    %63 = vmatpush.msra.mxu0 0.0
    %64 = vmatpush.msra.mxu0 0.0
    %65 = vmatpush.msra.mxu0 0.0
    %66 = vmatpush.msra.mxu0 0.0
    %67 = vmatpush.msra.mxu0 0.0
    %68 = vmatpush.msra.mxu0 0.0
    %69 = vmatpush.msra.mxu0 0.0
    %70 = vmatpush.msra.mxu0 0.0
    %71 = vmatpush.msra.mxu0 0.0
    %72 = vmatpush.msra.mxu0 0.0
    %73 = vmatpush.msra.mxu0 %v53
    %74 = vmatpush.msra.mxu0 %v52
    %75 = vmatmul.f32.gmra.mxu0 %v57
    %v76 = vpop.f32.mrf.mxu0
    %v77 = vadd.f32 %v54, %v76
    %78 = vdwg.mxu0
    %v79 = vmax.f32 %v77, 0.0
    %v80 = vld [vmem:[#allocation2 + $0x8] sm:$0xf]
    %v81 = vld [vmem:[#allocation2 + $0x6c8] ss:$0 sm:$0xff]
    %vm82 = vcmask 31744
    %v84 = vsel %vm82, %v33, 0
    %vm86 = vcmask 1043456
    %v88 = vsel %vm86, %v80, 0
    %90 = vmatpush.msra.mxu0 0.0
    %91 = vmatpush.msra.mxu0 0.0
    %92 = vmatpush.msra.mxu0 0.0
    %93 = vmatpush.msra.mxu0 0.0
    %94 = vmatpush.msra.mxu0 0.0
    %95 = vmatpush.msra.mxu0 0.0
    %96 = vmatpush.msra.mxu0 0.0
    %97 = vmatpush.msra.mxu0 0.0
    %98 = vmatpush.msra.mxu0 0.0
    %99 = vmatpush.msra.mxu0 0.0
    %100 = vmatpush.msra.mxu0 0.0
    %101 = vmatpush.msra.mxu0 0.0
    %102 = vmatpush.msra.mxu0 0.0
    %103 = vmatpush.msra.mxu0 0.0
    %104 = vmatpush.msra.mxu0 0.0
    %105 = vmatpush.msra.mxu0 %v88
    %106 = vmatmul.f32.gmra.mxu0 %v84
    %v107 = vpop.f32.mrf.mxu0
    %v108 = vadd.f32 %v81, %v107
    %109 = vdwg.mxu0
    %v110 = vmax.f32 %v108, 0.0
    %112 = vrot.lane.b32.xlu0 %v110, 32
    %v113 = vpop.permute.xlu0 %112
    %vm115 = vcmask 261120
    %v116 = vsel %vm115, %v79, %v113
    %v117 = vld [vmem:[#allocation2 + $0x10] sm:$0xff]
    %v118 = vld [vmem:[#allocation2 + $0x18] sm:$0xff]
    %v119 = vld [vmem:[#allocation2 + $0x20] sm:$0xff]
    %v120 = vld [vmem:[#allocation2 + $0x28] sm:$0xff]
    %v121 = vld [vmem:[#allocation2 + $0x130] sm:$0xff]
    %v122 = vld [vmem:[#allocation2 + $0x138] sm:$0xff]
    %v123 = vld [vmem:[#allocation2 + $0x140] sm:$0xff]
    %v124 = vld [vmem:[#allocation2 + $0x148] sm:$0xff]
    %v125 = vld [vmem:[#allocation2 + $0x250] sm:$0xff]
    %v126 = vld [vmem:[#allocation2 + $0x258] sm:$0xff]
    %v127 = vld [vmem:[#allocation2 + $0x260] sm:$0xff]
    %v128 = vld [vmem:[#allocation2 + $0x268] sm:$0xff]
    %v129 = vld [vmem:[#allocation2 + $0x370] sm:$0xff]
    %v130 = vld [vmem:[#allocation2 + $0x378] sm:$0xff]
    %v131 = vld [vmem:[#allocation2 + $0x380] sm:$0xff]
    %v132 = vld [vmem:[#allocation2 + $0x388] sm:$0xff]
    %v133 = vld [vmem:[#allocation2 + $0x490] sm:$0xff]
    %v134 = vld [vmem:[#allocation2 + $0x498] sm:$0xff]
    %v135 = vld [vmem:[#allocation2 + $0x4a0] sm:$0xff]
    %v136 = vld [vmem:[#allocation2 + $0x4a8] sm:$0xff]
    %s137 = scalar_lea.vmem [#allocation2], 1744
    %v138 = vld [vmem:[%s137] ss:$8 sm:$0xf]
    %v140 = vperm.slane %v138, 0
    %v141 = vperm.slane %v138, 1
    %v142 = vperm.slane %v138, 2
    %v143 = vperm.slane %v138, 3
    %vm148 = vcmask 326656
    %v150 = vsel %vm148, %v116, 0
    %152 = vmatpush.msra.mxu0 0.0
    %153 = vmatpush.msra.mxu0 0.0
    %154 = vmatpush.msra.mxu0 0.0
    %155 = vmatpush.msra.mxu0 0.0
    %156 = vmatpush.msra.mxu0 0.0
    %157 = vmatpush.msra.mxu0 0.0
    %158 = vmatpush.msra.mxu0 0.0
    %159 = vmatpush.msra.mxu0 0.0
    %160 = vmatpush.msra.mxu0 0.0
    %161 = vmatpush.msra.mxu0 0.0
    %162 = vmatpush.msra.mxu0 0.0
    %163 = vmatpush.msra.mxu0 %v133
    %164 = vmatpush.msra.mxu0 %v129
    %165 = vmatpush.msra.mxu0 %v125
    %166 = vmatpush.msra.mxu0 %v121
    %167 = vmatpush.msra.mxu0 %v117
    %168 = vmatmul.f32.gmra.mxu0 %v150
    %v169 = vpop.f32.mrf.mxu0
    %v170 = vadd.f32 %v140, %v169
    %171 = vdwg.mxu0
    %172 = vmatpush.msra.mxu0 0.0
    %173 = vmatpush.msra.mxu0 0.0
    %174 = vmatpush.msra.mxu0 0.0
    %175 = vmatpush.msra.mxu0 0.0
    %176 = vmatpush.msra.mxu0 0.0
    %177 = vmatpush.msra.mxu0 0.0
    %178 = vmatpush.msra.mxu0 0.0
    %179 = vmatpush.msra.mxu0 0.0
    %180 = vmatpush.msra.mxu0 0.0
    %181 = vmatpush.msra.mxu0 0.0
    %182 = vmatpush.msra.mxu0 0.0
    %183 = vmatpush.msra.mxu0 %v134
    %184 = vmatpush.msra.mxu0 %v130
    %185 = vmatpush.msra.mxu0 %v126
    %186 = vmatpush.msra.mxu0 %v122
    %187 = vmatpush.msra.mxu0 %v118
    %188 = vmatmul.f32.gmra.mxu0 %v150
    %v189 = vpop.f32.mrf.mxu0
    %v190 = vadd.f32 %v141, %v189
    %191 = vdwg.mxu0
    %192 = vmatpush.msra.mxu0 0.0
    %193 = vmatpush.msra.mxu0 0.0
    %194 = vmatpush.msra.mxu0 0.0
    %195 = vmatpush.msra.mxu0 0.0
    %196 = vmatpush.msra.mxu0 0.0
    %197 = vmatpush.msra.mxu0 0.0
    %198 = vmatpush.msra.mxu0 0.0
    %199 = vmatpush.msra.mxu0 0.0
    %200 = vmatpush.msra.mxu0 0.0
    %201 = vmatpush.msra.mxu0 0.0
    %202 = vmatpush.msra.mxu0 0.0
    %203 = vmatpush.msra.mxu0 %v135
    %204 = vmatpush.msra.mxu0 %v131
    %205 = vmatpush.msra.mxu0 %v127
    %206 = vmatpush.msra.mxu0 %v123
    %207 = vmatpush.msra.mxu0 %v119
    %208 = vmatmul.f32.gmra.mxu0 %v150
    %v209 = vpop.f32.mrf.mxu0
    %v210 = vadd.f32 %v142, %v209
    %211 = vdwg.mxu0
    %212 = vmatpush.msra.mxu0 0.0
    %213 = vmatpush.msra.mxu0 0.0
    %214 = vmatpush.msra.mxu0 0.0
    %215 = vmatpush.msra.mxu0 0.0
    %216 = vmatpush.msra.mxu0 0.0
    %217 = vmatpush.msra.mxu0 0.0
    %218 = vmatpush.msra.mxu0 0.0
    %219 = vmatpush.msra.mxu0 0.0
    %220 = vmatpush.msra.mxu0 0.0
    %221 = vmatpush.msra.mxu0 0.0
    %222 = vmatpush.msra.mxu0 0.0
    %223 = vmatpush.msra.mxu0 %v136
    %224 = vmatpush.msra.mxu0 %v132
    %225 = vmatpush.msra.mxu0 %v128
    %226 = vmatpush.msra.mxu0 %v124
    %227 = vmatpush.msra.mxu0 %v120
    %228 = vmatmul.f32.gmra.mxu0 %v150
    %v229 = vpop.f32.mrf.mxu0
    %v230 = vadd.f32 %v143, %v229
    %231 = vdwg.mxu0
    %vm232 = vcmask 15360
    %v234 = vsel %vm232, %v40, 0
    %v237 = vsel %vm232, %v41, 0
    %vm239 = vcmask 1041408
    %v241 = vsel %vm239, %v170, 0
    %v244 = vsel %vm239, %v190, 0
    %v247 = vsel %vm239, %v210, 0
    %v250 = vsel %vm239, %v230, 0
    %252 = vmatpush.msra.mxu0 0.0
    %253 = vmatpush.msra.mxu0 0.0
    %254 = vmatpush.msra.mxu0 0.0
    %255 = vmatpush.msra.mxu0 0.0
    %256 = vmatpush.msra.mxu0 0.0
    %257 = vmatpush.msra.mxu0 0.0
    %258 = vmatpush.msra.mxu0 0.0
    %259 = vmatpush.msra.mxu0 0.0
    %260 = vmatpush.msra.mxu0 0.0
    %261 = vmatpush.msra.mxu0 0.0
    %262 = vmatpush.msra.mxu0 0.0
    %263 = vmatpush.msra.mxu0 0.0
    %264 = vmatpush.msra.mxu0 0.0
    %265 = vmatpush.msra.mxu0 0.0
    %266 = vmatpush.msra.mxu0 0.0
    %267 = vmatpush.msra.mxu0 %v241
    %268 = vmatmul.f32.gmra.mxu0 %v234
    %v269 = vpop.f32.mrf.mxu0
    %v270 = vadd.f32 0.0, %v269
    %271 = vmatmul.f32.gmra.mxu0 %v237
    %v272 = vpop.f32.mrf.mxu0
    %v273 = vadd.f32 0.0, %v272
    %274 = vdwg.mxu0
    %275 = vmatpush.msra.mxu0 0.0
    %276 = vmatpush.msra.mxu0 0.0
    %277 = vmatpush.msra.mxu0 0.0
    %278 = vmatpush.msra.mxu0 0.0
    %279 = vmatpush.msra.mxu0 0.0
    %280 = vmatpush.msra.mxu0 0.0
    %281 = vmatpush.msra.mxu0 0.0
    %282 = vmatpush.msra.mxu0 0.0
    %283 = vmatpush.msra.mxu0 0.0
    %284 = vmatpush.msra.mxu0 0.0
    %285 = vmatpush.msra.mxu0 0.0
    %286 = vmatpush.msra.mxu0 0.0
    %287 = vmatpush.msra.mxu0 0.0
    %288 = vmatpush.msra.mxu0 0.0
    %289 = vmatpush.msra.mxu0 0.0
    %290 = vmatpush.msra.mxu0 %v244
    %291 = vmatmul.f32.gmra.mxu0 %v234
    %v292 = vpop.f32.mrf.mxu0
    %v293 = vadd.f32 0.0, %v292
    %294 = vmatmul.f32.gmra.mxu0 %v237
    %v295 = vpop.f32.mrf.mxu0
    %v296 = vadd.f32 0.0, %v295
    %297 = vdwg.mxu0
    %298 = vmatpush.msra.mxu0 0.0
    %299 = vmatpush.msra.mxu0 0.0
    %300 = vmatpush.msra.mxu0 0.0
    %301 = vmatpush.msra.mxu0 0.0
    %302 = vmatpush.msra.mxu0 0.0
    %303 = vmatpush.msra.mxu0 0.0
    %304 = vmatpush.msra.mxu0 0.0
    %305 = vmatpush.msra.mxu0 0.0
    %306 = vmatpush.msra.mxu0 0.0
    %307 = vmatpush.msra.mxu0 0.0
    %308 = vmatpush.msra.mxu0 0.0
    %309 = vmatpush.msra.mxu0 0.0
    %310 = vmatpush.msra.mxu0 0.0
    %311 = vmatpush.msra.mxu0 0.0
    %312 = vmatpush.msra.mxu0 0.0
    %313 = vmatpush.msra.mxu0 %v247
    %314 = vmatmul.f32.gmra.mxu0 %v234
    %v315 = vpop.f32.mrf.mxu0
    %v316 = vadd.f32 0.0, %v315
    %317 = vmatmul.f32.gmra.mxu0 %v237
    %v318 = vpop.f32.mrf.mxu0
    %v319 = vadd.f32 0.0, %v318
    %320 = vdwg.mxu0
    %321 = vmatpush.msra.mxu0 0.0
    %322 = vmatpush.msra.mxu0 0.0
    %323 = vmatpush.msra.mxu0 0.0
    %324 = vmatpush.msra.mxu0 0.0
    %325 = vmatpush.msra.mxu0 0.0
    %326 = vmatpush.msra.mxu0 0.0
    %327 = vmatpush.msra.mxu0 0.0
    %328 = vmatpush.msra.mxu0 0.0
    %329 = vmatpush.msra.mxu0 0.0
    %330 = vmatpush.msra.mxu0 0.0
    %331 = vmatpush.msra.mxu0 0.0
    %332 = vmatpush.msra.mxu0 0.0
    %333 = vmatpush.msra.mxu0 0.0
    %334 = vmatpush.msra.mxu0 0.0
    %335 = vmatpush.msra.mxu0 0.0
    %336 = vmatpush.msra.mxu0 %v250
    %337 = vmatmul.f32.gmra.mxu0 %v234
    %v338 = vpop.f32.mrf.mxu0
    %v339 = vadd.f32 0.0, %v338
    %340 = vmatmul.f32.gmra.mxu0 %v237
    %v341 = vpop.f32.mrf.mxu0
    %v342 = vadd.f32 0.0, %v341
    %343 = vdwg.mxu0
    %vm344 = vcmask 58368
    %v345 = vsel %vm344, %v34, -inf
    %346 = vmax.xlane.f32.xlu0 %v345
    %v347 = vpop.xlane.xlu0 %346
    %v348 = vsub.f32 %v34, %v347
    %v349 = vmul.f32 %v348, 1.442695
    %v350 = vpow.pop %v349
    %v351 = vsel %vm344, %v350, 0.0
    %352 = vadd.xlane.f32.xlu0 %v351
    %v353 = vpop.xlane.xlu0 %352
    %v354 = vrcp.pop %v353
    %v355 = vmul.f32 %v353, %v354
    %v356 = vsub.f32 1.0, %v355
    %v357 = vmul.f32 %v354, %v356
    %v358 = vadd.f32 %v354, %v357
    %vm359 = vweird.f32 %v353
    %vm360 = vweird.f32 %v354
    %vm361 = vmor %vm359, %vm360
    %v362 = vsel %vm361, %v354, %v358
    %v363 = vand.u32 2147483647, %v353
    %vm364 = vcmp.eq.f32.partialorder %v363, 8.507059e+37
    %v365 = vand.u32 %v353, 2147483648
    %v366 = vor.u32 1.1754944e-38, %v365
    %v367 = vsel %vm364, %v366, %v362
    %v368 = vmul.f32 %v350, %v367
    %vm369 = vcmask 64512
    %v371 = vsel %vm369, %v368, 0
    %373 = vmatpush.msra.mxu0 0.0
    %374 = vmatpush.msra.mxu0 0.0
    %375 = vmatpush.msra.mxu0 0.0
    %376 = vmatpush.msra.mxu0 0.0
    %377 = vmatpush.msra.mxu0 0.0
    %378 = vmatpush.msra.mxu0 0.0
    %379 = vmatpush.msra.mxu0 0.0
    %380 = vmatpush.msra.mxu0 0.0
    %381 = vmatpush.msra.mxu0 0.0
    %382 = vmatpush.msra.mxu0 0.0
    %383 = vmatpush.msra.mxu0 0.0
    %384 = vmatpush.msra.mxu0 0.0
    %385 = vmatpush.msra.mxu0 0.0
    %386 = vmatpush.msra.mxu0 0.0
    %387 = vmatpush.msra.mxu0 0.0
    %388 = vmatpush.msra.mxu0 %v42
    %389 = vmatmul.f32.gmra.mxu0 %v371
    %v390 = vpop.f32.mrf.mxu0
    %v391 = vadd.f32 0.0, %v390
    %392 = vdwg.mxu0
    %v394 = vsel %vm239, %v391, 0
    %396 = vmatpush.msra.mxu0 0.0
    %397 = vmatpush.msra.mxu0 0.0
    %398 = vmatpush.msra.mxu0 0.0
    %399 = vmatpush.msra.mxu0 0.0
    %400 = vmatpush.msra.mxu0 0.0
    %401 = vmatpush.msra.mxu0 0.0
    %402 = vmatpush.msra.mxu0 0.0
    %403 = vmatpush.msra.mxu0 0.0
    %404 = vmatpush.msra.mxu0 0.0
    %405 = vmatpush.msra.mxu0 0.0
    %406 = vmatpush.msra.mxu0 0.0
    %407 = vmatpush.msra.mxu0 0.0
    %408 = vmatpush.msra.mxu0 0.0
    %409 = vmatpush.msra.mxu0 0.0
    %410 = vmatpush.msra.mxu0 0.0
    %411 = vmatpush.msra.mxu0 %v394
    %412 = vmatmul.f32.gmra.mxu0 %v234
    %v413 = vpop.f32.mrf.mxu0
    %v414 = vadd.f32 0.0, %v413
    %415 = vmatmul.f32.gmra.mxu0 %v237
    %v416 = vpop.f32.mrf.mxu0
    %v417 = vadd.f32 0.0, %v416
    %418 = vdwg.mxu0
    %v420 = vsel %vm239, %v35, 0
    %422 = vmatpush.msra.mxu0 0.0
    %423 = vmatpush.msra.mxu0 0.0
    %424 = vmatpush.msra.mxu0 0.0
    %425 = vmatpush.msra.mxu0 0.0
    %426 = vmatpush.msra.mxu0 0.0
    %427 = vmatpush.msra.mxu0 0.0
    %428 = vmatpush.msra.mxu0 0.0
    %429 = vmatpush.msra.mxu0 0.0
    %430 = vmatpush.msra.mxu0 0.0
    %431 = vmatpush.msra.mxu0 0.0
    %432 = vmatpush.msra.mxu0 0.0
    %433 = vmatpush.msra.mxu0 0.0
    %434 = vmatpush.msra.mxu0 0.0
    %435 = vmatpush.msra.mxu0 0.0
    %436 = vmatpush.msra.mxu0 0.0
    %437 = vmatpush.msra.mxu0 %v420
    %438 = vmatmul.f32.gmra.mxu0 %v234
    %v439 = vpop.f32.mrf.mxu0
    %v440 = vadd.f32 %v46, %v439
    %441 = vmatmul.f32.gmra.mxu0 %v237
    %v442 = vpop.f32.mrf.mxu0
    %v443 = vadd.f32 %v47, %v442
    %444 = vdwg.mxu0
    %v445 = vmul.f32 %v440, 0.125
    %v446 = vmul.f32 %v443, 0.125
    %448 = vset.pattern.permute.xlu0 0
    %449 = vperm.xlu0 %448, %v445
    %v450 = vpop.permute.xlu0 %449
    %453 = vset.pattern.permute.xlu0 0
    %454 = vperm.xlu0 %453, %v446
    %v455 = vpop.permute.xlu0 %454
    %vm457 = vcmp.lt.f32.partialorder %v414, %v450
    %vm458 = vcmp.lt.f32.partialorder %v417, %v455
    %v459 = vsel %vm457, 1, 0
    %v460 = vsel %vm458, 1, 0
    %v461 = vcvt.s32.f32 %v459
    %v462 = vcvt.s32.f32 %v460
    %v463 = vsel %vm369, %v461, 0.0
    %464 = vadd.xlane.f32.xlu0 %v463
    %v465 = vpop.xlane.xlu0 %464
    %v466 = vsel %vm369, %v462, 0.0
    %467 = vadd.xlane.f32.xlu0 %v466
    %v468 = vpop.xlane.xlu0 %467
    %v469 = vmin.f32 %v465, 7.0
    %v470 = vmin.f32 %v468, 7.0
    %v471 = vadd.f32 %v48, %v469
    %v472 = vadd.f32 %v49, %v470
    %474 = vset.pattern.permute.xlu0 0
    %475 = vperm.xlu0 %474, %v471
    %v476 = vpop.permute.xlu0 %475
    %479 = vset.pattern.permute.xlu0 0
    %480 = vperm.xlu0 %479, %v472
    %v481 = vpop.permute.xlu0 %480
    %v483 = vsub.f32 %v50, %v476
    %v484 = vsub.f32 %v51, %v481
    %v485 = vand.u32 2147483647, %v483
    %v486 = vand.u32 2147483647, %v484
    %vm487 = vcmp.lt.f32.partialorder %v485, 0.5
    %vm488 = vcmp.lt.f32.partialorder %v486, 0.5
    %v489 = vsel %vm487, 1, 0
    %v490 = vsel %vm488, 1, 0
    %v491 = vcvt.s32.f32 %v489
    %v492 = vcvt.s32.f32 %v490
    %v494 = vsel %vm55, %v491, 0
    %v497 = vsel %vm55, %v492, 0
    %499 = vmatpush.msra.mxu0 0.0
    %500 = vmatpush.msra.mxu0 0.0
    %501 = vmatpush.msra.mxu0 0.0
    %502 = vmatpush.msra.mxu0 0.0
    %503 = vmatpush.msra.mxu0 0.0
    %504 = vmatpush.msra.mxu0 0.0
    %505 = vmatpush.msra.mxu0 0.0
    %506 = vmatpush.msra.mxu0 0.0
    %507 = vmatpush.msra.mxu0 0.0
    %508 = vmatpush.msra.mxu0 0.0
    %509 = vmatpush.msra.mxu0 0.0
    %510 = vmatpush.msra.mxu0 0.0
    %511 = vmatpush.msra.mxu0 0.0
    %512 = vmatpush.msra.mxu0 0.0
    %513 = vmatpush.msra.mxu0 %v37
    %514 = vmatpush.msra.mxu0 %v36
    %515 = vmatmul.f32.gmra.mxu0 %v494
    %v516 = vpop.f32.mrf.mxu0
    %v517 = vadd.f32 0.0, %v516
    %518 = vmatmul.f32.gmra.mxu0 %v497
    %v519 = vpop.f32.mrf.mxu0
    %v520 = vadd.f32 0.0, %v519
    %521 = vdwg.mxu0
    %v522 = vld [vmem:[#allocation2 + $0x30] sm:$0xff]
    %v523 = vld [vmem:[#allocation2 + $0x38] sm:$0xff]
    %v524 = vld [vmem:[#allocation2 + $0x40] sm:$0xff]
    %v525 = vld [vmem:[#allocation2 + $0x150] sm:$0xff]
    %v526 = vld [vmem:[#allocation2 + $0x158] sm:$0xff]
    %v527 = vld [vmem:[#allocation2 + $0x160] sm:$0xff]
    %v528 = vld [vmem:[#allocation2 + $0x270] sm:$0xff]
    %v529 = vld [vmem:[#allocation2 + $0x278] sm:$0xff]
    %v530 = vld [vmem:[#allocation2 + $0x280] sm:$0xff]
    %v531 = vld [vmem:[#allocation2 + $0x390] sm:$0xff]
    %v532 = vld [vmem:[#allocation2 + $0x398] sm:$0xff]
    %v533 = vld [vmem:[#allocation2 + $0x3a0] sm:$0xff]
    %v535 = vsel %vm115, %v517, 0
    %v538 = vsel %vm115, %v520, 0
    %540 = vmatpush.msra.mxu0 0.0
    %541 = vmatpush.msra.mxu0 0.0
    %542 = vmatpush.msra.mxu0 0.0
    %543 = vmatpush.msra.mxu0 0.0
    %544 = vmatpush.msra.mxu0 0.0
    %545 = vmatpush.msra.mxu0 0.0
    %546 = vmatpush.msra.mxu0 0.0
    %547 = vmatpush.msra.mxu0 0.0
    %548 = vmatpush.msra.mxu0 0.0
    %549 = vmatpush.msra.mxu0 0.0
    %550 = vmatpush.msra.mxu0 0.0
    %551 = vmatpush.msra.mxu0 0.0
    %552 = vmatpush.msra.mxu0 %v531
    %553 = vmatpush.msra.mxu0 %v528
    %554 = vmatpush.msra.mxu0 %v525
    %555 = vmatpush.msra.mxu0 %v522
    %556 = vmatmul.f32.gmra.mxu0 %v535
    %v557 = vpop.f32.mrf.mxu0
    %v558 = vadd.f32 0.0, %v557
    %559 = vmatmul.f32.gmra.mxu0 %v538
    %v560 = vpop.f32.mrf.mxu0
    %v561 = vadd.f32 0.0, %v560
    %562 = vdwg.mxu0
    %563 = vmatpush.msra.mxu0 0.0
    %564 = vmatpush.msra.mxu0 0.0
    %565 = vmatpush.msra.mxu0 0.0
    %566 = vmatpush.msra.mxu0 0.0
    %567 = vmatpush.msra.mxu0 0.0
    %568 = vmatpush.msra.mxu0 0.0
    %569 = vmatpush.msra.mxu0 0.0
    %570 = vmatpush.msra.mxu0 0.0
    %571 = vmatpush.msra.mxu0 0.0
    %572 = vmatpush.msra.mxu0 0.0
    %573 = vmatpush.msra.mxu0 0.0
    %574 = vmatpush.msra.mxu0 0.0
    %575 = vmatpush.msra.mxu0 %v532
    %576 = vmatpush.msra.mxu0 %v529
    %577 = vmatpush.msra.mxu0 %v526
    %578 = vmatpush.msra.mxu0 %v523
    %579 = vmatmul.f32.gmra.mxu0 %v535
    %v580 = vpop.f32.mrf.mxu0
    %v581 = vadd.f32 0.0, %v580
    %582 = vmatmul.f32.gmra.mxu0 %v538
    %v583 = vpop.f32.mrf.mxu0
    %v584 = vadd.f32 0.0, %v583
    %585 = vdwg.mxu0
    %586 = vmatpush.msra.mxu0 0.0
    %587 = vmatpush.msra.mxu0 0.0
    %588 = vmatpush.msra.mxu0 0.0
    %589 = vmatpush.msra.mxu0 0.0
    %590 = vmatpush.msra.mxu0 0.0
    %591 = vmatpush.msra.mxu0 0.0
    %592 = vmatpush.msra.mxu0 0.0
    %593 = vmatpush.msra.mxu0 0.0
    %594 = vmatpush.msra.mxu0 0.0
    %595 = vmatpush.msra.mxu0 0.0
    %596 = vmatpush.msra.mxu0 0.0
    %597 = vmatpush.msra.mxu0 0.0
    %598 = vmatpush.msra.mxu0 %v533
    %599 = vmatpush.msra.mxu0 %v530
    %600 = vmatpush.msra.mxu0 %v527
    %601 = vmatpush.msra.mxu0 %v524
    %602 = vmatmul.f32.gmra.mxu0 %v535
    %v603 = vpop.f32.mrf.mxu0
    %v604 = vadd.f32 0.0, %v603
    %605 = vmatmul.f32.gmra.mxu0 %v538
    %v606 = vpop.f32.mrf.mxu0
    %v607 = vadd.f32 0.0, %v606
    %608 = vdwg.mxu0
    %v609 = vadd.f32 %v558, %v270
    %v610 = vadd.f32 %v561, %v273
    %v611 = vmax.f32 %v609, 0.0
    %v612 = vmax.f32 %v610, 0.0
    %v613 = vadd.f32 %v581, %v316
    %v614 = vadd.f32 %v584, %v319
    %v615 = vmax.f32 %v613, 0.0
    %v616 = vmax.f32 %v614, 0.0
    %v617 = vld [vmem:[#allocation2 + $0x48] sm:$0xff]
    %v618 = vld [vmem:[#allocation2 + $0x50] sm:$0xff]
    %v619 = vld [vmem:[#allocation2 + $0x168] sm:$0xff]
    %v620 = vld [vmem:[#allocation2 + $0x170] sm:$0xff]
    %v621 = vld [vmem:[#allocation2 + $0x288] sm:$0xff]
    %v622 = vld [vmem:[#allocation2 + $0x290] sm:$0xff]
    %v623 = vld [vmem:[#allocation2 + $0x3a8] sm:$0xff]
    %v624 = vld [vmem:[#allocation2 + $0x3b0] sm:$0xff]
    %s625 = scalar_lea.vmem [#allocation2], 1800
    %v626 = vld [vmem:[%s625] ss:$8 sm:$0x3]
    %v628 = vperm.slane %v626, 0
    %v629 = vperm.slane %v626, 1
    %v633 = vsel %vm115, %v611, 0
    %v636 = vsel %vm115, %v612, 0
    %638 = vmatpush.msra.mxu0 0.0
    %639 = vmatpush.msra.mxu0 0.0
    %640 = vmatpush.msra.mxu0 0.0
    %641 = vmatpush.msra.mxu0 0.0
    %642 = vmatpush.msra.mxu0 0.0
    %643 = vmatpush.msra.mxu0 0.0
    %644 = vmatpush.msra.mxu0 0.0
    %645 = vmatpush.msra.mxu0 0.0
    %646 = vmatpush.msra.mxu0 0.0
    %647 = vmatpush.msra.mxu0 0.0
    %648 = vmatpush.msra.mxu0 0.0
    %649 = vmatpush.msra.mxu0 0.0
    %650 = vmatpush.msra.mxu0 %v623
    %651 = vmatpush.msra.mxu0 %v621
    %652 = vmatpush.msra.mxu0 %v619
    %653 = vmatpush.msra.mxu0 %v617
    %654 = vmatmul.f32.gmra.mxu0 %v633
    %v655 = vpop.f32.mrf.mxu0
    %v656 = vadd.f32 %v628, %v655
    %657 = vmatmul.f32.gmra.mxu0 %v636
    %v658 = vpop.f32.mrf.mxu0
    %v659 = vadd.f32 %v628, %v658
    %660 = vdwg.mxu0
    %661 = vmatpush.msra.mxu0 0.0
    %662 = vmatpush.msra.mxu0 0.0
    %663 = vmatpush.msra.mxu0 0.0
    %664 = vmatpush.msra.mxu0 0.0
    %665 = vmatpush.msra.mxu0 0.0
    %666 = vmatpush.msra.mxu0 0.0
    %667 = vmatpush.msra.mxu0 0.0
    %668 = vmatpush.msra.mxu0 0.0
    %669 = vmatpush.msra.mxu0 0.0
    %670 = vmatpush.msra.mxu0 0.0
    %671 = vmatpush.msra.mxu0 0.0
    %672 = vmatpush.msra.mxu0 0.0
    %673 = vmatpush.msra.mxu0 %v624
    %674 = vmatpush.msra.mxu0 %v622
    %675 = vmatpush.msra.mxu0 %v620
    %676 = vmatpush.msra.mxu0 %v618
    %677 = vmatmul.f32.gmra.mxu0 %v633
    %v678 = vpop.f32.mrf.mxu0
    %v679 = vadd.f32 %v629, %v678
    %680 = vmatmul.f32.gmra.mxu0 %v636
    %v681 = vpop.f32.mrf.mxu0
    %v682 = vadd.f32 %v629, %v681
    %683 = vdwg.mxu0
    %v684 = vand.u32 2147483647, %v679
    %v685 = vand.u32 2147483647, %v682
    %v686 = vsub.f32 0.0, %v684
    %v687 = vsub.f32 0.0, %v685
    %v688 = vmul.f32 %v686, 1.442695
    %v689 = vpow.pop %v688
    %v690 = vmul.f32 %v687, 1.442695
    %v691 = vpow.pop %v690
    %v692 = vadd.f32 %v689, 1.0
    %v693 = vlog2.pop %v692
    %v694 = vmul.f32 %v693, 0.6931472
    %v695 = vmul.f32 -0.5, %v689
    %v696 = vadd.f32 %v695, 1.0
    %v697 = vmul.f32 %v696, %v689
    %v698 = vand.u32 2147483647, %v689
    %vm699 = vcmp.lt.f32.partialorder %v698, 0.0004427343
    %v700 = vsel %vm699, %v697, %v694
    %v701 = vadd.f32 %v691, 1.0
    %v702 = vlog2.pop %v701
    %v703 = vmul.f32 %v702, 0.6931472
    %v704 = vmul.f32 -0.5, %v691
    %v705 = vadd.f32 %v704, 1.0
    %v706 = vmul.f32 %v705, %v691
    %v707 = vand.u32 2147483647, %v691
    %vm708 = vcmp.lt.f32.partialorder %v707, 0.0004427343
    %v709 = vsel %vm708, %v706, %v703
    %v710 = vmax.f32 %v679, 0.0
    %v711 = vmax.f32 %v682, 0.0
    %v712 = vadd.f32 %v700, %v710
    %v713 = vadd.f32 %v709, %v711
    %v714 = vadd.f32 %v712, 0.001
    %v715 = vadd.f32 %v713, 0.001
    %v716 = vmul.f32 %v714, %v38
    %v717 = vmul.f32 %v715, %v39
    %v718 = vadd.f32 %v656, %v716
    %v719 = vadd.f32 %v659, %v717
    %v720 = vld [vmem:[#allocation2 + $0x58] sm:$0xff]
    %v721 = vld [vmem:[#allocation2 + $0x178] sm:$0xff]
    %v722 = vld [vmem:[#allocation2 + $0x718] ss:$0 sm:$0xff]
    %v724 = vsel %vm55, %v718, 0
    %v727 = vsel %vm55, %v719, 0
    %729 = vmatpush.msra.mxu0 0.0
    %730 = vmatpush.msra.mxu0 0.0
    %731 = vmatpush.msra.mxu0 0.0
    %732 = vmatpush.msra.mxu0 0.0
    %733 = vmatpush.msra.mxu0 0.0
    %734 = vmatpush.msra.mxu0 0.0
    %735 = vmatpush.msra.mxu0 0.0
    %736 = vmatpush.msra.mxu0 0.0
    %737 = vmatpush.msra.mxu0 0.0
    %738 = vmatpush.msra.mxu0 0.0
    %739 = vmatpush.msra.mxu0 0.0
    %740 = vmatpush.msra.mxu0 0.0
    %741 = vmatpush.msra.mxu0 0.0
    %742 = vmatpush.msra.mxu0 0.0
    %743 = vmatpush.msra.mxu0 %v721
    %744 = vmatpush.msra.mxu0 %v720
    %745 = vmatmul.f32.gmra.mxu0 %v724
    %v746 = vpop.f32.mrf.mxu0
    %v747 = vadd.f32 %v722, %v746
    %748 = vmatmul.f32.gmra.mxu0 %v727
    %v749 = vpop.f32.mrf.mxu0
    %v750 = vadd.f32 %v722, %v749
    %751 = vdwg.mxu0
    %v752 = vmax.f32 %v747, 0.0
    %v753 = vmax.f32 %v750, 0.0
    %v754 = vld [vmem:[#allocation2 + $0x60] sm:$0xff]
    %v755 = vld [vmem:[#allocation2 + $0x180] sm:$0xff]
    %v757 = vsel %vm55, %v752, 0
    %v760 = vsel %vm55, %v753, 0
    %762 = vmatpush.msra.mxu0 0.0
    %763 = vmatpush.msra.mxu0 0.0
    %764 = vmatpush.msra.mxu0 0.0
    %765 = vmatpush.msra.mxu0 0.0
    %766 = vmatpush.msra.mxu0 0.0
    %767 = vmatpush.msra.mxu0 0.0
    %768 = vmatpush.msra.mxu0 0.0
    %769 = vmatpush.msra.mxu0 0.0
    %770 = vmatpush.msra.mxu0 0.0
    %771 = vmatpush.msra.mxu0 0.0
    %772 = vmatpush.msra.mxu0 0.0
    %773 = vmatpush.msra.mxu0 0.0
    %774 = vmatpush.msra.mxu0 0.0
    %775 = vmatpush.msra.mxu0 0.0
    %776 = vmatpush.msra.mxu0 %v755
    %777 = vmatpush.msra.mxu0 %v754
    %778 = vmatmul.f32.gmra.mxu0 %v757
    %v779 = vpop.f32.mrf.mxu0
    %v780 = vadd.f32 0.0, %v779
    %781 = vmatmul.f32.gmra.mxu0 %v760
    %v782 = vpop.f32.mrf.mxu0
    %v783 = vadd.f32 0.0, %v782
    %784 = vdwg.mxu0
    %v785 = vadd.f32 %v604, %v780
    %v786 = vadd.f32 %v607, %v783
    %v787 = vadd.f32 %v785, %v293
    %v788 = vadd.f32 %v786, %v296
    %v789 = vtanh.pop %v787
    %v790 = vtanh.pop %v788
    %v791 = vld [vmem:[#allocation2 + $0x68] sm:$0xff]
    %v792 = vld [vmem:[#allocation2 + $0x70] sm:$0xff]
    %v793 = vld [vmem:[#allocation2 + $0x188] sm:$0xff]
    %v794 = vld [vmem:[#allocation2 + $0x190] sm:$0xff]
    %v795 = vld [vmem:[#allocation2 + $0x2a8] sm:$0xff]
    %v796 = vld [vmem:[#allocation2 + $0x2b0] sm:$0xff]
    %v797 = vld [vmem:[#allocation2 + $0x3c8] sm:$0xff]
    %v798 = vld [vmem:[#allocation2 + $0x3d0] sm:$0xff]
    %s799 = scalar_lea.vmem [#allocation2], 1832
    %v800 = vld [vmem:[%s799] ss:$8 sm:$0x3]
    %v802 = vperm.slane %v800, 0
    %v803 = vperm.slane %v800, 1
    %v807 = vsel %vm115, %v615, 0
    %v810 = vsel %vm115, %v616, 0
    %812 = vmatpush.msra.mxu0 0.0
    %813 = vmatpush.msra.mxu0 0.0
    %814 = vmatpush.msra.mxu0 0.0
    %815 = vmatpush.msra.mxu0 0.0
    %816 = vmatpush.msra.mxu0 0.0
    %817 = vmatpush.msra.mxu0 0.0
    %818 = vmatpush.msra.mxu0 0.0
    %819 = vmatpush.msra.mxu0 0.0
    %820 = vmatpush.msra.mxu0 0.0
    %821 = vmatpush.msra.mxu0 0.0
    %822 = vmatpush.msra.mxu0 0.0
    %823 = vmatpush.msra.mxu0 0.0
    %824 = vmatpush.msra.mxu0 %v797
    %825 = vmatpush.msra.mxu0 %v795
    %826 = vmatpush.msra.mxu0 %v793
    %827 = vmatpush.msra.mxu0 %v791
    %828 = vmatmul.f32.gmra.mxu0 %v807
    %v829 = vpop.f32.mrf.mxu0
    %v830 = vadd.f32 %v802, %v829
    %831 = vmatmul.f32.gmra.mxu0 %v810
    %v832 = vpop.f32.mrf.mxu0
    %v833 = vadd.f32 %v802, %v832
    %834 = vdwg.mxu0
    %835 = vmatpush.msra.mxu0 0.0
    %836 = vmatpush.msra.mxu0 0.0
    %837 = vmatpush.msra.mxu0 0.0
    %838 = vmatpush.msra.mxu0 0.0
    %839 = vmatpush.msra.mxu0 0.0
    %840 = vmatpush.msra.mxu0 0.0
    %841 = vmatpush.msra.mxu0 0.0
    %842 = vmatpush.msra.mxu0 0.0
    %843 = vmatpush.msra.mxu0 0.0
    %844 = vmatpush.msra.mxu0 0.0
    %845 = vmatpush.msra.mxu0 0.0
    %846 = vmatpush.msra.mxu0 0.0
    %847 = vmatpush.msra.mxu0 %v798
    %848 = vmatpush.msra.mxu0 %v796
    %849 = vmatpush.msra.mxu0 %v794
    %850 = vmatpush.msra.mxu0 %v792
    %851 = vmatmul.f32.gmra.mxu0 %v807
    %v852 = vpop.f32.mrf.mxu0
    %v853 = vadd.f32 %v803, %v852
    %854 = vmatmul.f32.gmra.mxu0 %v810
    %v855 = vpop.f32.mrf.mxu0
    %v856 = vadd.f32 %v803, %v855
    %857 = vdwg.mxu0
    %v858 = vand.u32 2147483647, %v853
    %v859 = vand.u32 2147483647, %v856
    %v860 = vsub.f32 0.0, %v858
    %v861 = vsub.f32 0.0, %v859
    %v862 = vmul.f32 %v860, 1.442695
    %v863 = vpow.pop %v862
    %v864 = vmul.f32 %v861, 1.442695
    %v865 = vpow.pop %v864
    %v866 = vadd.f32 %v863, 1.0
    %v867 = vlog2.pop %v866
    %v868 = vmul.f32 %v867, 0.6931472
    %v869 = vmul.f32 -0.5, %v863
    %v870 = vadd.f32 %v869, 1.0
    %v871 = vmul.f32 %v870, %v863
    %v872 = vand.u32 2147483647, %v863
    %vm873 = vcmp.lt.f32.partialorder %v872, 0.0004427343
    %v874 = vsel %vm873, %v871, %v868
    %v875 = vadd.f32 %v865, 1.0
    %v876 = vlog2.pop %v875
    %v877 = vmul.f32 %v876, 0.6931472
    %v878 = vmul.f32 -0.5, %v865
    %v879 = vadd.f32 %v878, 1.0
    %v880 = vmul.f32 %v879, %v865
    %v881 = vand.u32 2147483647, %v865
    %vm882 = vcmp.lt.f32.partialorder %v881, 0.0004427343
    %v883 = vsel %vm882, %v880, %v877
    %v884 = vmax.f32 %v853, 0.0
    %v885 = vmax.f32 %v856, 0.0
    %v886 = vadd.f32 %v874, %v884
    %v887 = vadd.f32 %v883, %v885
    %v888 = vadd.f32 %v886, 0.001
    %v889 = vadd.f32 %v887, 0.001
    %890 = vrot.lane.b32.xlu0 %v752, 32
    %v891 = vpop.permute.xlu0 %890
    %892 = vrot.lane.b32.xlu0 %v753, 32
    %v893 = vpop.permute.xlu0 %892
    %v896 = vsel %vm115, %v789, %v891
    %v897 = vsel %vm115, %v790, %v893
    %v898 = vld [vmem:[#allocation2 + $0x78] sm:$0xff]
    %v899 = vld [vmem:[#allocation2 + $0x198] sm:$0xff]
    %v900 = vld [vmem:[#allocation2 + $0x2b8] sm:$0xff]
    %v901 = vld [vmem:[#allocation2 + $0x3d8] sm:$0xff]
    %v902 = vld [vmem:[#allocation2 + $0x4f8] sm:$0xff]
    %v903 = vld [vmem:[#allocation2 + $0x618] sm:$0xff]
    %v904 = vld [vmem:[#allocation2 + $0x738] ss:$0 sm:$0xff]
    %vm905 = vcmask 392192
    %v907 = vsel %vm905, %v896, 0
    %v910 = vsel %vm905, %v897, 0
    %912 = vmatpush.msra.mxu0 0.0
    %913 = vmatpush.msra.mxu0 0.0
    %914 = vmatpush.msra.mxu0 0.0
    %915 = vmatpush.msra.mxu0 0.0
    %916 = vmatpush.msra.mxu0 0.0
    %917 = vmatpush.msra.mxu0 0.0
    %918 = vmatpush.msra.mxu0 0.0
    %919 = vmatpush.msra.mxu0 0.0
    %920 = vmatpush.msra.mxu0 0.0
    %921 = vmatpush.msra.mxu0 0.0
    %922 = vmatpush.msra.mxu0 %v903
    %923 = vmatpush.msra.mxu0 %v902
    %924 = vmatpush.msra.mxu0 %v901
    %925 = vmatpush.msra.mxu0 %v900
    %926 = vmatpush.msra.mxu0 %v899
    %927 = vmatpush.msra.mxu0 %v898
    %928 = vmatmul.f32.gmra.mxu0 %v907
    %v929 = vpop.f32.mrf.mxu0
    %v930 = vadd.f32 %v904, %v929
    %931 = vmatmul.f32.gmra.mxu0 %v910
    %v932 = vpop.f32.mrf.mxu0
    %v933 = vadd.f32 %v904, %v932
    %934 = vdwg.mxu0
    %v935 = vmax.f32 %v930, 0.0
    %v936 = vmax.f32 %v933, 0.0
    %v937 = vld [vmem:[#allocation2 + $0x80] sm:$0xff]
    %v938 = vld [vmem:[#allocation2 + $0x88] sm:$0xff]
    %v939 = vld [vmem:[#allocation2 + $0x1a0] sm:$0xff]
    %v940 = vld [vmem:[#allocation2 + $0x1a8] sm:$0xff]
    %v941 = vld [vmem:[#allocation2 + $0x2c0] sm:$0xff]
    %v942 = vld [vmem:[#allocation2 + $0x2c8] sm:$0xff]
    %v943 = vld [vmem:[#allocation2 + $0x3e0] sm:$0xff]
    %v944 = vld [vmem:[#allocation2 + $0x3e8] sm:$0xff]
    %s945 = scalar_lea.vmem [#allocation2], 1856
    %v946 = vld [vmem:[%s945] ss:$8 sm:$0x3]
    %v948 = vperm.slane %v946, 0
    %v949 = vperm.slane %v946, 1
    %v953 = vsel %vm115, %v935, 0
    %v956 = vsel %vm115, %v936, 0
    %958 = vmatpush.msra.mxu0 0.0
    %959 = vmatpush.msra.mxu0 0.0
    %960 = vmatpush.msra.mxu0 0.0
    %961 = vmatpush.msra.mxu0 0.0
    %962 = vmatpush.msra.mxu0 0.0
    %963 = vmatpush.msra.mxu0 0.0
    %964 = vmatpush.msra.mxu0 0.0
    %965 = vmatpush.msra.mxu0 0.0
    %966 = vmatpush.msra.mxu0 0.0
    %967 = vmatpush.msra.mxu0 0.0
    %968 = vmatpush.msra.mxu0 0.0
    %969 = vmatpush.msra.mxu0 0.0
    %970 = vmatpush.msra.mxu0 %v943
    %971 = vmatpush.msra.mxu0 %v941
    %972 = vmatpush.msra.mxu0 %v939
    %973 = vmatpush.msra.mxu0 %v937
    %974 = vmatmul.f32.gmra.mxu0 %v953
    %v975 = vpop.f32.mrf.mxu0
    %v976 = vadd.f32 %v948, %v975
    %977 = vmatmul.f32.gmra.mxu0 %v956
    %v978 = vpop.f32.mrf.mxu0
    %v979 = vadd.f32 %v948, %v978
    %980 = vdwg.mxu0
    %981 = vmatpush.msra.mxu0 0.0
    %982 = vmatpush.msra.mxu0 0.0
    %983 = vmatpush.msra.mxu0 0.0
    %984 = vmatpush.msra.mxu0 0.0
    %985 = vmatpush.msra.mxu0 0.0
    %986 = vmatpush.msra.mxu0 0.0
    %987 = vmatpush.msra.mxu0 0.0
    %988 = vmatpush.msra.mxu0 0.0
    %989 = vmatpush.msra.mxu0 0.0
    %990 = vmatpush.msra.mxu0 0.0
    %991 = vmatpush.msra.mxu0 0.0
    %992 = vmatpush.msra.mxu0 0.0
    %993 = vmatpush.msra.mxu0 %v944
    %994 = vmatpush.msra.mxu0 %v942
    %995 = vmatpush.msra.mxu0 %v940
    %996 = vmatpush.msra.mxu0 %v938
    %997 = vmatmul.f32.gmra.mxu0 %v953
    %v998 = vpop.f32.mrf.mxu0
    %v999 = vadd.f32 %v949, %v998
    %1000 = vmatmul.f32.gmra.mxu0 %v956
    %v1001 = vpop.f32.mrf.mxu0
    %v1002 = vadd.f32 %v949, %v1001
    %1003 = vdwg.mxu0
    %v1004 = vand.u32 2147483647, %v999
    %v1005 = vand.u32 2147483647, %v1002
    %v1006 = vsub.f32 0.0, %v1004
    %v1007 = vsub.f32 0.0, %v1005
    %v1008 = vmul.f32 %v1006, 1.442695
    %v1009 = vpow.pop %v1008
    %v1010 = vmul.f32 %v1007, 1.442695
    %v1011 = vpow.pop %v1010
    %v1012 = vadd.f32 %v1009, 1.0
    %v1013 = vlog2.pop %v1012
    %v1014 = vmul.f32 %v1013, 0.6931472
    %v1015 = vmul.f32 -0.5, %v1009
    %v1016 = vadd.f32 %v1015, 1.0
    %v1017 = vmul.f32 %v1016, %v1009
    %v1018 = vand.u32 2147483647, %v1009
    %vm1019 = vcmp.lt.f32.partialorder %v1018, 0.0004427343
    %v1020 = vsel %vm1019, %v1017, %v1014
    %v1021 = vadd.f32 %v1011, 1.0
    %v1022 = vlog2.pop %v1021
    %v1023 = vmul.f32 %v1022, 0.6931472
    %v1024 = vmul.f32 -0.5, %v1011
    %v1025 = vadd.f32 %v1024, 1.0
    %v1026 = vmul.f32 %v1025, %v1011
    %v1027 = vand.u32 2147483647, %v1011
    %vm1028 = vcmp.lt.f32.partialorder %v1027, 0.0004427343
    %v1029 = vsel %vm1028, %v1026, %v1023
    %v1030 = vmax.f32 %v999, 0.0
    %v1031 = vmax.f32 %v1002, 0.0
    %v1032 = vadd.f32 %v1020, %v1030
    %v1033 = vadd.f32 %v1029, %v1031
    %v1034 = vadd.f32 %v1032, 0.001
    %v1035 = vadd.f32 %v1033, 0.001
    %v1036 = vsub.f32 %v718, %v656
    %v1037 = vsub.f32 %v719, %v659
    %v1038 = vrcp.pop %v714
    %v1039 = vmul.f32 %v714, %v1038
    %v1040 = vsub.f32 1.0, %v1039
    %v1041 = vmul.f32 %v1038, %v1040
    %v1042 = vadd.f32 %v1038, %v1041
    %vm1043 = vweird.f32 %v714
    %vm1044 = vweird.f32 %v1038
    %vm1045 = vmor %vm1043, %vm1044
    %v1046 = vsel %vm1045, %v1038, %v1042
    %v1047 = vand.u32 2147483647, %v714
    %vm1048 = vcmp.eq.f32.partialorder %v1047, 8.507059e+37
    %v1049 = vand.u32 %v714, 2147483648
    %v1050 = vor.u32 1.1754944e-38, %v1049
    %v1051 = vsel %vm1048, %v1050, %v1046
    %v1052 = vmul.f32 %v1036, %v1051
    %v1053 = vrcp.pop %v715
    %v1054 = vmul.f32 %v715, %v1053
    %v1055 = vsub.f32 1.0, %v1054
    %v1056 = vmul.f32 %v1053, %v1055
    %v1057 = vadd.f32 %v1053, %v1056
    %vm1058 = vweird.f32 %v715
    %vm1059 = vweird.f32 %v1053
    %vm1060 = vmor %vm1058, %vm1059
    %v1061 = vsel %vm1060, %v1053, %v1057
    %v1062 = vand.u32 2147483647, %v715
    %vm1063 = vcmp.eq.f32.partialorder %v1062, 8.507059e+37
    %v1064 = vand.u32 %v715, 2147483648
    %v1065 = vor.u32 1.1754944e-38, %v1064
    %v1066 = vsel %vm1063, %v1065, %v1061
    %v1067 = vmul.f32 %v1037, %v1066
    %v1068 = vlog2.pop %v714
    %v1069 = vmul.f32 %v1068, 0.6931472
    %v1070 = vlog2.pop %v715
    %v1071 = vmul.f32 %v1070, 0.6931472
    %v1072 = vsub.f32 -0.9189385, %v1069
    %v1073 = vsub.f32 -0.9189385, %v1071
    %v1074 = vmul.f32 %v1052, 0.5
    %v1075 = vmul.f32 %v1067, 0.5
    %v1076 = vmul.f32 %v1074, %v1052
    %v1077 = vmul.f32 %v1075, %v1067
    %v1078 = vsub.f32 %v1072, %v1076
    %v1079 = vsub.f32 %v1073, %v1077
    %v1080 = vsel %vm55, %v1078, 0.0
    %1081 = vadd.xlane.f32.xlu0 %v1080
    %v1082 = vpop.xlane.xlu0 %1081
    %v1083 = vsel %vm55, %v1079, 0.0
    %1084 = vadd.xlane.f32.xlu0 %v1083
    %v1085 = vpop.xlane.xlu0 %1084
    %v1086 = vsub.f32 %v718, %v830
    %v1087 = vsub.f32 %v719, %v833
    %v1088 = vrcp.pop %v888
    %v1089 = vmul.f32 %v888, %v1088
    %v1090 = vsub.f32 1.0, %v1089
    %v1091 = vmul.f32 %v1088, %v1090
    %v1092 = vadd.f32 %v1088, %v1091
    %vm1093 = vweird.f32 %v888
    %vm1094 = vweird.f32 %v1088
    %vm1095 = vmor %vm1093, %vm1094
    %v1096 = vsel %vm1095, %v1088, %v1092
    %v1097 = vand.u32 2147483647, %v888
    %vm1098 = vcmp.eq.f32.partialorder %v1097, 8.507059e+37
    %v1099 = vand.u32 %v888, 2147483648
    %v1100 = vor.u32 1.1754944e-38, %v1099
    %v1101 = vsel %vm1098, %v1100, %v1096
    %v1102 = vmul.f32 %v1086, %v1101
    %v1103 = vrcp.pop %v889
    %v1104 = vmul.f32 %v889, %v1103
    %v1105 = vsub.f32 1.0, %v1104
    %v1106 = vmul.f32 %v1103, %v1105
    %v1107 = vadd.f32 %v1103, %v1106
    %vm1108 = vweird.f32 %v889
    %vm1109 = vweird.f32 %v1103
    %vm1110 = vmor %vm1108, %vm1109
    %v1111 = vsel %vm1110, %v1103, %v1107
    %v1112 = vand.u32 2147483647, %v889
    %vm1113 = vcmp.eq.f32.partialorder %v1112, 8.507059e+37
    %v1114 = vand.u32 %v889, 2147483648
    %v1115 = vor.u32 1.1754944e-38, %v1114
    %v1116 = vsel %vm1113, %v1115, %v1111
    %v1117 = vmul.f32 %v1087, %v1116
    %v1118 = vlog2.pop %v888
    %v1119 = vmul.f32 %v1118, 0.6931472
    %v1120 = vlog2.pop %v889
    %v1121 = vmul.f32 %v1120, 0.6931472
    %v1122 = vsub.f32 -0.9189385, %v1119
    %v1123 = vsub.f32 -0.9189385, %v1121
    %v1124 = vmul.f32 %v1102, 0.5
    %v1125 = vmul.f32 %v1117, 0.5
    %v1126 = vmul.f32 %v1124, %v1102
    %v1127 = vmul.f32 %v1125, %v1117
    %v1128 = vsub.f32 %v1122, %v1126
    %v1129 = vsub.f32 %v1123, %v1127
    %v1130 = vsel %vm55, %v1128, 0.0
    %1131 = vadd.xlane.f32.xlu0 %v1130
    %v1132 = vpop.xlane.xlu0 %1131
    %v1133 = vsel %vm55, %v1129, 0.0
    %1134 = vadd.xlane.f32.xlu0 %v1133
    %v1135 = vpop.xlane.xlu0 %1134
    %v1136 = vsub.f32 %v339, %v976
    %v1137 = vsub.f32 %v342, %v979
    %v1138 = vrcp.pop %v1034
    %v1139 = vmul.f32 %v1034, %v1138
    %v1140 = vsub.f32 1.0, %v1139
    %v1141 = vmul.f32 %v1138, %v1140
    %v1142 = vadd.f32 %v1138, %v1141
    %vm1143 = vweird.f32 %v1034
    %vm1144 = vweird.f32 %v1138
    %vm1145 = vmor %vm1143, %vm1144
    %v1146 = vsel %vm1145, %v1138, %v1142
    %v1147 = vand.u32 2147483647, %v1034
    %vm1148 = vcmp.eq.f32.partialorder %v1147, 8.507059e+37
    %v1149 = vand.u32 %v1034, 2147483648
    %v1150 = vor.u32 1.1754944e-38, %v1149
    %v1151 = vsel %vm1148, %v1150, %v1146
    %v1152 = vmul.f32 %v1136, %v1151
    %v1153 = vrcp.pop %v1035
    %v1154 = vmul.f32 %v1035, %v1153
    %v1155 = vsub.f32 1.0, %v1154
    %v1156 = vmul.f32 %v1153, %v1155
    %v1157 = vadd.f32 %v1153, %v1156
    %vm1158 = vweird.f32 %v1035
    %vm1159 = vweird.f32 %v1153
    %vm1160 = vmor %vm1158, %vm1159
    %v1161 = vsel %vm1160, %v1153, %v1157
    %v1162 = vand.u32 2147483647, %v1035
    %vm1163 = vcmp.eq.f32.partialorder %v1162, 8.507059e+37
    %v1164 = vand.u32 %v1035, 2147483648
    %v1165 = vor.u32 1.1754944e-38, %v1164
    %v1166 = vsel %vm1163, %v1165, %v1161
    %v1167 = vmul.f32 %v1137, %v1166
    %v1168 = vlog2.pop %v1034
    %v1169 = vmul.f32 %v1168, 0.6931472
    %v1170 = vlog2.pop %v1035
    %v1171 = vmul.f32 %v1170, 0.6931472
    %v1172 = vsub.f32 -0.9189385, %v1169
    %v1173 = vsub.f32 -0.9189385, %v1171
    %v1174 = vmul.f32 %v1152, 0.5
    %v1175 = vmul.f32 %v1167, 0.5
    %v1176 = vmul.f32 %v1174, %v1152
    %v1177 = vmul.f32 %v1175, %v1167
    %v1178 = vsub.f32 %v1172, %v1176
    %v1179 = vsub.f32 %v1173, %v1177
    %v1180 = vsel %vm115, %v1178, 0.0
    %1181 = vadd.xlane.f32.xlu0 %v1180
    %v1182 = vpop.xlane.xlu0 %1181
    %v1183 = vsel %vm115, %v1179, 0.0
    %1184 = vadd.xlane.f32.xlu0 %v1183
    %v1185 = vpop.xlane.xlu0 %1184
    %v1186 = vsub.f32 %v1132, %v1082
    %v1187 = vsub.f32 %v1135, %v1085
    %v1188 = vadd.f32 %v1186, %v1182
    %v1189 = vadd.f32 %v1187, %v1185
    %vm1190 = vcmp.gt.f32.partialorder %v40, 0.5
    %vm1191 = vcmp.gt.f32.partialorder %v41, 0.5
    %v1192 = vsel %vm1190, %v1188, -1e+30
    %v1193 = vsel %vm1191, %v1189, -1e+30
    %v1194 = vsel %vm232, %v1192, -inf
    %v1195 = vsel %vm232, %v1193, -inf
    %v1196 = vmax.f32 %v1194, %v1195
    %v1197 = vrot.slane %v1196, 4
    %v1198 = vmax.f32 %v1196, %v1197
    %v1199 = vrot.slane %v1198, 2
    %v1200 = vmax.f32 %v1198, %v1199
    %v1201 = vrot.slane %v1200, 1
    %v1202 = vmax.f32 %v1200, %v1201
    %v1203 = vmul.f32 %v40, %v1202
    %v1204 = vmul.f32 %v41, %v1202
    %v1205 = vsel %vm232, %v1203, 0.0
    %1206 = vadd.xlane.f32.xlu0 %v1205
    %v1207 = vpop.xlane.xlu0 %1206
    %v1208 = vsel %vm232, %v1204, 0.0
    %1209 = vadd.xlane.f32.xlu0 %v1208
    %v1210 = vpop.xlane.xlu0 %1209
    %v1211 = vsub.f32 %v1188, %v1207
    %v1212 = vsub.f32 %v1189, %v1210
    %v1213 = vmul.f32 %v1211, 1.442695
    %v1214 = vpow.pop %v1213
    %v1215 = vmul.f32 %v1212, 1.442695
    %v1216 = vpow.pop %v1215
    %v1217 = vmul.f32 %v40, %v1214
    %v1218 = vmul.f32 %v41, %v1216
    %v1219 = vsel %vm232, %v1217, 0.0
    %v1220 = vsel %vm232, %v1218, 0.0
    %v1221 = vadd.f32 %v1219, %v1220
    %v1222 = vrot.slane %v1221, 4
    %v1223 = vadd.f32 %v1221, %v1222
    %v1224 = vrot.slane %v1223, 2
    %v1225 = vadd.f32 %v1223, %v1224
    %v1226 = vrot.slane %v1225, 1
    %v1227 = vadd.f32 %v1225, %v1226
    %v1228 = vmul.f32 %v40, %v1227
    %v1229 = vmul.f32 %v41, %v1227
    %v1230 = vsel %vm232, %v1228, 0.0
    %1231 = vadd.xlane.f32.xlu0 %v1230
    %v1232 = vpop.xlane.xlu0 %1231
    %v1233 = vsel %vm232, %v1229, 0.0
    %1234 = vadd.xlane.f32.xlu0 %v1233
    %v1235 = vpop.xlane.xlu0 %1234
    %v1236 = vlog2.pop %v1232
    %v1237 = vmul.f32 %v1236, 0.6931472
    %v1238 = vlog2.pop %v1235
    %v1239 = vmul.f32 %v1238, 0.6931472
    %v1240 = vadd.f32 %v1207, %v1237
    %v1241 = vadd.f32 %v1210, %v1239
    %v1242 = vsub.f32 %v1188, %v1240
    %v1243 = vsub.f32 %v1189, %v1241
    %v1244 = vmul.f32 %v1242, 1.442695
    %v1245 = vpow.pop %v1244
    %v1246 = vmul.f32 %v1243, 1.442695
    %v1247 = vpow.pop %v1246
    %v1248 = vsub.f32 %v1240, 2.0794415
    %v1249 = vsub.f32 %v1241, 2.0794415
    %v1250 = vsub.f32 0.0, %v1248
    %v1251 = vsub.f32 0.0, %v1249
    %v1253 = vsel %vm55, %v45, 0
    %1255 = vmatpush.msra.mxu0 0.0
    %1256 = vmatpush.msra.mxu0 0.0
    %1257 = vmatpush.msra.mxu0 0.0
    %1258 = vmatpush.msra.mxu0 0.0
    %1259 = vmatpush.msra.mxu0 0.0
    %1260 = vmatpush.msra.mxu0 0.0
    %1261 = vmatpush.msra.mxu0 0.0
    %1262 = vmatpush.msra.mxu0 0.0
    %1263 = vmatpush.msra.mxu0 0.0
    %1264 = vmatpush.msra.mxu0 0.0
    %1265 = vmatpush.msra.mxu0 0.0
    %1266 = vmatpush.msra.mxu0 0.0
    %1267 = vmatpush.msra.mxu0 0.0
    %1268 = vmatpush.msra.mxu0 0.0
    %1269 = vmatpush.msra.mxu0 %v1251
    %1270 = vmatpush.msra.mxu0 %v1250
    %1271 = vmatmul.f32.gmra.mxu0 %v1253
    %v1272 = vpop.f32.mrf.mxu0
    %v1273 = vadd.f32 0.0, %v1272
    %1274 = vdwg.mxu0
    %v1275 = vld [vmem:[#allocation2 + $0x90] sm:$0xff]
    %v1276 = vld [vmem:[#allocation2 + $0x98] sm:$0xff]
    %v1277 = vld [vmem:[#allocation2 + $0xa0] sm:$0xff]
    %v1278 = vld [vmem:[#allocation2 + $0x1b0] sm:$0xff]
    %v1279 = vld [vmem:[#allocation2 + $0x1b8] sm:$0xff]
    %v1280 = vld [vmem:[#allocation2 + $0x1c0] sm:$0xff]
    %v1281 = vld [vmem:[#allocation2 + $0x2d0] sm:$0xff]
    %v1282 = vld [vmem:[#allocation2 + $0x2d8] sm:$0xff]
    %v1283 = vld [vmem:[#allocation2 + $0x2e0] sm:$0xff]
    %v1284 = vld [vmem:[#allocation2 + $0x3f0] sm:$0xff]
    %v1285 = vld [vmem:[#allocation2 + $0x3f8] sm:$0xff]
    %v1286 = vld [vmem:[#allocation2 + $0x400] sm:$0xff]
    %v1287 = vld [vmem:[#allocation2 + $0x510] sm:$0xff]
    %v1288 = vld [vmem:[#allocation2 + $0x518] sm:$0xff]
    %v1289 = vld [vmem:[#allocation2 + $0x520] sm:$0xff]
    %v1290 = vld [vmem:[#allocation2 + $0x630] sm:$0xff]
    %v1291 = vld [vmem:[#allocation2 + $0x638] sm:$0xff]
    %v1292 = vld [vmem:[#allocation2 + $0x640] sm:$0xff]
    %s1293 = scalar_lea.vmem [#allocation2], 168
    %v1294 = vld [vmem:[%s1293] ss:$8 sm:$0x7]
    %v1296 = vperm.slane %v1294, 0
    %v1297 = vperm.slane %v1294, 1
    %v1298 = vperm.slane %v1294, 2
    %v1302 = vmul.f32 %v1245, %v1296
    %v1303 = vmul.f32 %v1245, %v1297
    %v1304 = vmul.f32 %v1245, %v1298
    %v1305 = vmul.f32 %v1247, %v1296
    %v1306 = vmul.f32 %v1247, %v1297
    %v1307 = vmul.f32 %v1247, %v1298
    %1308 = vmatpush.msra.mxu0 0.0
    %1309 = vmatpush.msra.mxu0 0.0
    %1310 = vmatpush.msra.mxu0 0.0
    %1311 = vmatpush.msra.mxu0 0.0
    %1312 = vmatpush.msra.mxu0 0.0
    %1313 = vmatpush.msra.mxu0 0.0
    %1314 = vmatpush.msra.mxu0 0.0
    %1315 = vmatpush.msra.mxu0 0.0
    %1316 = vmatpush.msra.mxu0 0.0
    %1317 = vmatpush.msra.mxu0 0.0
    %1318 = vmatpush.msra.mxu0 %v1290
    %1319 = vmatpush.msra.mxu0 %v1287
    %1320 = vmatpush.msra.mxu0 %v1284
    %1321 = vmatpush.msra.mxu0 %v1281
    %1322 = vmatpush.msra.mxu0 %v1278
    %1323 = vmatpush.msra.mxu0 %v1275
    %1324 = vmatmul.f32.gmra.mxu0 %v907
    %v1325 = vpop.f32.mrf.mxu0
    %v1326 = vadd.f32 %v1302, %v1325
    %1327 = vmatmul.f32.gmra.mxu0 %v910
    %v1328 = vpop.f32.mrf.mxu0
    %v1329 = vadd.f32 %v1305, %v1328
    %1330 = vdwg.mxu0
    %1331 = vmatpush.msra.mxu0 0.0
    %1332 = vmatpush.msra.mxu0 0.0
    %1333 = vmatpush.msra.mxu0 0.0
    %1334 = vmatpush.msra.mxu0 0.0
    %1335 = vmatpush.msra.mxu0 0.0
    %1336 = vmatpush.msra.mxu0 0.0
    %1337 = vmatpush.msra.mxu0 0.0
    %1338 = vmatpush.msra.mxu0 0.0
    %1339 = vmatpush.msra.mxu0 0.0
    %1340 = vmatpush.msra.mxu0 0.0
    %1341 = vmatpush.msra.mxu0 %v1291
    %1342 = vmatpush.msra.mxu0 %v1288
    %1343 = vmatpush.msra.mxu0 %v1285
    %1344 = vmatpush.msra.mxu0 %v1282
    %1345 = vmatpush.msra.mxu0 %v1279
    %1346 = vmatpush.msra.mxu0 %v1276
    %1347 = vmatmul.f32.gmra.mxu0 %v907
    %v1348 = vpop.f32.mrf.mxu0
    %v1349 = vadd.f32 %v1303, %v1348
    %1350 = vmatmul.f32.gmra.mxu0 %v910
    %v1351 = vpop.f32.mrf.mxu0
    %v1352 = vadd.f32 %v1306, %v1351
    %1353 = vdwg.mxu0
    %1354 = vmatpush.msra.mxu0 0.0
    %1355 = vmatpush.msra.mxu0 0.0
    %1356 = vmatpush.msra.mxu0 0.0
    %1357 = vmatpush.msra.mxu0 0.0
    %1358 = vmatpush.msra.mxu0 0.0
    %1359 = vmatpush.msra.mxu0 0.0
    %1360 = vmatpush.msra.mxu0 0.0
    %1361 = vmatpush.msra.mxu0 0.0
    %1362 = vmatpush.msra.mxu0 0.0
    %1363 = vmatpush.msra.mxu0 0.0
    %1364 = vmatpush.msra.mxu0 %v1292
    %1365 = vmatpush.msra.mxu0 %v1289
    %1366 = vmatpush.msra.mxu0 %v1286
    %1367 = vmatpush.msra.mxu0 %v1283
    %1368 = vmatpush.msra.mxu0 %v1280
    %1369 = vmatpush.msra.mxu0 %v1277
    %1370 = vmatmul.f32.gmra.mxu0 %v907
    %v1371 = vpop.f32.mrf.mxu0
    %v1372 = vadd.f32 %v1304, %v1371
    %1373 = vmatmul.f32.gmra.mxu0 %v910
    %v1374 = vpop.f32.mrf.mxu0
    %v1375 = vadd.f32 %v1307, %v1374
    %1376 = vdwg.mxu0
    %s1377 = scalar_lea.vmem [#allocation2], 1872
    %v1378 = vld [vmem:[%s1377] ss:$8 sm:$0x7]
    %v1380 = vperm.slane %v1378, 0
    %v1381 = vperm.slane %v1378, 1
    %v1382 = vperm.slane %v1378, 2
    %v1386 = vadd.f32 %v1326, %v1380
    %v1387 = vadd.f32 %v1349, %v1381
    %v1388 = vadd.f32 %v1372, %v1382
    %v1389 = vadd.f32 %v1329, %v1380
    %v1390 = vadd.f32 %v1352, %v1381
    %v1391 = vadd.f32 %v1375, %v1382
    %v1393 = vsel %vm55, %v43, 0
    %v1396 = vsel %vm55, %v44, 0
    %1398 = vmatpush.msra.mxu0 0.0
    %1399 = vmatpush.msra.mxu0 0.0
    %1400 = vmatpush.msra.mxu0 0.0
    %1401 = vmatpush.msra.mxu0 0.0
    %1402 = vmatpush.msra.mxu0 0.0
    %1403 = vmatpush.msra.mxu0 0.0
    %1404 = vmatpush.msra.mxu0 0.0
    %1405 = vmatpush.msra.mxu0 0.0
    %1406 = vmatpush.msra.mxu0 0.0
    %1407 = vmatpush.msra.mxu0 0.0
    %1408 = vmatpush.msra.mxu0 0.0
    %1409 = vmatpush.msra.mxu0 0.0
    %1410 = vmatpush.msra.mxu0 0.0
    %1411 = vmatpush.msra.mxu0 0.0
    %1412 = vmatpush.msra.mxu0 %v1389
    %1413 = vmatpush.msra.mxu0 %v1386
    %1414 = vmatmul.f32.gmra.mxu0 %v1393
    %v1415 = vpop.f32.mrf.mxu0
    %v1416 = vadd.f32 0.0, %v1415
    %1417 = vmatmul.f32.gmra.mxu0 %v1396
    %v1418 = vpop.f32.mrf.mxu0
    %v1419 = vadd.f32 0.0, %v1418
    %1420 = vdwg.mxu0
    %1421 = vmatpush.msra.mxu0 0.0
    %1422 = vmatpush.msra.mxu0 0.0
    %1423 = vmatpush.msra.mxu0 0.0
    %1424 = vmatpush.msra.mxu0 0.0
    %1425 = vmatpush.msra.mxu0 0.0
    %1426 = vmatpush.msra.mxu0 0.0
    %1427 = vmatpush.msra.mxu0 0.0
    %1428 = vmatpush.msra.mxu0 0.0
    %1429 = vmatpush.msra.mxu0 0.0
    %1430 = vmatpush.msra.mxu0 0.0
    %1431 = vmatpush.msra.mxu0 0.0
    %1432 = vmatpush.msra.mxu0 0.0
    %1433 = vmatpush.msra.mxu0 0.0
    %1434 = vmatpush.msra.mxu0 0.0
    %1435 = vmatpush.msra.mxu0 %v1390
    %1436 = vmatpush.msra.mxu0 %v1387
    %1437 = vmatmul.f32.gmra.mxu0 %v1393
    %v1438 = vpop.f32.mrf.mxu0
    %v1439 = vadd.f32 0.0, %v1438
    %1440 = vmatmul.f32.gmra.mxu0 %v1396
    %v1441 = vpop.f32.mrf.mxu0
    %v1442 = vadd.f32 0.0, %v1441
    %1443 = vdwg.mxu0
    %1444 = vmatpush.msra.mxu0 0.0
    %1445 = vmatpush.msra.mxu0 0.0
    %1446 = vmatpush.msra.mxu0 0.0
    %1447 = vmatpush.msra.mxu0 0.0
    %1448 = vmatpush.msra.mxu0 0.0
    %1449 = vmatpush.msra.mxu0 0.0
    %1450 = vmatpush.msra.mxu0 0.0
    %1451 = vmatpush.msra.mxu0 0.0
    %1452 = vmatpush.msra.mxu0 0.0
    %1453 = vmatpush.msra.mxu0 0.0
    %1454 = vmatpush.msra.mxu0 0.0
    %1455 = vmatpush.msra.mxu0 0.0
    %1456 = vmatpush.msra.mxu0 0.0
    %1457 = vmatpush.msra.mxu0 0.0
    %1458 = vmatpush.msra.mxu0 %v1391
    %1459 = vmatpush.msra.mxu0 %v1388
    %1460 = vmatmul.f32.gmra.mxu0 %v1393
    %v1461 = vpop.f32.mrf.mxu0
    %v1462 = vadd.f32 0.0, %v1461
    %1463 = vmatmul.f32.gmra.mxu0 %v1396
    %v1464 = vpop.f32.mrf.mxu0
    %v1465 = vadd.f32 0.0, %v1464
    %1466 = vdwg.mxu0
    %v1467 = vld [vmem:[#allocation2 + $0xc0] sm:$0xff]
    %v1468 = vld [vmem:[#allocation2 + $0xc8] sm:$0xff]
    %v1469 = vld [vmem:[#allocation2 + $0xd0] sm:$0xff]
    %v1470 = vld [vmem:[#allocation2 + $0x1e0] sm:$0xff]
    %v1471 = vld [vmem:[#allocation2 + $0x1e8] sm:$0xff]
    %v1472 = vld [vmem:[#allocation2 + $0x1f0] sm:$0xff]
    %v1473 = vld [vmem:[#allocation2 + $0x300] sm:$0xff]
    %v1474 = vld [vmem:[#allocation2 + $0x308] sm:$0xff]
    %v1475 = vld [vmem:[#allocation2 + $0x310] sm:$0xff]
    %v1476 = vld [vmem:[#allocation2 + $0x420] sm:$0xff]
    %v1477 = vld [vmem:[#allocation2 + $0x428] sm:$0xff]
    %v1478 = vld [vmem:[#allocation2 + $0x430] sm:$0xff]
    %s1479 = scalar_lea.vmem [#allocation2], 1920
    %v1480 = vld [vmem:[%s1479] ss:$8 sm:$0x7]
    %v1482 = vperm.slane %v1480, 0
    %v1483 = vperm.slane %v1480, 1
    %v1484 = vperm.slane %v1480, 2
    %v1489 = vsel %vm115, 0.0, 0
    %1491 = vmatpush.msra.mxu0 0.0
    %1492 = vmatpush.msra.mxu0 0.0
    %1493 = vmatpush.msra.mxu0 0.0
    %1494 = vmatpush.msra.mxu0 0.0
    %1495 = vmatpush.msra.mxu0 0.0
    %1496 = vmatpush.msra.mxu0 0.0
    %1497 = vmatpush.msra.mxu0 0.0
    %1498 = vmatpush.msra.mxu0 0.0
    %1499 = vmatpush.msra.mxu0 0.0
    %1500 = vmatpush.msra.mxu0 0.0
    %1501 = vmatpush.msra.mxu0 0.0
    %1502 = vmatpush.msra.mxu0 0.0
    %1503 = vmatpush.msra.mxu0 %v1476
    %1504 = vmatpush.msra.mxu0 %v1473
    %1505 = vmatpush.msra.mxu0 %v1470
    %1506 = vmatpush.msra.mxu0 %v1467
    %1507 = vmatmul.f32.gmra.mxu0 %v1489
    %v1508 = vpop.f32.mrf.mxu0
    %v1509 = vadd.f32 %v1482, %v1508
    %1510 = vdwg.mxu0
    %1511 = vmatpush.msra.mxu0 0.0
    %1512 = vmatpush.msra.mxu0 0.0
    %1513 = vmatpush.msra.mxu0 0.0
    %1514 = vmatpush.msra.mxu0 0.0
    %1515 = vmatpush.msra.mxu0 0.0
    %1516 = vmatpush.msra.mxu0 0.0
    %1517 = vmatpush.msra.mxu0 0.0
    %1518 = vmatpush.msra.mxu0 0.0
    %1519 = vmatpush.msra.mxu0 0.0
    %1520 = vmatpush.msra.mxu0 0.0
    %1521 = vmatpush.msra.mxu0 0.0
    %1522 = vmatpush.msra.mxu0 0.0
    %1523 = vmatpush.msra.mxu0 %v1477
    %1524 = vmatpush.msra.mxu0 %v1474
    %1525 = vmatpush.msra.mxu0 %v1471
    %1526 = vmatpush.msra.mxu0 %v1468
    %1527 = vmatmul.f32.gmra.mxu0 %v1489
    %v1528 = vpop.f32.mrf.mxu0
    %v1529 = vadd.f32 %v1483, %v1528
    %1530 = vdwg.mxu0
    %1531 = vmatpush.msra.mxu0 0.0
    %1532 = vmatpush.msra.mxu0 0.0
    %1533 = vmatpush.msra.mxu0 0.0
    %1534 = vmatpush.msra.mxu0 0.0
    %1535 = vmatpush.msra.mxu0 0.0
    %1536 = vmatpush.msra.mxu0 0.0
    %1537 = vmatpush.msra.mxu0 0.0
    %1538 = vmatpush.msra.mxu0 0.0
    %1539 = vmatpush.msra.mxu0 0.0
    %1540 = vmatpush.msra.mxu0 0.0
    %1541 = vmatpush.msra.mxu0 0.0
    %1542 = vmatpush.msra.mxu0 0.0
    %1543 = vmatpush.msra.mxu0 %v1478
    %1544 = vmatpush.msra.mxu0 %v1475
    %1545 = vmatpush.msra.mxu0 %v1472
    %1546 = vmatpush.msra.mxu0 %v1469
    %1547 = vmatmul.f32.gmra.mxu0 %v1489
    %v1548 = vpop.f32.mrf.mxu0
    %v1549 = vadd.f32 %v1484, %v1548
    %1550 = vdwg.mxu0
    %v1551 = vadd.f32 %v1416, %v1509
    %v1552 = vxor.u32 %v1551, 2147483648
    %v1553 = vmul.f32 %v1552, 1.442695
    %v1554 = vpow.pop %v1553
    %v1555 = vadd.f32 %v1554, 1.0
    %v1556 = vrcp.pop %v1555
    %v1557 = vmul.f32 %v1555, %v1556
    %v1558 = vsub.f32 1.0, %v1557
    %v1559 = vmul.f32 %v1556, %v1558
    %v1560 = vadd.f32 %v1556, %v1559
    %vm1561 = vweird.f32 %v1555
    %vm1562 = vweird.f32 %v1556
    %vm1563 = vmor %vm1561, %vm1562
    %v1564 = vsel %vm1563, %v1556, %v1560
    %v1565 = vand.u32 2147483647, %v1555
    %vm1566 = vcmp.eq.f32.partialorder %v1565, 8.507059e+37
    %v1567 = vand.u32 %v1555, 2147483648
    %v1568 = vor.u32 1.1754944e-38, %v1567
    %v1569 = vsel %vm1566, %v1568, %v1564
    %v1570 = vmul.f32 1.0, %v1569
    %v1571 = vadd.f32 %v1439, %v1529
    %v1572 = vxor.u32 %v1571, 2147483648
    %v1573 = vmul.f32 %v1572, 1.442695
    %v1574 = vpow.pop %v1573
    %v1575 = vadd.f32 %v1574, 1.0
    %v1576 = vrcp.pop %v1575
    %v1577 = vmul.f32 %v1575, %v1576
    %v1578 = vsub.f32 1.0, %v1577
    %v1579 = vmul.f32 %v1576, %v1578
    %v1580 = vadd.f32 %v1576, %v1579
    %vm1581 = vweird.f32 %v1575
    %vm1582 = vweird.f32 %v1576
    %vm1583 = vmor %vm1581, %vm1582
    %v1584 = vsel %vm1583, %v1576, %v1580
    %v1585 = vand.u32 2147483647, %v1575
    %vm1586 = vcmp.eq.f32.partialorder %v1585, 8.507059e+37
    %v1587 = vand.u32 %v1575, 2147483648
    %v1588 = vor.u32 1.1754944e-38, %v1587
    %v1589 = vsel %vm1586, %v1588, %v1584
    %v1590 = vmul.f32 1.0, %v1589
    %v1591 = vmul.f32 %v1570, %v1549
    %v1592 = vadd.f32 %v1462, %v1591
    %v1593 = vtanh.pop %v1592
    %v1594 = vsub.f32 1.0, %v1590
    %v1595 = vmul.f32 %v1594, %v1593
    %v1596 = vmul.f32 %v1590, 0.0
    %v1597 = vadd.f32 %v1595, %v1596
    %v1599 = vsel %vm115, %v1597, 0
    %1601 = vmatpush.msra.mxu0 0.0
    %1602 = vmatpush.msra.mxu0 0.0
    %1603 = vmatpush.msra.mxu0 0.0
    %1604 = vmatpush.msra.mxu0 0.0
    %1605 = vmatpush.msra.mxu0 0.0
    %1606 = vmatpush.msra.mxu0 0.0
    %1607 = vmatpush.msra.mxu0 0.0
    %1608 = vmatpush.msra.mxu0 0.0
    %1609 = vmatpush.msra.mxu0 0.0
    %1610 = vmatpush.msra.mxu0 0.0
    %1611 = vmatpush.msra.mxu0 0.0
    %1612 = vmatpush.msra.mxu0 0.0
    %1613 = vmatpush.msra.mxu0 %v1476
    %1614 = vmatpush.msra.mxu0 %v1473
    %1615 = vmatpush.msra.mxu0 %v1470
    %1616 = vmatpush.msra.mxu0 %v1467
    %1617 = vmatmul.f32.gmra.mxu0 %v1599
    %v1618 = vpop.f32.mrf.mxu0
    %v1619 = vadd.f32 %v1482, %v1618
    %1620 = vdwg.mxu0
    %1621 = vmatpush.msra.mxu0 0.0
    %1622 = vmatpush.msra.mxu0 0.0
    %1623 = vmatpush.msra.mxu0 0.0
    %1624 = vmatpush.msra.mxu0 0.0
    %1625 = vmatpush.msra.mxu0 0.0
    %1626 = vmatpush.msra.mxu0 0.0
    %1627 = vmatpush.msra.mxu0 0.0
    %1628 = vmatpush.msra.mxu0 0.0
    %1629 = vmatpush.msra.mxu0 0.0
    %1630 = vmatpush.msra.mxu0 0.0
    %1631 = vmatpush.msra.mxu0 0.0
    %1632 = vmatpush.msra.mxu0 0.0
    %1633 = vmatpush.msra.mxu0 %v1477
    %1634 = vmatpush.msra.mxu0 %v1474
    %1635 = vmatpush.msra.mxu0 %v1471
    %1636 = vmatpush.msra.mxu0 %v1468
    %1637 = vmatmul.f32.gmra.mxu0 %v1599
    %v1638 = vpop.f32.mrf.mxu0
    %v1639 = vadd.f32 %v1483, %v1638
    %1640 = vdwg.mxu0
    %1641 = vmatpush.msra.mxu0 0.0
    %1642 = vmatpush.msra.mxu0 0.0
    %1643 = vmatpush.msra.mxu0 0.0
    %1644 = vmatpush.msra.mxu0 0.0
    %1645 = vmatpush.msra.mxu0 0.0
    %1646 = vmatpush.msra.mxu0 0.0
    %1647 = vmatpush.msra.mxu0 0.0
    %1648 = vmatpush.msra.mxu0 0.0
    %1649 = vmatpush.msra.mxu0 0.0
    %1650 = vmatpush.msra.mxu0 0.0
    %1651 = vmatpush.msra.mxu0 0.0
    %1652 = vmatpush.msra.mxu0 0.0
    %1653 = vmatpush.msra.mxu0 %v1478
    %1654 = vmatpush.msra.mxu0 %v1475
    %1655 = vmatpush.msra.mxu0 %v1472
    %1656 = vmatpush.msra.mxu0 %v1469
    %1657 = vmatmul.f32.gmra.mxu0 %v1599
    %v1658 = vpop.f32.mrf.mxu0
    %v1659 = vadd.f32 %v1484, %v1658
    %1660 = vdwg.mxu0
    %v1662 = vrot.slane %v1619, 6
    %v1664 = vadd.f32 %v1416, %v1662
    %v1665 = vxor.u32 %v1664, 2147483648
    %v1666 = vmul.f32 %v1665, 1.442695
    %v1667 = vpow.pop %v1666
    %v1668 = vadd.f32 %v1667, 1.0
    %v1669 = vrcp.pop %v1668
    %v1670 = vmul.f32 %v1668, %v1669
    %v1671 = vsub.f32 1.0, %v1670
    %v1672 = vmul.f32 %v1669, %v1671
    %v1673 = vadd.f32 %v1669, %v1672
    %vm1674 = vweird.f32 %v1668
    %vm1675 = vweird.f32 %v1669
    %vm1676 = vmor %vm1674, %vm1675
    %v1677 = vsel %vm1676, %v1669, %v1673
    %v1678 = vand.u32 2147483647, %v1668
    %vm1679 = vcmp.eq.f32.partialorder %v1678, 8.507059e+37
    %v1680 = vand.u32 %v1668, 2147483648
    %v1681 = vor.u32 1.1754944e-38, %v1680
    %v1682 = vsel %vm1679, %v1681, %v1677
    %v1683 = vmul.f32 1.0, %v1682
    %v1685 = vrot.slane %v1639, 6
    %v1687 = vadd.f32 %v1439, %v1685
    %v1688 = vxor.u32 %v1687, 2147483648
    %v1689 = vmul.f32 %v1688, 1.442695
    %v1690 = vpow.pop %v1689
    %v1691 = vadd.f32 %v1690, 1.0
    %v1692 = vrcp.pop %v1691
    %v1693 = vmul.f32 %v1691, %v1692
    %v1694 = vsub.f32 1.0, %v1693
    %v1695 = vmul.f32 %v1692, %v1694
    %v1696 = vadd.f32 %v1692, %v1695
    %vm1697 = vweird.f32 %v1691
    %vm1698 = vweird.f32 %v1692
    %vm1699 = vmor %vm1697, %vm1698
    %v1700 = vsel %vm1699, %v1692, %v1696
    %v1701 = vand.u32 2147483647, %v1691
    %vm1702 = vcmp.eq.f32.partialorder %v1701, 8.507059e+37
    %v1703 = vand.u32 %v1691, 2147483648
    %v1704 = vor.u32 1.1754944e-38, %v1703
    %v1705 = vsel %vm1702, %v1704, %v1700
    %v1706 = vmul.f32 1.0, %v1705
    %v1708 = vrot.slane %v1659, 6
    %v1710 = vmul.f32 %v1683, %v1708
    %v1711 = vadd.f32 %v1462, %v1710
    %v1712 = vtanh.pop %v1711
    %v1713 = vsub.f32 1.0, %v1706
    %v1714 = vmul.f32 %v1713, %v1712
    %v1715 = vrot.slane %v1597, 6
    %v1717 = vmul.f32 %v1706, %v1715
    %v1718 = vadd.f32 %v1714, %v1717
    %v1720 = vrot.slane %v1718, 2
    %v1721 = vsel %vm115, %v1720, 0
    %1723 = vmatpush.msra.mxu0 0.0
    %1724 = vmatpush.msra.mxu0 0.0
    %1725 = vmatpush.msra.mxu0 0.0
    %1726 = vmatpush.msra.mxu0 0.0
    %1727 = vmatpush.msra.mxu0 0.0
    %1728 = vmatpush.msra.mxu0 0.0
    %1729 = vmatpush.msra.mxu0 0.0
    %1730 = vmatpush.msra.mxu0 0.0
    %1731 = vmatpush.msra.mxu0 0.0
    %1732 = vmatpush.msra.mxu0 0.0
    %1733 = vmatpush.msra.mxu0 0.0
    %1734 = vmatpush.msra.mxu0 0.0
    %1735 = vmatpush.msra.mxu0 %v1476
    %1736 = vmatpush.msra.mxu0 %v1473
    %1737 = vmatpush.msra.mxu0 %v1470
    %1738 = vmatpush.msra.mxu0 %v1467
    %1739 = vmatmul.f32.gmra.mxu0 %v1721
    %v1740 = vpop.f32.mrf.mxu0
    %v1741 = vadd.f32 %v1482, %v1740
    %1742 = vdwg.mxu0
    %1743 = vmatpush.msra.mxu0 0.0
    %1744 = vmatpush.msra.mxu0 0.0
    %1745 = vmatpush.msra.mxu0 0.0
    %1746 = vmatpush.msra.mxu0 0.0
    %1747 = vmatpush.msra.mxu0 0.0
    %1748 = vmatpush.msra.mxu0 0.0
    %1749 = vmatpush.msra.mxu0 0.0
    %1750 = vmatpush.msra.mxu0 0.0
    %1751 = vmatpush.msra.mxu0 0.0
    %1752 = vmatpush.msra.mxu0 0.0
    %1753 = vmatpush.msra.mxu0 0.0
    %1754 = vmatpush.msra.mxu0 0.0
    %1755 = vmatpush.msra.mxu0 %v1477
    %1756 = vmatpush.msra.mxu0 %v1474
    %1757 = vmatpush.msra.mxu0 %v1471
    %1758 = vmatpush.msra.mxu0 %v1468
    %1759 = vmatmul.f32.gmra.mxu0 %v1721
    %v1760 = vpop.f32.mrf.mxu0
    %v1761 = vadd.f32 %v1483, %v1760
    %1762 = vdwg.mxu0
    %1763 = vmatpush.msra.mxu0 0.0
    %1764 = vmatpush.msra.mxu0 0.0
    %1765 = vmatpush.msra.mxu0 0.0
    %1766 = vmatpush.msra.mxu0 0.0
    %1767 = vmatpush.msra.mxu0 0.0
    %1768 = vmatpush.msra.mxu0 0.0
    %1769 = vmatpush.msra.mxu0 0.0
    %1770 = vmatpush.msra.mxu0 0.0
    %1771 = vmatpush.msra.mxu0 0.0
    %1772 = vmatpush.msra.mxu0 0.0
    %1773 = vmatpush.msra.mxu0 0.0
    %1774 = vmatpush.msra.mxu0 0.0
    %1775 = vmatpush.msra.mxu0 %v1478
    %1776 = vmatpush.msra.mxu0 %v1475
    %1777 = vmatpush.msra.mxu0 %v1472
    %1778 = vmatpush.msra.mxu0 %v1469
    %1779 = vmatmul.f32.gmra.mxu0 %v1721
    %v1780 = vpop.f32.mrf.mxu0
    %v1781 = vadd.f32 %v1484, %v1780
    %1782 = vdwg.mxu0
    %v1784 = vrot.slane %v1741, 4
    %v1786 = vadd.f32 %v1416, %v1784
    %v1787 = vxor.u32 %v1786, 2147483648
    %v1788 = vmul.f32 %v1787, 1.442695
    %v1789 = vpow.pop %v1788
    %v1790 = vadd.f32 %v1789, 1.0
    %v1791 = vrcp.pop %v1790
    %v1792 = vmul.f32 %v1790, %v1791
    %v1793 = vsub.f32 1.0, %v1792
    %v1794 = vmul.f32 %v1791, %v1793
    %v1795 = vadd.f32 %v1791, %v1794
    %vm1796 = vweird.f32 %v1790
    %vm1797 = vweird.f32 %v1791
    %vm1798 = vmor %vm1796, %vm1797
    %v1799 = vsel %vm1798, %v1791, %v1795
    %v1800 = vand.u32 2147483647, %v1790
    %vm1801 = vcmp.eq.f32.partialorder %v1800, 8.507059e+37
    %v1802 = vand.u32 %v1790, 2147483648
    %v1803 = vor.u32 1.1754944e-38, %v1802
    %v1804 = vsel %vm1801, %v1803, %v1799
    %v1805 = vmul.f32 1.0, %v1804
    %v1807 = vrot.slane %v1761, 4
    %v1809 = vadd.f32 %v1439, %v1807
    %v1810 = vxor.u32 %v1809, 2147483648
    %v1811 = vmul.f32 %v1810, 1.442695
    %v1812 = vpow.pop %v1811
    %v1813 = vadd.f32 %v1812, 1.0
    %v1814 = vrcp.pop %v1813
    %v1815 = vmul.f32 %v1813, %v1814
    %v1816 = vsub.f32 1.0, %v1815
    %v1817 = vmul.f32 %v1814, %v1816
    %v1818 = vadd.f32 %v1814, %v1817
    %vm1819 = vweird.f32 %v1813
    %vm1820 = vweird.f32 %v1814
    %vm1821 = vmor %vm1819, %vm1820
    %v1822 = vsel %vm1821, %v1814, %v1818
    %v1823 = vand.u32 2147483647, %v1813
    %vm1824 = vcmp.eq.f32.partialorder %v1823, 8.507059e+37
    %v1825 = vand.u32 %v1813, 2147483648
    %v1826 = vor.u32 1.1754944e-38, %v1825
    %v1827 = vsel %vm1824, %v1826, %v1822
    %v1828 = vmul.f32 1.0, %v1827
    %v1830 = vrot.slane %v1781, 4
    %v1832 = vmul.f32 %v1805, %v1830
    %v1833 = vadd.f32 %v1462, %v1832
    %v1834 = vtanh.pop %v1833
    %v1835 = vsub.f32 1.0, %v1828
    %v1836 = vmul.f32 %v1835, %v1834
    %v1837 = vrot.slane %v1718, 6
    %v1839 = vmul.f32 %v1828, %v1837
    %v1840 = vadd.f32 %v1836, %v1839
    %v1842 = vrot.slane %v1840, 4
    %v1843 = vsel %vm115, %v1842, 0
    %1845 = vmatpush.msra.mxu0 0.0
    %1846 = vmatpush.msra.mxu0 0.0
    %1847 = vmatpush.msra.mxu0 0.0
    %1848 = vmatpush.msra.mxu0 0.0
    %1849 = vmatpush.msra.mxu0 0.0
    %1850 = vmatpush.msra.mxu0 0.0
    %1851 = vmatpush.msra.mxu0 0.0
    %1852 = vmatpush.msra.mxu0 0.0
    %1853 = vmatpush.msra.mxu0 0.0
    %1854 = vmatpush.msra.mxu0 0.0
    %1855 = vmatpush.msra.mxu0 0.0
    %1856 = vmatpush.msra.mxu0 0.0
    %1857 = vmatpush.msra.mxu0 %v1476
    %1858 = vmatpush.msra.mxu0 %v1473
    %1859 = vmatpush.msra.mxu0 %v1470
    %1860 = vmatpush.msra.mxu0 %v1467
    %1861 = vmatmul.f32.gmra.mxu0 %v1843
    %v1862 = vpop.f32.mrf.mxu0
    %v1863 = vadd.f32 %v1482, %v1862
    %1864 = vdwg.mxu0
    %1865 = vmatpush.msra.mxu0 0.0
    %1866 = vmatpush.msra.mxu0 0.0
    %1867 = vmatpush.msra.mxu0 0.0
    %1868 = vmatpush.msra.mxu0 0.0
    %1869 = vmatpush.msra.mxu0 0.0
    %1870 = vmatpush.msra.mxu0 0.0
    %1871 = vmatpush.msra.mxu0 0.0
    %1872 = vmatpush.msra.mxu0 0.0
    %1873 = vmatpush.msra.mxu0 0.0
    %1874 = vmatpush.msra.mxu0 0.0
    %1875 = vmatpush.msra.mxu0 0.0
    %1876 = vmatpush.msra.mxu0 0.0
    %1877 = vmatpush.msra.mxu0 %v1477
    %1878 = vmatpush.msra.mxu0 %v1474
    %1879 = vmatpush.msra.mxu0 %v1471
    %1880 = vmatpush.msra.mxu0 %v1468
    %1881 = vmatmul.f32.gmra.mxu0 %v1843
    %v1882 = vpop.f32.mrf.mxu0
    %v1883 = vadd.f32 %v1483, %v1882
    %1884 = vdwg.mxu0
    %1885 = vmatpush.msra.mxu0 0.0
    %1886 = vmatpush.msra.mxu0 0.0
    %1887 = vmatpush.msra.mxu0 0.0
    %1888 = vmatpush.msra.mxu0 0.0
    %1889 = vmatpush.msra.mxu0 0.0
    %1890 = vmatpush.msra.mxu0 0.0
    %1891 = vmatpush.msra.mxu0 0.0
    %1892 = vmatpush.msra.mxu0 0.0
    %1893 = vmatpush.msra.mxu0 0.0
    %1894 = vmatpush.msra.mxu0 0.0
    %1895 = vmatpush.msra.mxu0 0.0
    %1896 = vmatpush.msra.mxu0 0.0
    %1897 = vmatpush.msra.mxu0 %v1478
    %1898 = vmatpush.msra.mxu0 %v1475
    %1899 = vmatpush.msra.mxu0 %v1472
    %1900 = vmatpush.msra.mxu0 %v1469
    %1901 = vmatmul.f32.gmra.mxu0 %v1843
    %v1902 = vpop.f32.mrf.mxu0
    %v1903 = vadd.f32 %v1484, %v1902
    %1904 = vdwg.mxu0
    %v1906 = vrot.slane %v1863, 2
    %v1908 = vadd.f32 %v1416, %v1906
    %v1909 = vxor.u32 %v1908, 2147483648
    %v1910 = vmul.f32 %v1909, 1.442695
    %v1911 = vpow.pop %v1910
    %v1912 = vadd.f32 %v1911, 1.0
    %v1913 = vrcp.pop %v1912
    %v1914 = vmul.f32 %v1912, %v1913
    %v1915 = vsub.f32 1.0, %v1914
    %v1916 = vmul.f32 %v1913, %v1915
    %v1917 = vadd.f32 %v1913, %v1916
    %vm1918 = vweird.f32 %v1912
    %vm1919 = vweird.f32 %v1913
    %vm1920 = vmor %vm1918, %vm1919
    %v1921 = vsel %vm1920, %v1913, %v1917
    %v1922 = vand.u32 2147483647, %v1912
    %vm1923 = vcmp.eq.f32.partialorder %v1922, 8.507059e+37
    %v1924 = vand.u32 %v1912, 2147483648
    %v1925 = vor.u32 1.1754944e-38, %v1924
    %v1926 = vsel %vm1923, %v1925, %v1921
    %v1927 = vmul.f32 1.0, %v1926
    %v1929 = vrot.slane %v1883, 2
    %v1931 = vadd.f32 %v1439, %v1929
    %v1932 = vxor.u32 %v1931, 2147483648
    %v1933 = vmul.f32 %v1932, 1.442695
    %v1934 = vpow.pop %v1933
    %v1935 = vadd.f32 %v1934, 1.0
    %v1936 = vrcp.pop %v1935
    %v1937 = vmul.f32 %v1935, %v1936
    %v1938 = vsub.f32 1.0, %v1937
    %v1939 = vmul.f32 %v1936, %v1938
    %v1940 = vadd.f32 %v1936, %v1939
    %vm1941 = vweird.f32 %v1935
    %vm1942 = vweird.f32 %v1936
    %vm1943 = vmor %vm1941, %vm1942
    %v1944 = vsel %vm1943, %v1936, %v1940
    %v1945 = vand.u32 2147483647, %v1935
    %vm1946 = vcmp.eq.f32.partialorder %v1945, 8.507059e+37
    %v1947 = vand.u32 %v1935, 2147483648
    %v1948 = vor.u32 1.1754944e-38, %v1947
    %v1949 = vsel %vm1946, %v1948, %v1944
    %v1950 = vmul.f32 1.0, %v1949
    %v1952 = vrot.slane %v1903, 2
    %v1954 = vmul.f32 %v1927, %v1952
    %v1955 = vadd.f32 %v1462, %v1954
    %v1956 = vtanh.pop %v1955
    %v1957 = vsub.f32 1.0, %v1950
    %v1958 = vmul.f32 %v1957, %v1956
    %v1959 = vrot.slane %v1840, 6
    %v1961 = vmul.f32 %v1950, %v1959
    %v1962 = vadd.f32 %v1958, %v1961
    %v1964 = vrot.slane %v1962, 6
    %v1965 = vsel %vm115, %v1964, 0
    %1967 = vmatpush.msra.mxu0 0.0
    %1968 = vmatpush.msra.mxu0 0.0
    %1969 = vmatpush.msra.mxu0 0.0
    %1970 = vmatpush.msra.mxu0 0.0
    %1971 = vmatpush.msra.mxu0 0.0
    %1972 = vmatpush.msra.mxu0 0.0
    %1973 = vmatpush.msra.mxu0 0.0
    %1974 = vmatpush.msra.mxu0 0.0
    %1975 = vmatpush.msra.mxu0 0.0
    %1976 = vmatpush.msra.mxu0 0.0
    %1977 = vmatpush.msra.mxu0 0.0
    %1978 = vmatpush.msra.mxu0 0.0
    %1979 = vmatpush.msra.mxu0 %v1476
    %1980 = vmatpush.msra.mxu0 %v1473
    %1981 = vmatpush.msra.mxu0 %v1470
    %1982 = vmatpush.msra.mxu0 %v1467
    %1983 = vmatmul.f32.gmra.mxu0 %v1965
    %v1984 = vpop.f32.mrf.mxu0
    %v1985 = vadd.f32 %v1482, %v1984
    %1986 = vdwg.mxu0
    %1987 = vmatpush.msra.mxu0 0.0
    %1988 = vmatpush.msra.mxu0 0.0
    %1989 = vmatpush.msra.mxu0 0.0
    %1990 = vmatpush.msra.mxu0 0.0
    %1991 = vmatpush.msra.mxu0 0.0
    %1992 = vmatpush.msra.mxu0 0.0
    %1993 = vmatpush.msra.mxu0 0.0
    %1994 = vmatpush.msra.mxu0 0.0
    %1995 = vmatpush.msra.mxu0 0.0
    %1996 = vmatpush.msra.mxu0 0.0
    %1997 = vmatpush.msra.mxu0 0.0
    %1998 = vmatpush.msra.mxu0 0.0
    %1999 = vmatpush.msra.mxu0 %v1477
    %2000 = vmatpush.msra.mxu0 %v1474
    %2001 = vmatpush.msra.mxu0 %v1471
    %2002 = vmatpush.msra.mxu0 %v1468
    %2003 = vmatmul.f32.gmra.mxu0 %v1965
    %v2004 = vpop.f32.mrf.mxu0
    %v2005 = vadd.f32 %v1483, %v2004
    %2006 = vdwg.mxu0
    %2007 = vmatpush.msra.mxu0 0.0
    %2008 = vmatpush.msra.mxu0 0.0
    %2009 = vmatpush.msra.mxu0 0.0
    %2010 = vmatpush.msra.mxu0 0.0
    %2011 = vmatpush.msra.mxu0 0.0
    %2012 = vmatpush.msra.mxu0 0.0
    %2013 = vmatpush.msra.mxu0 0.0
    %2014 = vmatpush.msra.mxu0 0.0
    %2015 = vmatpush.msra.mxu0 0.0
    %2016 = vmatpush.msra.mxu0 0.0
    %2017 = vmatpush.msra.mxu0 0.0
    %2018 = vmatpush.msra.mxu0 0.0
    %2019 = vmatpush.msra.mxu0 %v1478
    %2020 = vmatpush.msra.mxu0 %v1475
    %2021 = vmatpush.msra.mxu0 %v1472
    %2022 = vmatpush.msra.mxu0 %v1469
    %2023 = vmatmul.f32.gmra.mxu0 %v1965
    %v2024 = vpop.f32.mrf.mxu0
    %v2025 = vadd.f32 %v1484, %v2024
    %2026 = vdwg.mxu0
    %v2027 = vadd.f32 %v1419, %v1985
    %v2028 = vxor.u32 %v2027, 2147483648
    %v2029 = vmul.f32 %v2028, 1.442695
    %v2030 = vpow.pop %v2029
    %v2031 = vadd.f32 %v2030, 1.0
    %v2032 = vrcp.pop %v2031
    %v2033 = vmul.f32 %v2031, %v2032
    %v2034 = vsub.f32 1.0, %v2033
    %v2035 = vmul.f32 %v2032, %v2034
    %v2036 = vadd.f32 %v2032, %v2035
    %vm2037 = vweird.f32 %v2031
    %vm2038 = vweird.f32 %v2032
    %vm2039 = vmor %vm2037, %vm2038
    %v2040 = vsel %vm2039, %v2032, %v2036
    %v2041 = vand.u32 2147483647, %v2031
    %vm2042 = vcmp.eq.f32.partialorder %v2041, 8.507059e+37
    %v2043 = vand.u32 %v2031, 2147483648
    %v2044 = vor.u32 1.1754944e-38, %v2043
    %v2045 = vsel %vm2042, %v2044, %v2040
    %v2046 = vmul.f32 1.0, %v2045
    %v2047 = vadd.f32 %v1442, %v2005
    %v2048 = vxor.u32 %v2047, 2147483648
    %v2049 = vmul.f32 %v2048, 1.442695
    %v2050 = vpow.pop %v2049
    %v2051 = vadd.f32 %v2050, 1.0
    %v2052 = vrcp.pop %v2051
    %v2053 = vmul.f32 %v2051, %v2052
    %v2054 = vsub.f32 1.0, %v2053
    %v2055 = vmul.f32 %v2052, %v2054
    %v2056 = vadd.f32 %v2052, %v2055
    %vm2057 = vweird.f32 %v2051
    %vm2058 = vweird.f32 %v2052
    %vm2059 = vmor %vm2057, %vm2058
    %v2060 = vsel %vm2059, %v2052, %v2056
    %v2061 = vand.u32 2147483647, %v2051
    %vm2062 = vcmp.eq.f32.partialorder %v2061, 8.507059e+37
    %v2063 = vand.u32 %v2051, 2147483648
    %v2064 = vor.u32 1.1754944e-38, %v2063
    %v2065 = vsel %vm2062, %v2064, %v2060
    %v2066 = vmul.f32 1.0, %v2065
    %v2067 = vmul.f32 %v2046, %v2025
    %v2068 = vadd.f32 %v1465, %v2067
    %v2069 = vtanh.pop %v2068
    %v2070 = vsub.f32 1.0, %v2066
    %v2071 = vmul.f32 %v2070, %v2069
    %v2073 = vmul.f32 %v2066, %v1964
    %v2074 = vadd.f32 %v2071, %v2073
    %v2076 = vsel %vm115, %v2074, 0
    %2078 = vmatpush.msra.mxu0 0.0
    %2079 = vmatpush.msra.mxu0 0.0
    %2080 = vmatpush.msra.mxu0 0.0
    %2081 = vmatpush.msra.mxu0 0.0
    %2082 = vmatpush.msra.mxu0 0.0
    %2083 = vmatpush.msra.mxu0 0.0
    %2084 = vmatpush.msra.mxu0 0.0
    %2085 = vmatpush.msra.mxu0 0.0
    %2086 = vmatpush.msra.mxu0 0.0
    %2087 = vmatpush.msra.mxu0 0.0
    %2088 = vmatpush.msra.mxu0 0.0
    %2089 = vmatpush.msra.mxu0 0.0
    %2090 = vmatpush.msra.mxu0 %v1476
    %2091 = vmatpush.msra.mxu0 %v1473
    %2092 = vmatpush.msra.mxu0 %v1470
    %2093 = vmatpush.msra.mxu0 %v1467
    %2094 = vmatmul.f32.gmra.mxu0 %v2076
    %v2095 = vpop.f32.mrf.mxu0
    %v2096 = vadd.f32 %v1482, %v2095
    %2097 = vdwg.mxu0
    %2098 = vmatpush.msra.mxu0 0.0
    %2099 = vmatpush.msra.mxu0 0.0
    %2100 = vmatpush.msra.mxu0 0.0
    %2101 = vmatpush.msra.mxu0 0.0
    %2102 = vmatpush.msra.mxu0 0.0
    %2103 = vmatpush.msra.mxu0 0.0
    %2104 = vmatpush.msra.mxu0 0.0
    %2105 = vmatpush.msra.mxu0 0.0
    %2106 = vmatpush.msra.mxu0 0.0
    %2107 = vmatpush.msra.mxu0 0.0
    %2108 = vmatpush.msra.mxu0 0.0
    %2109 = vmatpush.msra.mxu0 0.0
    %2110 = vmatpush.msra.mxu0 %v1477
    %2111 = vmatpush.msra.mxu0 %v1474
    %2112 = vmatpush.msra.mxu0 %v1471
    %2113 = vmatpush.msra.mxu0 %v1468
    %2114 = vmatmul.f32.gmra.mxu0 %v2076
    %v2115 = vpop.f32.mrf.mxu0
    %v2116 = vadd.f32 %v1483, %v2115
    %2117 = vdwg.mxu0
    %2118 = vmatpush.msra.mxu0 0.0
    %2119 = vmatpush.msra.mxu0 0.0
    %2120 = vmatpush.msra.mxu0 0.0
    %2121 = vmatpush.msra.mxu0 0.0
    %2122 = vmatpush.msra.mxu0 0.0
    %2123 = vmatpush.msra.mxu0 0.0
    %2124 = vmatpush.msra.mxu0 0.0
    %2125 = vmatpush.msra.mxu0 0.0
    %2126 = vmatpush.msra.mxu0 0.0
    %2127 = vmatpush.msra.mxu0 0.0
    %2128 = vmatpush.msra.mxu0 0.0
    %2129 = vmatpush.msra.mxu0 0.0
    %2130 = vmatpush.msra.mxu0 %v1478
    %2131 = vmatpush.msra.mxu0 %v1475
    %2132 = vmatpush.msra.mxu0 %v1472
    %2133 = vmatpush.msra.mxu0 %v1469
    %2134 = vmatmul.f32.gmra.mxu0 %v2076
    %v2135 = vpop.f32.mrf.mxu0
    %v2136 = vadd.f32 %v1484, %v2135
    %2137 = vdwg.mxu0
    %v2139 = vrot.slane %v2096, 6
    %v2141 = vadd.f32 %v1419, %v2139
    %v2142 = vxor.u32 %v2141, 2147483648
    %v2143 = vmul.f32 %v2142, 1.442695
    %v2144 = vpow.pop %v2143
    %v2145 = vadd.f32 %v2144, 1.0
    %v2146 = vrcp.pop %v2145
    %v2147 = vmul.f32 %v2145, %v2146
    %v2148 = vsub.f32 1.0, %v2147
    %v2149 = vmul.f32 %v2146, %v2148
    %v2150 = vadd.f32 %v2146, %v2149
    %vm2151 = vweird.f32 %v2145
    %vm2152 = vweird.f32 %v2146
    %vm2153 = vmor %vm2151, %vm2152
    %v2154 = vsel %vm2153, %v2146, %v2150
    %v2155 = vand.u32 2147483647, %v2145
    %vm2156 = vcmp.eq.f32.partialorder %v2155, 8.507059e+37
    %v2157 = vand.u32 %v2145, 2147483648
    %v2158 = vor.u32 1.1754944e-38, %v2157
    %v2159 = vsel %vm2156, %v2158, %v2154
    %v2160 = vmul.f32 1.0, %v2159
    %v2162 = vrot.slane %v2116, 6
    %v2164 = vadd.f32 %v1442, %v2162
    %v2165 = vxor.u32 %v2164, 2147483648
    %v2166 = vmul.f32 %v2165, 1.442695
    %v2167 = vpow.pop %v2166
    %v2168 = vadd.f32 %v2167, 1.0
    %v2169 = vrcp.pop %v2168
    %v2170 = vmul.f32 %v2168, %v2169
    %v2171 = vsub.f32 1.0, %v2170
    %v2172 = vmul.f32 %v2169, %v2171
    %v2173 = vadd.f32 %v2169, %v2172
    %vm2174 = vweird.f32 %v2168
    %vm2175 = vweird.f32 %v2169
    %vm2176 = vmor %vm2174, %vm2175
    %v2177 = vsel %vm2176, %v2169, %v2173
    %v2178 = vand.u32 2147483647, %v2168
    %vm2179 = vcmp.eq.f32.partialorder %v2178, 8.507059e+37
    %v2180 = vand.u32 %v2168, 2147483648
    %v2181 = vor.u32 1.1754944e-38, %v2180
    %v2182 = vsel %vm2179, %v2181, %v2177
    %v2183 = vmul.f32 1.0, %v2182
    %v2185 = vrot.slane %v2136, 6
    %v2187 = vmul.f32 %v2160, %v2185
    %v2188 = vadd.f32 %v1465, %v2187
    %v2189 = vtanh.pop %v2188
    %v2190 = vsub.f32 1.0, %v2183
    %v2191 = vmul.f32 %v2190, %v2189
    %v2192 = vrot.slane %v2074, 6
    %v2194 = vmul.f32 %v2183, %v2192
    %v2195 = vadd.f32 %v2191, %v2194
    %v2197 = vrot.slane %v2195, 2
    %v2198 = vsel %vm115, %v2197, 0
    %2200 = vmatpush.msra.mxu0 0.0
    %2201 = vmatpush.msra.mxu0 0.0
    %2202 = vmatpush.msra.mxu0 0.0
    %2203 = vmatpush.msra.mxu0 0.0
    %2204 = vmatpush.msra.mxu0 0.0
    %2205 = vmatpush.msra.mxu0 0.0
    %2206 = vmatpush.msra.mxu0 0.0
    %2207 = vmatpush.msra.mxu0 0.0
    %2208 = vmatpush.msra.mxu0 0.0
    %2209 = vmatpush.msra.mxu0 0.0
    %2210 = vmatpush.msra.mxu0 0.0
    %2211 = vmatpush.msra.mxu0 0.0
    %2212 = vmatpush.msra.mxu0 %v1476
    %2213 = vmatpush.msra.mxu0 %v1473
    %2214 = vmatpush.msra.mxu0 %v1470
    %2215 = vmatpush.msra.mxu0 %v1467
    %2216 = vmatmul.f32.gmra.mxu0 %v2198
    %v2217 = vpop.f32.mrf.mxu0
    %v2218 = vadd.f32 %v1482, %v2217
    %2219 = vdwg.mxu0
    %2220 = vmatpush.msra.mxu0 0.0
    %2221 = vmatpush.msra.mxu0 0.0
    %2222 = vmatpush.msra.mxu0 0.0
    %2223 = vmatpush.msra.mxu0 0.0
    %2224 = vmatpush.msra.mxu0 0.0
    %2225 = vmatpush.msra.mxu0 0.0
    %2226 = vmatpush.msra.mxu0 0.0
    %2227 = vmatpush.msra.mxu0 0.0
    %2228 = vmatpush.msra.mxu0 0.0
    %2229 = vmatpush.msra.mxu0 0.0
    %2230 = vmatpush.msra.mxu0 0.0
    %2231 = vmatpush.msra.mxu0 0.0
    %2232 = vmatpush.msra.mxu0 %v1477
    %2233 = vmatpush.msra.mxu0 %v1474
    %2234 = vmatpush.msra.mxu0 %v1471
    %2235 = vmatpush.msra.mxu0 %v1468
    %2236 = vmatmul.f32.gmra.mxu0 %v2198
    %v2237 = vpop.f32.mrf.mxu0
    %v2238 = vadd.f32 %v1483, %v2237
    %2239 = vdwg.mxu0
    %2240 = vmatpush.msra.mxu0 0.0
    %2241 = vmatpush.msra.mxu0 0.0
    %2242 = vmatpush.msra.mxu0 0.0
    %2243 = vmatpush.msra.mxu0 0.0
    %2244 = vmatpush.msra.mxu0 0.0
    %2245 = vmatpush.msra.mxu0 0.0
    %2246 = vmatpush.msra.mxu0 0.0
    %2247 = vmatpush.msra.mxu0 0.0
    %2248 = vmatpush.msra.mxu0 0.0
    %2249 = vmatpush.msra.mxu0 0.0
    %2250 = vmatpush.msra.mxu0 0.0
    %2251 = vmatpush.msra.mxu0 0.0
    %2252 = vmatpush.msra.mxu0 %v1478
    %2253 = vmatpush.msra.mxu0 %v1475
    %2254 = vmatpush.msra.mxu0 %v1472
    %2255 = vmatpush.msra.mxu0 %v1469
    %2256 = vmatmul.f32.gmra.mxu0 %v2198
    %v2257 = vpop.f32.mrf.mxu0
    %v2258 = vadd.f32 %v1484, %v2257
    %2259 = vdwg.mxu0
    %v2261 = vrot.slane %v2218, 4
    %v2263 = vadd.f32 %v1419, %v2261
    %v2264 = vxor.u32 %v2263, 2147483648
    %v2265 = vmul.f32 %v2264, 1.442695
    %v2266 = vpow.pop %v2265
    %v2267 = vadd.f32 %v2266, 1.0
    %v2268 = vrcp.pop %v2267
    %v2269 = vmul.f32 %v2267, %v2268
    %v2270 = vsub.f32 1.0, %v2269
    %v2271 = vmul.f32 %v2268, %v2270
    %v2272 = vadd.f32 %v2268, %v2271
    %vm2273 = vweird.f32 %v2267
    %vm2274 = vweird.f32 %v2268
    %vm2275 = vmor %vm2273, %vm2274
    %v2276 = vsel %vm2275, %v2268, %v2272
    %v2277 = vand.u32 2147483647, %v2267
    %vm2278 = vcmp.eq.f32.partialorder %v2277, 8.507059e+37
    %v2279 = vand.u32 %v2267, 2147483648
    %v2280 = vor.u32 1.1754944e-38, %v2279
    %v2281 = vsel %vm2278, %v2280, %v2276
    %v2282 = vmul.f32 1.0, %v2281
    %v2284 = vrot.slane %v2238, 4
    %v2286 = vadd.f32 %v1442, %v2284
    %v2287 = vxor.u32 %v2286, 2147483648
    %v2288 = vmul.f32 %v2287, 1.442695
    %v2289 = vpow.pop %v2288
    %v2290 = vadd.f32 %v2289, 1.0
    %v2291 = vrcp.pop %v2290
    %v2292 = vmul.f32 %v2290, %v2291
    %v2293 = vsub.f32 1.0, %v2292
    %v2294 = vmul.f32 %v2291, %v2293
    %v2295 = vadd.f32 %v2291, %v2294
    %vm2296 = vweird.f32 %v2290
    %vm2297 = vweird.f32 %v2291
    %vm2298 = vmor %vm2296, %vm2297
    %v2299 = vsel %vm2298, %v2291, %v2295
    %v2300 = vand.u32 2147483647, %v2290
    %vm2301 = vcmp.eq.f32.partialorder %v2300, 8.507059e+37
    %v2302 = vand.u32 %v2290, 2147483648
    %v2303 = vor.u32 1.1754944e-38, %v2302
    %v2304 = vsel %vm2301, %v2303, %v2299
    %v2305 = vmul.f32 1.0, %v2304
    %v2307 = vrot.slane %v2258, 4
    %v2309 = vmul.f32 %v2282, %v2307
    %v2310 = vadd.f32 %v1465, %v2309
    %v2311 = vtanh.pop %v2310
    %v2312 = vsub.f32 1.0, %v2305
    %v2313 = vmul.f32 %v2312, %v2311
    %v2314 = vrot.slane %v2195, 6
    %v2316 = vmul.f32 %v2305, %v2314
    %v2317 = vadd.f32 %v2313, %v2316
    %v2319 = vrot.slane %v2317, 4
    %v2320 = vsel %vm115, %v2319, 0
    %2322 = vmatpush.msra.mxu0 0.0
    %2323 = vmatpush.msra.mxu0 0.0
    %2324 = vmatpush.msra.mxu0 0.0
    %2325 = vmatpush.msra.mxu0 0.0
    %2326 = vmatpush.msra.mxu0 0.0
    %2327 = vmatpush.msra.mxu0 0.0
    %2328 = vmatpush.msra.mxu0 0.0
    %2329 = vmatpush.msra.mxu0 0.0
    %2330 = vmatpush.msra.mxu0 0.0
    %2331 = vmatpush.msra.mxu0 0.0
    %2332 = vmatpush.msra.mxu0 0.0
    %2333 = vmatpush.msra.mxu0 0.0
    %2334 = vmatpush.msra.mxu0 %v1476
    %2335 = vmatpush.msra.mxu0 %v1473
    %2336 = vmatpush.msra.mxu0 %v1470
    %2337 = vmatpush.msra.mxu0 %v1467
    %2338 = vmatmul.f32.gmra.mxu0 %v2320
    %v2339 = vpop.f32.mrf.mxu0
    %v2340 = vadd.f32 %v1482, %v2339
    %2341 = vdwg.mxu0
    %2342 = vmatpush.msra.mxu0 0.0
    %2343 = vmatpush.msra.mxu0 0.0
    %2344 = vmatpush.msra.mxu0 0.0
    %2345 = vmatpush.msra.mxu0 0.0
    %2346 = vmatpush.msra.mxu0 0.0
    %2347 = vmatpush.msra.mxu0 0.0
    %2348 = vmatpush.msra.mxu0 0.0
    %2349 = vmatpush.msra.mxu0 0.0
    %2350 = vmatpush.msra.mxu0 0.0
    %2351 = vmatpush.msra.mxu0 0.0
    %2352 = vmatpush.msra.mxu0 0.0
    %2353 = vmatpush.msra.mxu0 0.0
    %2354 = vmatpush.msra.mxu0 %v1477
    %2355 = vmatpush.msra.mxu0 %v1474
    %2356 = vmatpush.msra.mxu0 %v1471
    %2357 = vmatpush.msra.mxu0 %v1468
    %2358 = vmatmul.f32.gmra.mxu0 %v2320
    %v2359 = vpop.f32.mrf.mxu0
    %v2360 = vadd.f32 %v1483, %v2359
    %2361 = vdwg.mxu0
    %2362 = vmatpush.msra.mxu0 0.0
    %2363 = vmatpush.msra.mxu0 0.0
    %2364 = vmatpush.msra.mxu0 0.0
    %2365 = vmatpush.msra.mxu0 0.0
    %2366 = vmatpush.msra.mxu0 0.0
    %2367 = vmatpush.msra.mxu0 0.0
    %2368 = vmatpush.msra.mxu0 0.0
    %2369 = vmatpush.msra.mxu0 0.0
    %2370 = vmatpush.msra.mxu0 0.0
    %2371 = vmatpush.msra.mxu0 0.0
    %2372 = vmatpush.msra.mxu0 0.0
    %2373 = vmatpush.msra.mxu0 0.0
    %2374 = vmatpush.msra.mxu0 %v1478
    %2375 = vmatpush.msra.mxu0 %v1475
    %2376 = vmatpush.msra.mxu0 %v1472
    %2377 = vmatpush.msra.mxu0 %v1469
    %2378 = vmatmul.f32.gmra.mxu0 %v2320
    %v2379 = vpop.f32.mrf.mxu0
    %v2380 = vadd.f32 %v1484, %v2379
    %2381 = vdwg.mxu0
    %v2383 = vrot.slane %v2340, 2
    %v2385 = vadd.f32 %v1419, %v2383
    %v2386 = vxor.u32 %v2385, 2147483648
    %v2387 = vmul.f32 %v2386, 1.442695
    %v2388 = vpow.pop %v2387
    %v2389 = vadd.f32 %v2388, 1.0
    %v2390 = vrcp.pop %v2389
    %v2391 = vmul.f32 %v2389, %v2390
    %v2392 = vsub.f32 1.0, %v2391
    %v2393 = vmul.f32 %v2390, %v2392
    %v2394 = vadd.f32 %v2390, %v2393
    %vm2395 = vweird.f32 %v2389
    %vm2396 = vweird.f32 %v2390
    %vm2397 = vmor %vm2395, %vm2396
    %v2398 = vsel %vm2397, %v2390, %v2394
    %v2399 = vand.u32 2147483647, %v2389
    %vm2400 = vcmp.eq.f32.partialorder %v2399, 8.507059e+37
    %v2401 = vand.u32 %v2389, 2147483648
    %v2402 = vor.u32 1.1754944e-38, %v2401
    %v2403 = vsel %vm2400, %v2402, %v2398
    %v2404 = vmul.f32 1.0, %v2403
    %v2406 = vrot.slane %v2360, 2
    %v2408 = vadd.f32 %v1442, %v2406
    %v2409 = vxor.u32 %v2408, 2147483648
    %v2410 = vmul.f32 %v2409, 1.442695
    %v2411 = vpow.pop %v2410
    %v2412 = vadd.f32 %v2411, 1.0
    %v2413 = vrcp.pop %v2412
    %v2414 = vmul.f32 %v2412, %v2413
    %v2415 = vsub.f32 1.0, %v2414
    %v2416 = vmul.f32 %v2413, %v2415
    %v2417 = vadd.f32 %v2413, %v2416
    %vm2418 = vweird.f32 %v2412
    %vm2419 = vweird.f32 %v2413
    %vm2420 = vmor %vm2418, %vm2419
    %v2421 = vsel %vm2420, %v2413, %v2417
    %v2422 = vand.u32 2147483647, %v2412
    %vm2423 = vcmp.eq.f32.partialorder %v2422, 8.507059e+37
    %v2424 = vand.u32 %v2412, 2147483648
    %v2425 = vor.u32 1.1754944e-38, %v2424
    %v2426 = vsel %vm2423, %v2425, %v2421
    %v2427 = vmul.f32 1.0, %v2426
    %v2429 = vrot.slane %v2380, 2
    %v2431 = vmul.f32 %v2404, %v2429
    %v2432 = vadd.f32 %v1465, %v2431
    %v2433 = vtanh.pop %v2432
    %v2434 = vsub.f32 1.0, %v2427
    %v2435 = vmul.f32 %v2434, %v2433
    %v2436 = vrot.slane %v2317, 6
    %v2438 = vmul.f32 %v2427, %v2436
    %v2439 = vadd.f32 %v2435, %v2438
    %v2440 = vld [vmem:[#allocation2 + $0xd8] sm:$0xff]
    %v2441 = vld [vmem:[#allocation2 + $0xe0] sm:$0xff]
    %v2442 = vld [vmem:[#allocation2 + $0x1f8] sm:$0xff]
    %v2443 = vld [vmem:[#allocation2 + $0x200] sm:$0xff]
    %v2444 = vld [vmem:[#allocation2 + $0x318] sm:$0xff]
    %v2445 = vld [vmem:[#allocation2 + $0x320] sm:$0xff]
    %v2446 = vld [vmem:[#allocation2 + $0x438] sm:$0xff]
    %v2447 = vld [vmem:[#allocation2 + $0x440] sm:$0xff]
    %s2448 = scalar_lea.vmem [#allocation2], 1944
    %v2449 = vld [vmem:[%s2448] ss:$8 sm:$0x3]
    %v2451 = vperm.slane %v2449, 0
    %v2452 = vperm.slane %v2449, 1
    %v2456 = vrot.slane %v2439, 6
    %v2457 = vsel %vm115, %v2456, 0
    %2459 = vmatpush.msra.mxu0 0.0
    %2460 = vmatpush.msra.mxu0 0.0
    %2461 = vmatpush.msra.mxu0 0.0
    %2462 = vmatpush.msra.mxu0 0.0
    %2463 = vmatpush.msra.mxu0 0.0
    %2464 = vmatpush.msra.mxu0 0.0
    %2465 = vmatpush.msra.mxu0 0.0
    %2466 = vmatpush.msra.mxu0 0.0
    %2467 = vmatpush.msra.mxu0 0.0
    %2468 = vmatpush.msra.mxu0 0.0
    %2469 = vmatpush.msra.mxu0 0.0
    %2470 = vmatpush.msra.mxu0 0.0
    %2471 = vmatpush.msra.mxu0 %v2446
    %2472 = vmatpush.msra.mxu0 %v2444
    %2473 = vmatpush.msra.mxu0 %v2442
    %2474 = vmatpush.msra.mxu0 %v2440
    %2475 = vmatmul.f32.gmra.mxu0 %v2457
    %v2476 = vpop.f32.mrf.mxu0
    %v2477 = vadd.f32 %v2451, %v2476
    %2478 = vdwg.mxu0
    %2479 = vmatpush.msra.mxu0 0.0
    %2480 = vmatpush.msra.mxu0 0.0
    %2481 = vmatpush.msra.mxu0 0.0
    %2482 = vmatpush.msra.mxu0 0.0
    %2483 = vmatpush.msra.mxu0 0.0
    %2484 = vmatpush.msra.mxu0 0.0
    %2485 = vmatpush.msra.mxu0 0.0
    %2486 = vmatpush.msra.mxu0 0.0
    %2487 = vmatpush.msra.mxu0 0.0
    %2488 = vmatpush.msra.mxu0 0.0
    %2489 = vmatpush.msra.mxu0 0.0
    %2490 = vmatpush.msra.mxu0 0.0
    %2491 = vmatpush.msra.mxu0 %v2447
    %2492 = vmatpush.msra.mxu0 %v2445
    %2493 = vmatpush.msra.mxu0 %v2443
    %2494 = vmatpush.msra.mxu0 %v2441
    %2495 = vmatmul.f32.gmra.mxu0 %v2457
    %v2496 = vpop.f32.mrf.mxu0
    %v2497 = vadd.f32 %v2452, %v2496
    %2498 = vdwg.mxu0
    %vm2499 = vcmask 25600
    %v2500 = vsel %vm2499, %v2497, -inf
    %2501 = vmax.xlane.f32.xlu0 %v2500
    %v2502 = vpop.xlane.xlu0 %2501
    %v2503 = vsub.f32 %v2497, %v2502
    %v2504 = vmul.f32 %v2503, 1.442695
    %v2505 = vpow.pop %v2504
    %v2506 = vsel %vm2499, %v2505, 0.0
    %2507 = vadd.xlane.f32.xlu0 %v2506
    %v2508 = vpop.xlane.xlu0 %2507
    %v2509 = vlog2.pop %v2508
    %v2510 = vmul.f32 %v2509, 0.6931472
    %v2511 = vsub.f32 %v2503, %v2510
    %v2512 = vmul.f32 %v2511, 1.442695
    %v2513 = vpow.pop %v2512
    %v2514 = vmul.f32 %v2513, %v2511
    %v2515 = vsel %vm2499, %v2514, 0.0
    %2516 = vadd.xlane.f32.xlu0 %v2515
    %v2517 = vpop.xlane.xlu0 %2516
    %v2518 = vsub.f32 0.0, %v2517
    %v2519 = vsel %vm905, %v896, %v1188
    %v2520 = vsel %vm905, %v897, %v1189
    %vm2521 = vcmask 400384
    %v2522 = vsel %vm2521, %v2519, 0.0
    %v2523 = vsel %vm2521, %v2520, 0.0
    %2524 = vst [vmem:[%s3] sm:$0xff] %v2522
    %2525 = vst [vmem:[%s3 + $0x8] sm:$0xff] %v2523
    %v2527 = vrot.slane %v2497, 2
    %2528 = vrot.lane.b32.xlu0 %v2527, 32
    %v2529 = vpop.permute.xlu0 %2528
    %v2532 = vrot.slane %v2511, 2
    %2533 = vrot.lane.b32.xlu0 %v2532, 36
    %v2534 = vpop.permute.xlu0 %2533
    %v2537 = vrot.slane %v2477, 2
    %2538 = vrot.lane.b32.xlu0 %v2537, 40
    %v2539 = vpop.permute.xlu0 %2538
    %v2542 = vrot.slane %v2518, 2
    %v2545 = vrot.slane %v1273, 2
    %2546 = vrot.lane.b32.xlu0 %v2545, 42
    %v2547 = vpop.permute.xlu0 %2546
    %v2549 = vsel %vm115, %v2439, %v2529
    %vm2550 = vcmask 293888
    %v2551 = vsel %vm2550, %v2549, %v2534
    %v2552 = vsel %vm148, %v2551, %v2539
    %vm2553 = vcmask 334848
    %v2554 = vsel %vm2553, %v2552, %v2542
    %vm2555 = vcmask 343040
    %v2556 = vsel %vm2555, %v2554, %v2547
    %vm2557 = vcmask 351232
    %v2558 = vsel %vm2557, %v2556, 0.0
    %2559 = vst [vmem:[%s4 - $0x6] sm:$0xc0] %v2558
    // Predicated region
    $region18: #{forward.1} parent=1 // pred_check
      _
    $region19: #{forward.1} parent=1 // pred_check_branch
      %2561 = sbr.rel (0) target = $region21
    $region20: #{forward.1} parent=1 // pred_region
      _
    $region21: #{forward.1} parent=1 // pred_fallthru
      _
    // Predicated region
    $region22: #{forward.1} parent=1 // pred_check
      _
    $region23: #{forward.1} parent=1 // pred_check_branch
      %2563 = sbr.rel (0) target = $region25
    $region24: #{forward.1} parent=1 // pred_region
      _
    $region25: #{forward.1} parent=1 // pred_fallthru
      _
    // Predicated region
    $region26: #{forward.1} parent=1 // pred_check
      _
    $region27: #{forward.1} parent=1 // pred_check_branch
      %2565 = sbr.rel (0) target = $region29
    $region28: #{forward.1} parent=1 // pred_region
      _
    $region29: #{forward.1} parent=1 // pred_fallthru
      _
    // Predicated region
    $region30: #{forward.1} parent=1 // pred_check
      _
    $region31: #{forward.1} parent=1 // pred_check_branch
      %2567 = sbr.rel (0) target = $region33
    $region32: #{forward.1} parent=1 // pred_region
      _
    $region33: #{forward.1} parent=1 // pred_fallthru
      _
    %2568 = vsyncpa [#allocation3], 1

</llo_original>
